<compile_context>
chip_gen: v7x
topology: tpu7x:2x2x1
jax: 0.10.0
libtpu: 0.0.40
codegen_flags: <defaults>
</compile_context>

<pallas_src>
import functools

import jax
import jax.numpy as jnp
import numpy as np
from jax.experimental import pallas as pl
from jax.experimental.pallas import tpu as pltpu

KH = 5  # conv kernel size (5x5 for both convs)


# ----------------------------------------------------------------------------
# Fused Pallas kernel: one grid step == one image, everything VMEM-resident.
# ----------------------------------------------------------------------------
def _lenet_kernel(x_ref, m1_ref, b1_ref, sh1_ref, sw1_ref,
                  m2_ref, b2_ref, sh2_ref, sw2_ref,
                  wfc1_ref, bfc1_ref, wfc2_ref, bfc2_ref, wfc3_ref, bfc3_ref,
                  out_ref, *, ho1, p1h, pr1, cpad1, ho2, p2h, pr2, cpad2):

    def mm(a, b):
        # MXU in bf16, accumulate in f32.
        return jnp.dot(a.astype(jnp.bfloat16), b.astype(jnp.bfloat16),
                       preferred_element_type=jnp.float32)

    img = x_ref[0]                                       # (H, Cin*W) f32

    # ---- conv1 (+bias, ReLU): banded matmul over the KH kernel rows ----
    m1 = m1_ref[...]
    acc1 = mm(img[0:ho1, :], m1[0])
    for di in range(1, KH):
        acc1 = acc1 + mm(img[di:di + ho1, :], m1[di])
    a1 = jnp.maximum(acc1 + b1_ref[...], 0.0)            # (Ho1, OC1*Wo1) f32

    # ---- maxpool1 2x2: merged 0/1 selection matmuls + elementwise max ----
    rfull = mm(sh1_ref[...], a1)                         # (2*pr1, OC1*Wo1)
    r1 = jnp.maximum(rfull[0:p1h, :], rfull[pr1:pr1 + p1h, :])
    pfull = mm(r1, sw1_ref[...])                         # (P1h, 2*cpad1)
    p1 = jnp.maximum(pfull[:, 0:cpad1], pfull[:, cpad1:2 * cpad1])  # (P1h, cpad1)

    # ---- conv2 (+bias, ReLU) ----
    m2 = m2_ref[...]
    acc2 = mm(p1[0:ho2, :], m2[0])
    for di in range(1, KH):
        acc2 = acc2 + mm(p1[di:di + ho2, :], m2[di])
    a2 = jnp.maximum(acc2 + b2_ref[...], 0.0)            # (Ho2, OC2*Wo2)

    # ---- maxpool2 2x2 (merged selects) ----
    rfull2 = mm(sh2_ref[...], a2)                        # (2*pr2, OC2*Wo2)
    r2 = jnp.maximum(rfull2[0:p2h, :], rfull2[pr2:pr2 + p2h, :])
    pfull2 = mm(r2, sw2_ref[...])                        # (P2h, 2*cpad2)
    p2 = jnp.maximum(pfull2[:, 0:cpad2], pfull2[:, cpad2:2 * cpad2])  # (P2h, cpad2)

    # ---- fc1 (+ReLU): sum over pooled rows; weights pre-permuted + lane-padded
    #      on the host so no in-kernel flatten/transpose is required ----
    wfc1 = wfc1_ref[...]
    h = mm(p2[0:1, :], wfc1[0:cpad2, :])
    for p in range(1, p2h):
        h = h + mm(p2[p:p + 1, :], wfc1[p * cpad2:(p + 1) * cpad2, :])
    h1 = jnp.maximum(h + bfc1_ref[...], 0.0)             # (1, 120)

    # ---- fc2 (+ReLU), fc (no activation, classes lane-padded to 128) ----
    h2 = jnp.maximum(mm(h1, wfc2_ref[...]) + bfc2_ref[...], 0.0)     # (1, 84)
    logits = mm(h2, wfc3_ref[...]) + bfc3_ref[...]                   # (1, ncls_pad)

    # Single lane-dense full-tile store (wrapper slices padding off).
    out_ref[...] = jnp.broadcast_to(logits, out_ref.shape).astype(out_ref.dtype)


# ----------------------------------------------------------------------------
# One-time host-side weight layout preparation (NOT per forward pass)
# ----------------------------------------------------------------------------
def _conv_band_matrices(w, in_w, out_w, k_pad):
    # w: (OC, IC, K, K) -> m: (K, k_pad, OC*out_w) with
    # m[di, ic*in_w + j + dj, oc*out_w + j] = w[oc, ic, di, dj]; rows >= IC*in_w zero.
    oc_n, ic_n, kk, _ = w.shape
    m = np.zeros((kk, k_pad, oc_n * out_w), np.float32)
    for di in range(kk):
        for ic in range(ic_n):
            for oc in range(oc_n):
                for dj in range(kk):
                    for j in range(out_w):
                        m[di, ic * in_w + j + dj, oc * out_w + j] = w[oc, ic, di, dj]
    return m


def _row_select_merged(out_h, in_h):
    # Rows 0..out_h-1 select even source rows, rows pad..pad+out_h-1 select odd.
    pad = ((out_h + 7) // 8) * 8
    s = np.zeros((2 * pad, in_h), np.float32)
    for p in range(out_h):
        s[p, 2 * p] = 1.0
        s[pad + p, 2 * p + 1] = 1.0
    return s, pad


def _col_select_merged(nch, in_w, out_w):
    # Lanes 0..nch*out_w-1 select even source columns, lanes cpad.. select odd.
    cpad = ((nch * out_w + 127) // 128) * 128
    s = np.zeros((nch * in_w, 2 * cpad), np.float32)
    for c in range(nch):
        for q in range(out_w):
            s[c * in_w + 2 * q, c * out_w + q] = 1.0
            s[c * in_w + 2 * q + 1, cpad + c * out_w + q] = 1.0
    return s, cpad


def _permute_fc1(fc1_w, oc2, p2h, p2w, cpad2):
    # torch flatten order: k = oc*(p2h*p2w) + p*p2w + q
    # kernel pooled layout: row = p*cpad2 + oc*p2w + q   (lane-padded to cpad2)
    out_dim = fc1_w.shape[0]
    wp = np.zeros((p2h * cpad2, out_dim), np.float32)
    for p in range(p2h):
        for oc in range(oc2):
            for q in range(p2w):
                k = oc * (p2h * p2w) + p * p2w + q
                wp[p * cpad2 + oc * p2w + q, :] = fc1_w[:, k]
    return wp


def prepare_fused_inputs(params, in_channels, height, width):
    kh = KH
    oc1 = params["conv1_w"].shape[0]
    oc2 = params["conv2_w"].shape[0]
    num_classes = params["fc_w"].shape[0]
    ho1, wo1 = height - (kh - 1), width - (kh - 1)
    p1h, p1w = ho1 // 2, wo1 // 2
    ho2, wo2 = p1h - (kh - 1), p1w - (kh - 1)
    p2h, p2w = ho2 // 2, wo2 // 2
    cw = in_channels * width

    w1 = np.asarray(params["conv1_w"], np.float32)
    w2 = np.asarray(params["conv2_w"], np.float32)
    fc1_w = np.asarray(params["fc1_w"], np.float32)
    assert fc1_w.shape[1] == oc2 * p2h * p2w, "dim must equal 16*P2h*P2w"

    sh1, pr1 = _row_select_merged(p1h, ho1)
    sw1, cpad1 = _col_select_merged(oc1, wo1, p1w)
    sh2, pr2 = _row_select_merged(p2h, ho2)
    sw2, cpad2 = _col_select_merged(oc2, wo2, p2w)
    ncls_pad = ((num_classes + 127) // 128) * 128

    m1 = _conv_band_matrices(w1, width, wo1, cw)
    m2 = _conv_band_matrices(w2, p1w, wo2, cpad1)
    wfc1 = _permute_fc1(fc1_w, oc2, p2h, p2w, cpad2)
    wfc3 = np.zeros((params["fc2_w"].shape[0], ncls_pad), np.float32)
    wfc3[:, :num_classes] = np.asarray(params["fc_w"], np.float32).T
    bfc3 = np.zeros((1, ncls_pad), np.float32)
    bfc3[0, :num_classes] = np.asarray(params["fc_b"], np.float32)

    bf = jnp.bfloat16   # MXU operands in bf16 (0/1 selects are exact in bf16)
    prep = dict(
        m1=jnp.asarray(m1, bf),
        b1=jnp.asarray(np.repeat(np.asarray(params["conv1_b"], np.float32), wo1)[None, :]),
        sh1=jnp.asarray(sh1, bf), sw1=jnp.asarray(sw1, bf),
        m2=jnp.asarray(m2, bf),
        b2=jnp.asarray(np.repeat(np.asarray(params["conv2_b"], np.float32), wo2)[None, :]),
        sh2=jnp.asarray(sh2, bf), sw2=jnp.asarray(sw2, bf),
        wfc1=jnp.asarray(wfc1, bf),
        bfc1=jnp.asarray(np.asarray(params["fc1_b"], np.float32)[None, :]),
        wfc2=jnp.asarray(np.asarray(params["fc2_w"], np.float32).T, bf),
        bfc2=jnp.asarray(np.asarray(params["fc2_b"], np.float32)[None, :]),
        wfc3=jnp.asarray(wfc3, bf),
        bfc3=jnp.asarray(bfc3),
    )

    def mmf(m, k, n):
        return 2 * m * k * n
    flops = (kh * mmf(ho1, cw, oc1 * wo1)
             + mmf(2 * pr1, ho1, oc1 * wo1) + mmf(p1h, oc1 * wo1, 2 * cpad1)
             + kh * mmf(ho2, cpad1, oc2 * wo2)
             + mmf(2 * pr2, ho2, oc2 * wo2) + mmf(p2h, oc2 * wo2, 2 * cpad2)
             + p2h * mmf(1, cpad2, wfc1.shape[1])
             + mmf(1, wfc1.shape[1], wfc3.shape[0]) + mmf(1, wfc3.shape[0], ncls_pad))

    sizes = dict(ho1=ho1, p1h=p1h, pr1=pr1, cpad1=cpad1,
                 ho2=ho2, p2h=p2h, pr2=pr2, cpad2=cpad2,
                 num_classes=num_classes, ncls_pad=ncls_pad,
                 flops_per_image=int(flops))
    return prep, sizes


# ----------------------------------------------------------------------------
# Fused forward: single pallas_call, batch grid axis, weights resident in VMEM.
# ----------------------------------------------------------------------------
def net_forward_fused(prep, sizes, x):
    n, c, h, w = x.shape
    # Layout-only transform (a no-op for in_channels == 1): (N,C,H,W) -> (N,H,C*W)
    ximg = jnp.transpose(x, (0, 2, 1, 3)).reshape(n, h, c * w).astype(jnp.float32)

    order = ["m1", "b1", "sh1", "sw1", "m2", "b2", "sh2", "sw2",
             "wfc1", "bfc1", "wfc2", "bfc2", "wfc3", "bfc3"]
    weights = [prep[k] for k in order]
    ncls_pad = sizes["ncls_pad"]
    num_classes = sizes["num_classes"]

    kern = functools.partial(
        _lenet_kernel,
        **{k: sizes[k] for k in ("ho1", "p1h", "pr1", "cpad1",
                                 "ho2", "p2h", "pr2", "cpad2")})

    def const_spec(a):
        nd = a.ndim
        return pl.BlockSpec(a.shape, lambda b, _nd=nd: (0,) * _nd)

    in_specs = [pl.BlockSpec((1, h, c * w), lambda b: (b, 0, 0))]
    in_specs += [const_spec(a) for a in weights]
    out_spec = pl.BlockSpec((1, 8, ncls_pad), lambda b: (b, 0, 0))

    bytes_accessed = int(sum(int(a.size) * a.dtype.itemsize for a in weights)
                         + ximg.size * 4 + n * 8 * ncls_pad * 4)
    cost = pl.CostEstimate(flops=sizes["flops_per_image"] * n,
                           transcendentals=0,
                           bytes_accessed=bytes_accessed)

    out = pl.pallas_call(
        kern,
        grid=(n,),
        out_shape=jax.ShapeDtypeStruct((n, 8, ncls_pad), jnp.float32),
        in_specs=in_specs,
        out_specs=out_spec,
        compiler_params=pltpu.CompilerParams(dimension_semantics=("parallel",)),
        cost_estimate=cost,
    )(ximg, *weights)
    return out[:, 0, :num_classes]


# ----------------------------------------------------------------------------
# Parameters (PyTorch-layout) and a pure-JAX reference for the sanity check
# ----------------------------------------------------------------------------
def init_params(key, in_channels, num_classes, dim):
    ks = jax.random.split(key, 10)
    s = 0.1
    return {
        "conv1_w": jax.random.normal(ks[0], (6, in_channels, 5, 5), jnp.float32) * s,
        "conv1_b": jax.random.normal(ks[1], (6,), jnp.float32) * s,
        "conv2_w": jax.random.normal(ks[2], (16, 6, 5, 5), jnp.float32) * s,
        "conv2_b": jax.random.normal(ks[3], (16,), jnp.float32) * s,
        "fc1_w": jax.random.normal(ks[4], (120, dim), jnp.float32) * s,
        "fc1_b": jax.random.normal(ks[5], (120,), jnp.float32) * s,
        "fc2_w": jax.random.normal(ks[6], (84, 120), jnp.float32) * s,
        "fc2_b": jax.random.normal(ks[7], (84,), jnp.float32) * s,
        "fc_w": jax.random.normal(ks[8], (num_classes, 84), jnp.float32) * s,
        "fc_b": jax.random.normal(ks[9], (num_classes,), jnp.float32) * s,
    }


def net_reference(params, x):
    def conv(xx, w, b):
        y = jax.lax.conv_general_dilated(
            xx, w, window_strides=(1, 1), padding="VALID",
            dimension_numbers=("NCHW", "OIHW", "NCHW"))
        return jax.nn.relu(y + b[None, :, None, None])

    def pool(xx):
        return jax.lax.reduce_window(
            xx, -jnp.inf, jax.lax.max,
            window_dimensions=(1, 1, 2, 2), window_strides=(1, 1, 2, 2),
            padding="VALID")

    out = pool(conv(x, params["conv1_w"], params["conv1_b"]))
    out = pool(conv(out, params["conv2_w"], params["conv2_b"]))
    out = out.reshape(out.shape[0], -1)
    out = jax.nn.relu(out @ params["fc1_w"].T + params["fc1_b"])
    out = jax.nn.relu(out @ params["fc2_w"].T + params["fc2_b"])
    out = out @ params["fc_w"].T + params["fc_b"]
    return out


if __name__ == "__main__":
    # Classic LeNet sizing: 32x32 input -> conv/pool x2 -> 16*5*5 = 400 = dim.
    # batch=8 exercises the batch grid axis and amortizes the weight DMA.
    batch, in_channels, spatial = 8, 1, 32
    num_classes, dim = 10, 16 * 5 * 5

    key = jax.random.PRNGKey(0)
    pkey, xkey = jax.random.split(key)
    params = init_params(pkey, in_channels, num_classes, dim)
    x = jax.random.normal(xkey, (batch, in_channels, spatial, spatial), jnp.float32)

    # One-time weight layout prep (outside the forward pass).
    prep, sizes = prepare_fused_inputs(params, in_channels, spatial, spatial)

    out = net_forward_fused(prep, sizes, x)
    out = jax.block_until_ready(out)
    assert out.shape == (batch, num_classes), out.shape

    ref = jax.block_until_ready(net_reference(params, x))
    # Tolerance accounts for bf16 MXU operands (the f32 reference is exact).
    np.testing.assert_allclose(np.asarray(out), np.asarray(ref), atol=8e-2, rtol=8e-2)

    print("KERNEL_OK")
</pallas_src>

<mosaic_0001>
module attributes {stable_mosaic.version = 11 : i64} {
  func.func @_lenet_kernel(%arg0: i32, %arg1: memref<1x32x32xf32, #tpu.memory_space<vmem>>, %arg2: memref<5x32x168xbf16, #tpu.memory_space<vmem>>, %arg3: memref<1x168xf32, #tpu.memory_space<vmem>>, %arg4: memref<32x28xbf16, #tpu.memory_space<vmem>>, %arg5: memref<168x256xbf16, #tpu.memory_space<vmem>>, %arg6: memref<5x128x160xbf16, #tpu.memory_space<vmem>>, %arg7: memref<1x160xf32, #tpu.memory_space<vmem>>, %arg8: memref<16x10xbf16, #tpu.memory_space<vmem>>, %arg9: memref<160x256xbf16, #tpu.memory_space<vmem>>, %arg10: memref<640x120xbf16, #tpu.memory_space<vmem>>, %arg11: memref<1x120xf32, #tpu.memory_space<vmem>>, %arg12: memref<120x84xbf16, #tpu.memory_space<vmem>>, %arg13: memref<1x84xf32, #tpu.memory_space<vmem>>, %arg14: memref<84x128xbf16, #tpu.memory_space<vmem>>, %arg15: memref<1x128xf32, #tpu.memory_space<vmem>>, %arg16: memref<1x8x128xf32, #tpu.memory_space<vmem>>) attributes {dimension_semantics = [#tpu.dimension_semantics<parallel>], iteration_bounds = array<i64: 8>, scalar_prefetch = 0 : i64, scratch_operands = 0 : i64, tpu.core_type = #tpu.core_type<tc>, window_params = [{transform_indices = @transform_0, window_bounds = array<i64: 1, 32, 32>}, {pipeline_mode = #tpu.pipeline_mode<synchronous>, transform_indices = @transform_1, window_bounds = array<i64: 5, 32, 168>}, {pipeline_mode = #tpu.pipeline_mode<synchronous>, transform_indices = @transform_2, window_bounds = array<i64: 1, 168>}, {pipeline_mode = #tpu.pipeline_mode<synchronous>, transform_indices = @transform_3, window_bounds = array<i64: 32, 28>}, {pipeline_mode = #tpu.pipeline_mode<synchronous>, transform_indices = @transform_4, window_bounds = array<i64: 168, 256>}, {pipeline_mode = #tpu.pipeline_mode<synchronous>, transform_indices = @transform_5, window_bounds = array<i64: 5, 128, 160>}, {pipeline_mode = #tpu.pipeline_mode<synchronous>, transform_indices = @transform_6, window_bounds = array<i64: 1, 160>}, {pipeline_mode = #tpu.pipeline_mode<synchronous>, transform_indices = @transform_7, window_bounds = array<i64: 16, 10>}, {pipeline_mode = #tpu.pipeline_mode<synchronous>, transform_indices = @transform_8, window_bounds = array<i64: 160, 256>}, {pipeline_mode = #tpu.pipeline_mode<synchronous>, transform_indices = @transform_9, window_bounds = array<i64: 640, 120>}, {pipeline_mode = #tpu.pipeline_mode<synchronous>, transform_indices = @transform_10, window_bounds = array<i64: 1, 120>}, {pipeline_mode = #tpu.pipeline_mode<synchronous>, transform_indices = @transform_11, window_bounds = array<i64: 120, 84>}, {pipeline_mode = #tpu.pipeline_mode<synchronous>, transform_indices = @transform_12, window_bounds = array<i64: 1, 84>}, {pipeline_mode = #tpu.pipeline_mode<synchronous>, transform_indices = @transform_13, window_bounds = array<i64: 84, 128>}, {pipeline_mode = #tpu.pipeline_mode<synchronous>, transform_indices = @transform_14, window_bounds = array<i64: 1, 128>}, {transform_indices = @transform_15, window_bounds = array<i64: 1, 8, 128>}]} {
    %c0 = arith.constant 0 : index
    %c0_0 = arith.constant 0 : index
    %c0_1 = arith.constant 0 : index
    %0 = vector.load %arg1[%c0, %c0_0, %c0_1] : memref<1x32x32xf32, #tpu.memory_space<vmem>>, vector<1x32x32xf32>
    %1 = vector.shape_cast %0 : vector<1x32x32xf32> to vector<32x32xf32>
    %c0_2 = arith.constant 0 : index
    %c0_3 = arith.constant 0 : index
    %c0_4 = arith.constant 0 : index
    %2 = vector.load %arg2[%c0_2, %c0_3, %c0_4] : memref<5x32x168xbf16, #tpu.memory_space<vmem>>, vector<5x32x168xbf16>
    %3 = vector.extract_strided_slice %1 {offsets = [0, 0], sizes = [28, 32], strides = [1, 1]} : vector<32x32xf32> to vector<28x32xf32>
    %4 = vector.extract_strided_slice %2 {offsets = [0, 0, 0], sizes = [1, 32, 168], strides = [1, 1, 1]} : vector<5x32x168xbf16> to vector<1x32x168xbf16>
    %5 = vector.shape_cast %4 : vector<1x32x168xbf16> to vector<32x168xbf16>
    %6 = arith.truncf %3 : vector<28x32xf32> to vector<28x32xbf16>
    %cst = arith.constant dense<0.000000e+00> : vector<28x168xf32>
    %7 = tpu.matmul %6, %5, %cst {dimension_numbers = #tpu.dot_dimension_numbers<[1], [0], [0], [1], [0, 0, 1, 1], [], []>} : vector<28x32xbf16>, vector<32x168xbf16>, vector<28x168xf32> -> vector<28x168xf32>
    %8 = vector.extract_strided_slice %1 {offsets = [1, 0], sizes = [28, 32], strides = [1, 1]} : vector<32x32xf32> to vector<28x32xf32>
    %9 = vector.extract_strided_slice %2 {offsets = [1, 0, 0], sizes = [1, 32, 168], strides = [1, 1, 1]} : vector<5x32x168xbf16> to vector<1x32x168xbf16>
    %10 = vector.shape_cast %9 : vector<1x32x168xbf16> to vector<32x168xbf16>
    %11 = arith.truncf %8 : vector<28x32xf32> to vector<28x32xbf16>
    %cst_5 = arith.constant dense<0.000000e+00> : vector<28x168xf32>
    %12 = tpu.matmul %11, %10, %cst_5 {dimension_numbers = #tpu.dot_dimension_numbers<[1], [0], [0], [1], [0, 0, 1, 1], [], []>} : vector<28x32xbf16>, vector<32x168xbf16>, vector<28x168xf32> -> vector<28x168xf32>
    %13 = arith.addf %7, %12 : vector<28x168xf32>
    %14 = vector.extract_strided_slice %1 {offsets = [2, 0], sizes = [28, 32], strides = [1, 1]} : vector<32x32xf32> to vector<28x32xf32>
    %15 = vector.extract_strided_slice %2 {offsets = [2, 0, 0], sizes = [1, 32, 168], strides = [1, 1, 1]} : vector<5x32x168xbf16> to vector<1x32x168xbf16>
    %16 = vector.shape_cast %15 : vector<1x32x168xbf16> to vector<32x168xbf16>
    %17 = arith.truncf %14 : vector<28x32xf32> to vector<28x32xbf16>
    %cst_6 = arith.constant dense<0.000000e+00> : vector<28x168xf32>
    %18 = tpu.matmul %17, %16, %cst_6 {dimension_numbers = #tpu.dot_dimension_numbers<[1], [0], [0], [1], [0, 0, 1, 1], [], []>} : vector<28x32xbf16>, vector<32x168xbf16>, vector<28x168xf32> -> vector<28x168xf32>
    %19 = arith.addf %13, %18 : vector<28x168xf32>
    %20 = vector.extract_strided_slice %1 {offsets = [3, 0], sizes = [28, 32], strides = [1, 1]} : vector<32x32xf32> to vector<28x32xf32>
    %21 = vector.extract_strided_slice %2 {offsets = [3, 0, 0], sizes = [1, 32, 168], strides = [1, 1, 1]} : vector<5x32x168xbf16> to vector<1x32x168xbf16>
    %22 = vector.shape_cast %21 : vector<1x32x168xbf16> to vector<32x168xbf16>
    %23 = arith.truncf %20 : vector<28x32xf32> to vector<28x32xbf16>
    %cst_7 = arith.constant dense<0.000000e+00> : vector<28x168xf32>
    %24 = tpu.matmul %23, %22, %cst_7 {dimension_numbers = #tpu.dot_dimension_numbers<[1], [0], [0], [1], [0, 0, 1, 1], [], []>} : vector<28x32xbf16>, vector<32x168xbf16>, vector<28x168xf32> -> vector<28x168xf32>
    %25 = arith.addf %19, %24 : vector<28x168xf32>
    %26 = vector.extract_strided_slice %1 {offsets = [4, 0], sizes = [28, 32], strides = [1, 1]} : vector<32x32xf32> to vector<28x32xf32>
    %27 = vector.extract_strided_slice %2 {offsets = [4, 0, 0], sizes = [1, 32, 168], strides = [1, 1, 1]} : vector<5x32x168xbf16> to vector<1x32x168xbf16>
    %28 = vector.shape_cast %27 : vector<1x32x168xbf16> to vector<32x168xbf16>
    %29 = arith.truncf %26 : vector<28x32xf32> to vector<28x32xbf16>
    %cst_8 = arith.constant dense<0.000000e+00> : vector<28x168xf32>
    %30 = tpu.matmul %29, %28, %cst_8 {dimension_numbers = #tpu.dot_dimension_numbers<[1], [0], [0], [1], [0, 0, 1, 1], [], []>} : vector<28x32xbf16>, vector<32x168xbf16>, vector<28x168xf32> -> vector<28x168xf32>
    %31 = arith.addf %25, %30 : vector<28x168xf32>
    %c0_9 = arith.constant 0 : index
    %c0_10 = arith.constant 0 : index
    %32 = vector.load %arg3[%c0_9, %c0_10] : memref<1x168xf32, #tpu.memory_space<vmem>>, vector<1x168xf32>
    %33 = vector.broadcast %32 : vector<1x168xf32> to vector<28x168xf32>
    %34 = arith.addf %31, %33 : vector<28x168xf32>
    %cst_11 = arith.constant 0.000000e+00 : f32
    %35 = vector.broadcast %cst_11 : f32 to vector<28x168xf32>
    %36 = arith.maximumf %34, %35 : vector<28x168xf32>
    %c0_12 = arith.constant 0 : index
    %c0_13 = arith.constant 0 : index
    %37 = vector.load %arg4[%c0_12, %c0_13] : memref<32x28xbf16, #tpu.memory_space<vmem>>, vector<32x28xbf16>
    %38 = arith.truncf %36 : vector<28x168xf32> to vector<28x168xbf16>
    %cst_14 = arith.constant dense<0.000000e+00> : vector<32x168xf32>
    %39 = tpu.matmul %37, %38, %cst_14 {dimension_numbers = #tpu.dot_dimension_numbers<[1], [0], [0], [1], [0, 0, 1, 1], [], []>} : vector<32x28xbf16>, vector<28x168xbf16>, vector<32x168xf32> -> vector<32x168xf32>
    %40 = vector.extract_strided_slice %39 {offsets = [0, 0], sizes = [14, 168], strides = [1, 1]} : vector<32x168xf32> to vector<14x168xf32>
    %41 = vector.extract_strided_slice %39 {offsets = [16, 0], sizes = [14, 168], strides = [1, 1]} : vector<32x168xf32> to vector<14x168xf32>
    %42 = arith.maximumf %40, %41 : vector<14x168xf32>
    %c0_15 = arith.constant 0 : index
    %c0_16 = arith.constant 0 : index
    %43 = vector.load %arg5[%c0_15, %c0_16] : memref<168x256xbf16, #tpu.memory_space<vmem>>, vector<168x256xbf16>
    %44 = arith.truncf %42 : vector<14x168xf32> to vector<14x168xbf16>
    %cst_17 = arith.constant dense<0.000000e+00> : vector<14x256xf32>
    %45 = tpu.matmul %44, %43, %cst_17 {dimension_numbers = #tpu.dot_dimension_numbers<[1], [0], [0], [1], [0, 0, 1, 1], [], []>} : vector<14x168xbf16>, vector<168x256xbf16>, vector<14x256xf32> -> vector<14x256xf32>
    %46 = vector.extract_strided_slice %45 {offsets = [0, 0], sizes = [14, 128], strides = [1, 1]} : vector<14x256xf32> to vector<14x128xf32>
    %47 = vector.extract_strided_slice %45 {offsets = [0, 128], sizes = [14, 128], strides = [1, 1]} : vector<14x256xf32> to vector<14x128xf32>
    %48 = arith.maximumf %46, %47 : vector<14x128xf32>
    %c0_18 = arith.constant 0 : index
    %c0_19 = arith.constant 0 : index
    %c0_20 = arith.constant 0 : index
    %49 = vector.load %arg6[%c0_18, %c0_19, %c0_20] : memref<5x128x160xbf16, #tpu.memory_space<vmem>>, vector<5x128x160xbf16>
    %50 = vector.extract_strided_slice %48 {offsets = [0, 0], sizes = [10, 128], strides = [1, 1]} : vector<14x128xf32> to vector<10x128xf32>
    %51 = vector.extract_strided_slice %49 {offsets = [0, 0, 0], sizes = [1, 128, 160], strides = [1, 1, 1]} : vector<5x128x160xbf16> to vector<1x128x160xbf16>
    %52 = vector.shape_cast %51 : vector<1x128x160xbf16> to vector<128x160xbf16>
    %53 = arith.truncf %50 : vector<10x128xf32> to vector<10x128xbf16>
    %cst_21 = arith.constant dense<0.000000e+00> : vector<10x160xf32>
    %54 = tpu.matmul %53, %52, %cst_21 {dimension_numbers = #tpu.dot_dimension_numbers<[1], [0], [0], [1], [0, 0, 1, 1], [], []>} : vector<10x128xbf16>, vector<128x160xbf16>, vector<10x160xf32> -> vector<10x160xf32>
    %55 = vector.extract_strided_slice %48 {offsets = [1, 0], sizes = [10, 128], strides = [1, 1]} : vector<14x128xf32> to vector<10x128xf32>
    %56 = vector.extract_strided_slice %49 {offsets = [1, 0, 0], sizes = [1, 128, 160], strides = [1, 1, 1]} : vector<5x128x160xbf16> to vector<1x128x160xbf16>
    %57 = vector.shape_cast %56 : vector<1x128x160xbf16> to vector<128x160xbf16>
    %58 = arith.truncf %55 : vector<10x128xf32> to vector<10x128xbf16>
    %cst_22 = arith.constant dense<0.000000e+00> : vector<10x160xf32>
    %59 = tpu.matmul %58, %57, %cst_22 {dimension_numbers = #tpu.dot_dimension_numbers<[1], [0], [0], [1], [0, 0, 1, 1], [], []>} : vector<10x128xbf16>, vector<128x160xbf16>, vector<10x160xf32> -> vector<10x160xf32>
    %60 = arith.addf %54, %59 : vector<10x160xf32>
    %61 = vector.extract_strided_slice %48 {offsets = [2, 0], sizes = [10, 128], strides = [1, 1]} : vector<14x128xf32> to vector<10x128xf32>
    %62 = vector.extract_strided_slice %49 {offsets = [2, 0, 0], sizes = [1, 128, 160], strides = [1, 1, 1]} : vector<5x128x160xbf16> to vector<1x128x160xbf16>
    %63 = vector.shape_cast %62 : vector<1x128x160xbf16> to vector<128x160xbf16>
    %64 = arith.truncf %61 : vector<10x128xf32> to vector<10x128xbf16>
    %cst_23 = arith.constant dense<0.000000e+00> : vector<10x160xf32>
    %65 = tpu.matmul %64, %63, %cst_23 {dimension_numbers = #tpu.dot_dimension_numbers<[1], [0], [0], [1], [0, 0, 1, 1], [], []>} : vector<10x128xbf16>, vector<128x160xbf16>, vector<10x160xf32> -> vector<10x160xf32>
    %66 = arith.addf %60, %65 : vector<10x160xf32>
    %67 = vector.extract_strided_slice %48 {offsets = [3, 0], sizes = [10, 128], strides = [1, 1]} : vector<14x128xf32> to vector<10x128xf32>
    %68 = vector.extract_strided_slice %49 {offsets = [3, 0, 0], sizes = [1, 128, 160], strides = [1, 1, 1]} : vector<5x128x160xbf16> to vector<1x128x160xbf16>
    %69 = vector.shape_cast %68 : vector<1x128x160xbf16> to vector<128x160xbf16>
    %70 = arith.truncf %67 : vector<10x128xf32> to vector<10x128xbf16>
    %cst_24 = arith.constant dense<0.000000e+00> : vector<10x160xf32>
    %71 = tpu.matmul %70, %69, %cst_24 {dimension_numbers = #tpu.dot_dimension_numbers<[1], [0], [0], [1], [0, 0, 1, 1], [], []>} : vector<10x128xbf16>, vector<128x160xbf16>, vector<10x160xf32> -> vector<10x160xf32>
    %72 = arith.addf %66, %71 : vector<10x160xf32>
    %73 = vector.extract_strided_slice %48 {offsets = [4, 0], sizes = [10, 128], strides = [1, 1]} : vector<14x128xf32> to vector<10x128xf32>
    %74 = vector.extract_strided_slice %49 {offsets = [4, 0, 0], sizes = [1, 128, 160], strides = [1, 1, 1]} : vector<5x128x160xbf16> to vector<1x128x160xbf16>
    %75 = vector.shape_cast %74 : vector<1x128x160xbf16> to vector<128x160xbf16>
    %76 = arith.truncf %73 : vector<10x128xf32> to vector<10x128xbf16>
    %cst_25 = arith.constant dense<0.000000e+00> : vector<10x160xf32>
    %77 = tpu.matmul %76, %75, %cst_25 {dimension_numbers = #tpu.dot_dimension_numbers<[1], [0], [0], [1], [0, 0, 1, 1], [], []>} : vector<10x128xbf16>, vector<128x160xbf16>, vector<10x160xf32> -> vector<10x160xf32>
    %78 = arith.addf %72, %77 : vector<10x160xf32>
    %c0_26 = arith.constant 0 : index
    %c0_27 = arith.constant 0 : index
    %79 = vector.load %arg7[%c0_26, %c0_27] : memref<1x160xf32, #tpu.memory_space<vmem>>, vector<1x160xf32>
    %80 = vector.broadcast %79 : vector<1x160xf32> to vector<10x160xf32>
    %81 = arith.addf %78, %80 : vector<10x160xf32>
    %cst_28 = arith.constant 0.000000e+00 : f32
    %82 = vector.broadcast %cst_28 : f32 to vector<10x160xf32>
    %83 = arith.maximumf %81, %82 : vector<10x160xf32>
    %c0_29 = arith.constant 0 : index
    %c0_30 = arith.constant 0 : index
    %84 = vector.load %arg8[%c0_29, %c0_30] : memref<16x10xbf16, #tpu.memory_space<vmem>>, vector<16x10xbf16>
    %85 = arith.truncf %83 : vector<10x160xf32> to vector<10x160xbf16>
    %cst_31 = arith.constant dense<0.000000e+00> : vector<16x160xf32>
    %86 = tpu.matmul %84, %85, %cst_31 {dimension_numbers = #tpu.dot_dimension_numbers<[1], [0], [0], [1], [0, 0, 1, 1], [], []>} : vector<16x10xbf16>, vector<10x160xbf16>, vector<16x160xf32> -> vector<16x160xf32>
    %87 = vector.extract_strided_slice %86 {offsets = [0, 0], sizes = [5, 160], strides = [1, 1]} : vector<16x160xf32> to vector<5x160xf32>
    %88 = vector.extract_strided_slice %86 {offsets = [8, 0], sizes = [5, 160], strides = [1, 1]} : vector<16x160xf32> to vector<5x160xf32>
    %89 = arith.maximumf %87, %88 : vector<5x160xf32>
    %c0_32 = arith.constant 0 : index
    %c0_33 = arith.constant 0 : index
    %90 = vector.load %arg9[%c0_32, %c0_33] : memref<160x256xbf16, #tpu.memory_space<vmem>>, vector<160x256xbf16>
    %91 = arith.truncf %89 : vector<5x160xf32> to vector<5x160xbf16>
    %cst_34 = arith.constant dense<0.000000e+00> : vector<5x256xf32>
    %92 = tpu.matmul %91, %90, %cst_34 {dimension_numbers = #tpu.dot_dimension_numbers<[1], [0], [0], [1], [0, 0, 1, 1], [], []>} : vector<5x160xbf16>, vector<160x256xbf16>, vector<5x256xf32> -> vector<5x256xf32>
    %93 = vector.extract_strided_slice %92 {offsets = [0, 0], sizes = [5, 128], strides = [1, 1]} : vector<5x256xf32> to vector<5x128xf32>
    %94 = vector.extract_strided_slice %92 {offsets = [0, 128], sizes = [5, 128], strides = [1, 1]} : vector<5x256xf32> to vector<5x128xf32>
    %95 = arith.maximumf %93, %94 : vector<5x128xf32>
    %c0_35 = arith.constant 0 : index
    %c0_36 = arith.constant 0 : index
    %96 = vector.load %arg10[%c0_35, %c0_36] : memref<640x120xbf16, #tpu.memory_space<vmem>>, vector<640x120xbf16>
    %97 = vector.extract_strided_slice %95 {offsets = [0, 0], sizes = [1, 128], strides = [1, 1]} : vector<5x128xf32> to vector<1x128xf32>
    %98 = vector.extract_strided_slice %96 {offsets = [0, 0], sizes = [128, 120], strides = [1, 1]} : vector<640x120xbf16> to vector<128x120xbf16>
    %99 = arith.truncf %97 : vector<1x128xf32> to vector<1x128xbf16>
    %cst_37 = arith.constant dense<0.000000e+00> : vector<1x120xf32>
    %100 = tpu.matmul %99, %98, %cst_37 {dimension_numbers = #tpu.dot_dimension_numbers<[1], [0], [0], [1], [0, 0, 1, 1], [], []>} : vector<1x128xbf16>, vector<128x120xbf16>, vector<1x120xf32> -> vector<1x120xf32>
    %101 = vector.extract_strided_slice %95 {offsets = [1, 0], sizes = [1, 128], strides = [1, 1]} : vector<5x128xf32> to vector<1x128xf32>
    %102 = vector.extract_strided_slice %96 {offsets = [128, 0], sizes = [128, 120], strides = [1, 1]} : vector<640x120xbf16> to vector<128x120xbf16>
    %103 = arith.truncf %101 : vector<1x128xf32> to vector<1x128xbf16>
    %cst_38 = arith.constant dense<0.000000e+00> : vector<1x120xf32>
    %104 = tpu.matmul %103, %102, %cst_38 {dimension_numbers = #tpu.dot_dimension_numbers<[1], [0], [0], [1], [0, 0, 1, 1], [], []>} : vector<1x128xbf16>, vector<128x120xbf16>, vector<1x120xf32> -> vector<1x120xf32>
    %105 = arith.addf %100, %104 : vector<1x120xf32>
    %106 = vector.extract_strided_slice %95 {offsets = [2, 0], sizes = [1, 128], strides = [1, 1]} : vector<5x128xf32> to vector<1x128xf32>
    %107 = vector.extract_strided_slice %96 {offsets = [256, 0], sizes = [128, 120], strides = [1, 1]} : vector<640x120xbf16> to vector<128x120xbf16>
    %108 = arith.truncf %106 : vector<1x128xf32> to vector<1x128xbf16>
    %cst_39 = arith.constant dense<0.000000e+00> : vector<1x120xf32>
    %109 = tpu.matmul %108, %107, %cst_39 {dimension_numbers = #tpu.dot_dimension_numbers<[1], [0], [0], [1], [0, 0, 1, 1], [], []>} : vector<1x128xbf16>, vector<128x120xbf16>, vector<1x120xf32> -> vector<1x120xf32>
    %110 = arith.addf %105, %109 : vector<1x120xf32>
    %111 = vector.extract_strided_slice %95 {offsets = [3, 0], sizes = [1, 128], strides = [1, 1]} : vector<5x128xf32> to vector<1x128xf32>
    %112 = vector.extract_strided_slice %96 {offsets = [384, 0], sizes = [128, 120], strides = [1, 1]} : vector<640x120xbf16> to vector<128x120xbf16>
    %113 = arith.truncf %111 : vector<1x128xf32> to vector<1x128xbf16>
    %cst_40 = arith.constant dense<0.000000e+00> : vector<1x120xf32>
    %114 = tpu.matmul %113, %112, %cst_40 {dimension_numbers = #tpu.dot_dimension_numbers<[1], [0], [0], [1], [0, 0, 1, 1], [], []>} : vector<1x128xbf16>, vector<128x120xbf16>, vector<1x120xf32> -> vector<1x120xf32>
    %115 = arith.addf %110, %114 : vector<1x120xf32>
    %116 = vector.extract_strided_slice %95 {offsets = [4, 0], sizes = [1, 128], strides = [1, 1]} : vector<5x128xf32> to vector<1x128xf32>
    %117 = vector.extract_strided_slice %96 {offsets = [512, 0], sizes = [128, 120], strides = [1, 1]} : vector<640x120xbf16> to vector<128x120xbf16>
    %118 = arith.truncf %116 : vector<1x128xf32> to vector<1x128xbf16>
    %cst_41 = arith.constant dense<0.000000e+00> : vector<1x120xf32>
    %119 = tpu.matmul %118, %117, %cst_41 {dimension_numbers = #tpu.dot_dimension_numbers<[1], [0], [0], [1], [0, 0, 1, 1], [], []>} : vector<1x128xbf16>, vector<128x120xbf16>, vector<1x120xf32> -> vector<1x120xf32>
    %120 = arith.addf %115, %119 : vector<1x120xf32>
    %c0_42 = arith.constant 0 : index
    %c0_43 = arith.constant 0 : index
    %121 = vector.load %arg11[%c0_42, %c0_43] : memref<1x120xf32, #tpu.memory_space<vmem>>, vector<1x120xf32>
    %122 = arith.addf %120, %121 : vector<1x120xf32>
    %cst_44 = arith.constant 0.000000e+00 : f32
    %123 = vector.broadcast %cst_44 : f32 to vector<1x120xf32>
    %124 = arith.maximumf %122, %123 : vector<1x120xf32>
    %c0_45 = arith.constant 0 : index
    %c0_46 = arith.constant 0 : index
    %125 = vector.load %arg12[%c0_45, %c0_46] : memref<120x84xbf16, #tpu.memory_space<vmem>>, vector<120x84xbf16>
    %126 = arith.truncf %124 : vector<1x120xf32> to vector<1x120xbf16>
    %cst_47 = arith.constant dense<0.000000e+00> : vector<1x84xf32>
    %127 = tpu.matmul %126, %125, %cst_47 {dimension_numbers = #tpu.dot_dimension_numbers<[1], [0], [0], [1], [0, 0, 1, 1], [], []>} : vector<1x120xbf16>, vector<120x84xbf16>, vector<1x84xf32> -> vector<1x84xf32>
    %c0_48 = arith.constant 0 : index
    %c0_49 = arith.constant 0 : index
    %128 = vector.load %arg13[%c0_48, %c0_49] : memref<1x84xf32, #tpu.memory_space<vmem>>, vector<1x84xf32>
    %129 = arith.addf %127, %128 : vector<1x84xf32>
    %cst_50 = arith.constant 0.000000e+00 : f32
    %130 = vector.broadcast %cst_50 : f32 to vector<1x84xf32>
    %131 = arith.maximumf %129, %130 : vector<1x84xf32>
    %c0_51 = arith.constant 0 : index
    %c0_52 = arith.constant 0 : index
    %132 = vector.load %arg14[%c0_51, %c0_52] : memref<84x128xbf16, #tpu.memory_space<vmem>>, vector<84x128xbf16>
    %133 = arith.truncf %131 : vector<1x84xf32> to vector<1x84xbf16>
    %cst_53 = arith.constant dense<0.000000e+00> : vector<1x128xf32>
    %134 = tpu.matmul %133, %132, %cst_53 {dimension_numbers = #tpu.dot_dimension_numbers<[1], [0], [0], [1], [0, 0, 1, 1], [], []>} : vector<1x84xbf16>, vector<84x128xbf16>, vector<1x128xf32> -> vector<1x128xf32>
    %c0_54 = arith.constant 0 : index
    %c0_55 = arith.constant 0 : index
    %135 = vector.load %arg15[%c0_54, %c0_55] : memref<1x128xf32, #tpu.memory_space<vmem>>, vector<1x128xf32>
    %136 = arith.addf %134, %135 : vector<1x128xf32>
    %137 = vector.shape_cast %136 : vector<1x128xf32> to vector<1x1x128xf32>
    %138 = vector.broadcast %137 : vector<1x1x128xf32> to vector<1x8x128xf32>
    %c0_56 = arith.constant 0 : index
    %c0_57 = arith.constant 0 : index
    %c0_58 = arith.constant 0 : index
    %139 = vector.load %arg16[%c0_56, %c0_57, %c0_58] : memref<1x8x128xf32, #tpu.memory_space<vmem>>, vector<1x8x128xf32>
    tpu.vector_store %arg16[%c0_56, %c0_57, %c0_58], %138 {strides = array<i32>} : memref<1x8x128xf32, #tpu.memory_space<vmem>>, vector<1x8x128xf32>,
    return
  }
  func.func @transform_0(%arg0: i32) -> (i32, i32, i32) {
    %c0_i32 = arith.constant 0 : i32
    %c0_i32_0 = arith.constant 0 : i32
    %c0_i32_1 = arith.constant 0 : i32
    return %arg0, %c0_i32, %c0_i32_0 : i32, i32, i32
  }
  func.func @transform_1(%arg0: i32) -> (i32, i32, i32) {
    %c0_i32 = arith.constant 0 : i32
    %c0_i32_0 = arith.constant 0 : i32
    %c0_i32_1 = arith.constant 0 : i32
    %c0_i32_2 = arith.constant 0 : i32
    return %c0_i32, %c0_i32_0, %c0_i32_1 : i32, i32, i32
  }
  func.func @transform_2(%arg0: i32) -> (i32, i32) {
    %c0_i32 = arith.constant 0 : i32
    %c0_i32_0 = arith.constant 0 : i32
    %c0_i32_1 = arith.constant 0 : i32
    return %c0_i32, %c0_i32_0 : i32, i32
  }
  func.func @transform_3(%arg0: i32) -> (i32, i32) {
    %c0_i32 = arith.constant 0 : i32
    %c0_i32_0 = arith.constant 0 : i32
    %c0_i32_1 = arith.constant 0 : i32
    return %c0_i32, %c0_i32_0 : i32, i32
  }
  func.func @transform_4(%arg0: i32) -> (i32, i32) {
    %c0_i32 = arith.constant 0 : i32
    %c0_i32_0 = arith.constant 0 : i32
    %c0_i32_1 = arith.constant 0 : i32
    return %c0_i32, %c0_i32_0 : i32, i32
  }
  func.func @transform_5(%arg0: i32) -> (i32, i32, i32) {
    %c0_i32 = arith.constant 0 : i32
    %c0_i32_0 = arith.constant 0 : i32
    %c0_i32_1 = arith.constant 0 : i32
    %c0_i32_2 = arith.constant 0 : i32
    return %c0_i32, %c0_i32_0, %c0_i32_1 : i32, i32, i32
  }
  func.func @transform_6(%arg0: i32) -> (i32, i32) {
    %c0_i32 = arith.constant 0 : i32
    %c0_i32_0 = arith.constant 0 : i32
    %c0_i32_1 = arith.constant 0 : i32
    return %c0_i32, %c0_i32_0 : i32, i32
  }
  func.func @transform_7(%arg0: i32) -> (i32, i32) {
    %c0_i32 = arith.constant 0 : i32
    %c0_i32_0 = arith.constant 0 : i32
    %c0_i32_1 = arith.constant 0 : i32
    return %c0_i32, %c0_i32_0 : i32, i32
  }
  func.func @transform_8(%arg0: i32) -> (i32, i32) {
    %c0_i32 = arith.constant 0 : i32
    %c0_i32_0 = arith.constant 0 : i32
    %c0_i32_1 = arith.constant 0 : i32
    return %c0_i32, %c0_i32_0 : i32, i32
  }
  func.func @transform_9(%arg0: i32) -> (i32, i32) {
    %c0_i32 = arith.constant 0 : i32
    %c0_i32_0 = arith.constant 0 : i32
    %c0_i32_1 = arith.constant 0 : i32
    return %c0_i32, %c0_i32_0 : i32, i32
  }
  func.func @transform_10(%arg0: i32) -> (i32, i32) {
    %c0_i32 = arith.constant 0 : i32
    %c0_i32_0 = arith.constant 0 : i32
    %c0_i32_1 = arith.constant 0 : i32
    return %c0_i32, %c0_i32_0 : i32, i32
  }
  func.func @transform_11(%arg0: i32) -> (i32, i32) {
    %c0_i32 = arith.constant 0 : i32
    %c0_i32_0 = arith.constant 0 : i32
    %c0_i32_1 = arith.constant 0 : i32
    return %c0_i32, %c0_i32_0 : i32, i32
  }
  func.func @transform_12(%arg0: i32) -> (i32, i32) {
    %c0_i32 = arith.constant 0 : i32
    %c0_i32_0 = arith.constant 0 : i32
    %c0_i32_1 = arith.constant 0 : i32
    return %c0_i32, %c0_i32_0 : i32, i32
  }
  func.func @transform_13(%arg0: i32) -> (i32, i32) {
    %c0_i32 = arith.constant 0 : i32
    %c0_i32_0 = arith.constant 0 : i32
    %c0_i32_1 = arith.constant 0 : i32
    return %c0_i32, %c0_i32_0 : i32, i32
  }
  func.func @transform_14(%arg0: i32) -> (i32, i32) {
    %c0_i32 = arith.constant 0 : i32
    %c0_i32_0 = arith.constant 0 : i32
    %c0_i32_1 = arith.constant 0 : i32
    return %c0_i32, %c0_i32_0 : i32, i32
  }
  func.func @transform_15(%arg0: i32) -> (i32, i32, i32) {
    %c0_i32 = arith.constant 0 : i32
    %c0_i32_0 = arith.constant 0 : i32
    %c0_i32_1 = arith.constant 0 : i32
    return %arg0, %c0_i32, %c0_i32_0 : i32, i32, i32
  }
}

</mosaic_0001>

<llo_original>
// kernel: tpu_custom_call.1
$region0: #{tpu_custom_call.1}
  #allocation0 [shape = 'u32[]', space=smem, size = 0x4, offset = 0x4, fixed_abs, tag = 'smem constant byte address 0x4 - core index']
  #allocation1 [shape = 'u32[144,128]{1,0:T(1,128)}', space=vmem, size = 0x12000, scoped, tag = 'internal scratch']
  %s0 = inlined_call_operand.vmem [shape: f32[8,32,32], index: 0, kind: input, shape index: {}]
  %s1 = inlined_call_operand.vmem [shape: bf16[5,32,168], index: 1, kind: input, shape index: {}]
  %s2 = inlined_call_operand.vmem [shape: f32[1,168], index: 2, kind: input, shape index: {}]
  %s3 = inlined_call_operand.vmem [shape: bf16[32,28], index: 3, kind: input, shape index: {}]
  %s4 = inlined_call_operand.vmem [shape: bf16[168,256], index: 4, kind: input, shape index: {}]
  %s5 = inlined_call_operand.vmem [shape: bf16[5,128,160], index: 5, kind: input, shape index: {}]
  %s6 = inlined_call_operand.vmem [shape: f32[1,160], index: 6, kind: input, shape index: {}]
  %s7 = inlined_call_operand.vmem [shape: bf16[16,10], index: 7, kind: input, shape index: {}]
  %s8 = inlined_call_operand.vmem [shape: bf16[160,256], index: 8, kind: input, shape index: {}]
  %s9 = inlined_call_operand.vmem [shape: bf16[640,120], index: 9, kind: input, shape index: {}]
  %s10 = inlined_call_operand.vmem [shape: f32[1,120], index: 10, kind: input, shape index: {}]
  %s11 = inlined_call_operand.vmem [shape: bf16[120,84], index: 11, kind: input, shape index: {}]
  %s12 = inlined_call_operand.vmem [shape: f32[1,84], index: 12, kind: input, shape index: {}]
  %s13 = inlined_call_operand.vmem [shape: bf16[84,128], index: 13, kind: input, shape index: {}]
  %s14 = inlined_call_operand.vmem [shape: f32[1,128], index: 14, kind: input, shape index: {}]
  %s15 = inlined_call_operand.hbm [shape: f32[8,8,128], index: 15, kind: output, shape index: {}]
  %s16 = sld [smem:[#allocation0]]
  $region93: #{tpu_custom_call.1} parent=0
    _
  %s18 = ssub.s32 1, %s16
  %s19 = scalar_select 0, %s18, %s16
  $region1: #{tpu_custom_call.1} parent=0
    #allocation2 [shape = 'u8[8192]{0}', space=vmem, size = 0x2000, scoped, tag = 'output window, operand 0']
    #allocation3 [shape = 's32[2]{0}', space=sflag, size = 0x8, scoped, tag = 'scoped memory for tpu_custom_call.1']
    %20 = vsyncpa [#allocation3], 0
    %s21 = scalar_lea.sflag [#allocation3], 1
    %22 = vsyncpa %s21, 0
    loop: start=0, step=1, limit=10
    $region2: #{tpu_custom_call.1} parent=1 // loop_pre_header
      _
    $region3: #{tpu_custom_call.1} parent=1 // loop_header
      %s24 = sphi 0, %s28
      %p25 = scmp.ge.s32.totalorder %s24, 10
      %s34 = sphi 0, %s36
      %s37 = sphi 0, %s34
      %s38 = sphi 0, %s37
      %s54 = sphi 0, %s38
      %s58 = sphi 0, %s58
      %s60 = sphi 0, %s58
      %s61 = sphi 0, %s60
      %s75 = sphi 0, %s61
      %s79 = sphi 0, %s79
      %s81 = sphi 0, %s79
      %s82 = sphi 0, %s81
      %s96 = sphi 0, %s82
      %s100 = sphi 0, %s100
      %s102 = sphi 0, %s100
      %s103 = sphi 0, %s102
      %s117 = sphi 0, %s103
      %s121 = sphi 0, %s121
      %s123 = sphi 0, %s121
      %s124 = sphi 0, %s123
      %s138 = sphi 0, %s124
      %s142 = sphi 0, %s142
      %s144 = sphi 0, %s142
      %s145 = sphi 0, %s144
      %s159 = sphi 0, %s145
      %s163 = sphi 0, %s163
      %s165 = sphi 0, %s163
      %s166 = sphi 0, %s165
      %s180 = sphi 0, %s166
      %s184 = sphi 0, %s184
      %s186 = sphi 0, %s184
      %s187 = sphi 0, %s186
      %s201 = sphi 0, %s187
      %s205 = sphi 0, %s205
      %s207 = sphi 0, %s205
      %s208 = sphi 0, %s207
      %s222 = sphi 0, %s208
      %s226 = sphi 0, %s226
      %s228 = sphi 0, %s226
      %s229 = sphi 0, %s228
      %s243 = sphi 0, %s229
      %s247 = sphi 0, %s247
      %s249 = sphi 0, %s247
      %s250 = sphi 0, %s249
      %s264 = sphi 0, %s250
      %s268 = sphi 0, %s268
      %s270 = sphi 0, %s268
      %s271 = sphi 0, %s270
      %s285 = sphi 0, %s271
      %s289 = sphi 0, %s289
      %s291 = sphi 0, %s289
      %s292 = sphi 0, %s291
      %s306 = sphi 0, %s292
      %s310 = sphi 0, %s310
      %s312 = sphi 0, %s310
      %s313 = sphi 0, %s312
      %s327 = sphi 0, %s313
      %s331 = sphi 0, %s331
      %s333 = sphi 0, %s331
      %s334 = sphi 0, %s333
      %s348 = sphi 0, %s334
      %s354 = sphi 0, %s356
      %s357 = sphi 0, %s354
      %s358 = sphi 0, %s357
      %s374 = sphi 0, %s358
    $region4: #{tpu_custom_call.1} parent=1 // loop_header_branch
      %27 = sbr.rel (%p25) target = $region8
    $region5: #{tpu_custom_call.1} parent=1 // loop_body
      %s29 = ssub.s32 %s24, 1
      %s30 = ssub.s32 %s24, 2
      %s31 = sadd.s32 %s24, 1
      %s32 = ssub.s32 %s24, %s31
      %p33 = scmp.eq.s32.totalorder %s32, 0
      %s35 = sadd.s32 %s34, 1
      %s36 = scalar_select %p33, %s34, %s35
      %p39 = pneg %p33
      %p40 = scmp.eq.s32.totalorder %s24, 7
      %p41 = por %p39, %p40
      %p42 = scmp.ne.s32.totalorder %s34, %s37
      %p43 = scmp.eq.s32.totalorder %s24, 0
      %p44 = por %p42, %p43
      %p45 = scmp.ne.s32.totalorder %s34, %s37
      %p46 = scmp.eq.s32.totalorder %s29, 7
      %p47 = por %p45, %p46
      %p48 = scmp.ne.s32.totalorder %s37, %s38
      %p49 = scmp.eq.s32.totalorder %s29, 0
      %p50 = por %p48, %p49
      %p51 = scmp.ne.s32.totalorder %s37, %s38
      %p52 = scmp.eq.s32.totalorder %s30, 7
      %p53 = por %p51, %p52
      %p55 = scmp.ne.s32.totalorder %s38, %s54
      %p56 = scmp.eq.s32.totalorder %s30, 0
      %p57 = por %p55, %p56
      %s59 = sadd.s32 %s58, 1
      %p62 = scmp.eq.s32.totalorder %s24, 7
      %p63 = scmp.ne.s32.totalorder %s58, %s60
      %p64 = scmp.eq.s32.totalorder %s24, 0
      %p65 = por %p63, %p64
      %p66 = scmp.ne.s32.totalorder %s58, %s60
      %p67 = scmp.eq.s32.totalorder %s29, 7
      %p68 = por %p66, %p67
      %p69 = scmp.ne.s32.totalorder %s60, %s61
      %p70 = scmp.eq.s32.totalorder %s29, 0
      %p71 = por %p69, %p70
      %p72 = scmp.ne.s32.totalorder %s60, %s61
      %p73 = scmp.eq.s32.totalorder %s30, 7
      %p74 = por %p72, %p73
      %p76 = scmp.ne.s32.totalorder %s61, %s75
      %p77 = scmp.eq.s32.totalorder %s30, 0
      %p78 = por %p76, %p77
      %s80 = sadd.s32 %s79, 1
      %p83 = scmp.eq.s32.totalorder %s24, 7
      %p84 = scmp.ne.s32.totalorder %s79, %s81
      %p85 = scmp.eq.s32.totalorder %s24, 0
      %p86 = por %p84, %p85
      %p87 = scmp.ne.s32.totalorder %s79, %s81
      %p88 = scmp.eq.s32.totalorder %s29, 7
      %p89 = por %p87, %p88
      %p90 = scmp.ne.s32.totalorder %s81, %s82
      %p91 = scmp.eq.s32.totalorder %s29, 0
      %p92 = por %p90, %p91
      %p93 = scmp.ne.s32.totalorder %s81, %s82
      %p94 = scmp.eq.s32.totalorder %s30, 7
      %p95 = por %p93, %p94
      %p97 = scmp.ne.s32.totalorder %s82, %s96
      %p98 = scmp.eq.s32.totalorder %s30, 0
      %p99 = por %p97, %p98
      %s101 = sadd.s32 %s100, 1
      %p104 = scmp.eq.s32.totalorder %s24, 7
      %p105 = scmp.ne.s32.totalorder %s100, %s102
      %p106 = scmp.eq.s32.totalorder %s24, 0
      %p107 = por %p105, %p106
      %p108 = scmp.ne.s32.totalorder %s100, %s102
      %p109 = scmp.eq.s32.totalorder %s29, 7
      %p110 = por %p108, %p109
      %p111 = scmp.ne.s32.totalorder %s102, %s103
      %p112 = scmp.eq.s32.totalorder %s29, 0
      %p113 = por %p111, %p112
      %p114 = scmp.ne.s32.totalorder %s102, %s103
      %p115 = scmp.eq.s32.totalorder %s30, 7
      %p116 = por %p114, %p115
      %p118 = scmp.ne.s32.totalorder %s103, %s117
      %p119 = scmp.eq.s32.totalorder %s30, 0
      %p120 = por %p118, %p119
      %s122 = sadd.s32 %s121, 1
      %p125 = scmp.eq.s32.totalorder %s24, 7
      %p126 = scmp.ne.s32.totalorder %s121, %s123
      %p127 = scmp.eq.s32.totalorder %s24, 0
      %p128 = por %p126, %p127
      %p129 = scmp.ne.s32.totalorder %s121, %s123
      %p130 = scmp.eq.s32.totalorder %s29, 7
      %p131 = por %p129, %p130
      %p132 = scmp.ne.s32.totalorder %s123, %s124
      %p133 = scmp.eq.s32.totalorder %s29, 0
      %p134 = por %p132, %p133
      %p135 = scmp.ne.s32.totalorder %s123, %s124
      %p136 = scmp.eq.s32.totalorder %s30, 7
      %p137 = por %p135, %p136
      %p139 = scmp.ne.s32.totalorder %s124, %s138
      %p140 = scmp.eq.s32.totalorder %s30, 0
      %p141 = por %p139, %p140
      %s143 = sadd.s32 %s142, 1
      %p146 = scmp.eq.s32.totalorder %s24, 7
      %p147 = scmp.ne.s32.totalorder %s142, %s144
      %p148 = scmp.eq.s32.totalorder %s24, 0
      %p149 = por %p147, %p148
      %p150 = scmp.ne.s32.totalorder %s142, %s144
      %p151 = scmp.eq.s32.totalorder %s29, 7
      %p152 = por %p150, %p151
      %p153 = scmp.ne.s32.totalorder %s144, %s145
      %p154 = scmp.eq.s32.totalorder %s29, 0
      %p155 = por %p153, %p154
      %p156 = scmp.ne.s32.totalorder %s144, %s145
      %p157 = scmp.eq.s32.totalorder %s30, 7
      %p158 = por %p156, %p157
      %p160 = scmp.ne.s32.totalorder %s145, %s159
      %p161 = scmp.eq.s32.totalorder %s30, 0
      %p162 = por %p160, %p161
      %s164 = sadd.s32 %s163, 1
      %p167 = scmp.eq.s32.totalorder %s24, 7
      %p168 = scmp.ne.s32.totalorder %s163, %s165
      %p169 = scmp.eq.s32.totalorder %s24, 0
      %p170 = por %p168, %p169
      %p171 = scmp.ne.s32.totalorder %s163, %s165
      %p172 = scmp.eq.s32.totalorder %s29, 7
      %p173 = por %p171, %p172
      %p174 = scmp.ne.s32.totalorder %s165, %s166
      %p175 = scmp.eq.s32.totalorder %s29, 0
      %p176 = por %p174, %p175
      %p177 = scmp.ne.s32.totalorder %s165, %s166
      %p178 = scmp.eq.s32.totalorder %s30, 7
      %p179 = por %p177, %p178
      %p181 = scmp.ne.s32.totalorder %s166, %s180
      %p182 = scmp.eq.s32.totalorder %s30, 0
      %p183 = por %p181, %p182
      %s185 = sadd.s32 %s184, 1
      %p188 = scmp.eq.s32.totalorder %s24, 7
      %p189 = scmp.ne.s32.totalorder %s184, %s186
      %p190 = scmp.eq.s32.totalorder %s24, 0
      %p191 = por %p189, %p190
      %p192 = scmp.ne.s32.totalorder %s184, %s186
      %p193 = scmp.eq.s32.totalorder %s29, 7
      %p194 = por %p192, %p193
      %p195 = scmp.ne.s32.totalorder %s186, %s187
      %p196 = scmp.eq.s32.totalorder %s29, 0
      %p197 = por %p195, %p196
      %p198 = scmp.ne.s32.totalorder %s186, %s187
      %p199 = scmp.eq.s32.totalorder %s30, 7
      %p200 = por %p198, %p199
      %p202 = scmp.ne.s32.totalorder %s187, %s201
      %p203 = scmp.eq.s32.totalorder %s30, 0
      %p204 = por %p202, %p203
      %s206 = sadd.s32 %s205, 1
      %p209 = scmp.eq.s32.totalorder %s24, 7
      %p210 = scmp.ne.s32.totalorder %s205, %s207
      %p211 = scmp.eq.s32.totalorder %s24, 0
      %p212 = por %p210, %p211
      %p213 = scmp.ne.s32.totalorder %s205, %s207
      %p214 = scmp.eq.s32.totalorder %s29, 7
      %p215 = por %p213, %p214
      %p216 = scmp.ne.s32.totalorder %s207, %s208
      %p217 = scmp.eq.s32.totalorder %s29, 0
      %p218 = por %p216, %p217
      %p219 = scmp.ne.s32.totalorder %s207, %s208
      %p220 = scmp.eq.s32.totalorder %s30, 7
      %p221 = por %p219, %p220
      %p223 = scmp.ne.s32.totalorder %s208, %s222
      %p224 = scmp.eq.s32.totalorder %s30, 0
      %p225 = por %p223, %p224
      %s227 = sadd.s32 %s226, 1
      %p230 = scmp.eq.s32.totalorder %s24, 7
      %p231 = scmp.ne.s32.totalorder %s226, %s228
      %p232 = scmp.eq.s32.totalorder %s24, 0
      %p233 = por %p231, %p232
      %p234 = scmp.ne.s32.totalorder %s226, %s228
      %p235 = scmp.eq.s32.totalorder %s29, 7
      %p236 = por %p234, %p235
      %p237 = scmp.ne.s32.totalorder %s228, %s229
      %p238 = scmp.eq.s32.totalorder %s29, 0
      %p239 = por %p237, %p238
      %p240 = scmp.ne.s32.totalorder %s228, %s229
      %p241 = scmp.eq.s32.totalorder %s30, 7
      %p242 = por %p240, %p241
      %p244 = scmp.ne.s32.totalorder %s229, %s243
      %p245 = scmp.eq.s32.totalorder %s30, 0
      %p246 = por %p244, %p245
      %s248 = sadd.s32 %s247, 1
      %p251 = scmp.eq.s32.totalorder %s24, 7
      %p252 = scmp.ne.s32.totalorder %s247, %s249
      %p253 = scmp.eq.s32.totalorder %s24, 0
      %p254 = por %p252, %p253
      %p255 = scmp.ne.s32.totalorder %s247, %s249
      %p256 = scmp.eq.s32.totalorder %s29, 7
      %p257 = por %p255, %p256
      %p258 = scmp.ne.s32.totalorder %s249, %s250
      %p259 = scmp.eq.s32.totalorder %s29, 0
      %p260 = por %p258, %p259
      %p261 = scmp.ne.s32.totalorder %s249, %s250
      %p262 = scmp.eq.s32.totalorder %s30, 7
      %p263 = por %p261, %p262
      %p265 = scmp.ne.s32.totalorder %s250, %s264
      %p266 = scmp.eq.s32.totalorder %s30, 0
      %p267 = por %p265, %p266
      %s269 = sadd.s32 %s268, 1
      %p272 = scmp.eq.s32.totalorder %s24, 7
      %p273 = scmp.ne.s32.totalorder %s268, %s270
      %p274 = scmp.eq.s32.totalorder %s24, 0
      %p275 = por %p273, %p274
      %p276 = scmp.ne.s32.totalorder %s268, %s270
      %p277 = scmp.eq.s32.totalorder %s29, 7
      %p278 = por %p276, %p277
      %p279 = scmp.ne.s32.totalorder %s270, %s271
      %p280 = scmp.eq.s32.totalorder %s29, 0
      %p281 = por %p279, %p280
      %p282 = scmp.ne.s32.totalorder %s270, %s271
      %p283 = scmp.eq.s32.totalorder %s30, 7
      %p284 = por %p282, %p283
      %p286 = scmp.ne.s32.totalorder %s271, %s285
      %p287 = scmp.eq.s32.totalorder %s30, 0
      %p288 = por %p286, %p287
      %s290 = sadd.s32 %s289, 1
      %p293 = scmp.eq.s32.totalorder %s24, 7
      %p294 = scmp.ne.s32.totalorder %s289, %s291
      %p295 = scmp.eq.s32.totalorder %s24, 0
      %p296 = por %p294, %p295
      %p297 = scmp.ne.s32.totalorder %s289, %s291
      %p298 = scmp.eq.s32.totalorder %s29, 7
      %p299 = por %p297, %p298
      %p300 = scmp.ne.s32.totalorder %s291, %s292
      %p301 = scmp.eq.s32.totalorder %s29, 0
      %p302 = por %p300, %p301
      %p303 = scmp.ne.s32.totalorder %s291, %s292
      %p304 = scmp.eq.s32.totalorder %s30, 7
      %p305 = por %p303, %p304
      %p307 = scmp.ne.s32.totalorder %s292, %s306
      %p308 = scmp.eq.s32.totalorder %s30, 0
      %p309 = por %p307, %p308
      %s311 = sadd.s32 %s310, 1
      %p314 = scmp.eq.s32.totalorder %s24, 7
      %p315 = scmp.ne.s32.totalorder %s310, %s312
      %p316 = scmp.eq.s32.totalorder %s24, 0
      %p317 = por %p315, %p316
      %p318 = scmp.ne.s32.totalorder %s310, %s312
      %p319 = scmp.eq.s32.totalorder %s29, 7
      %p320 = por %p318, %p319
      %p321 = scmp.ne.s32.totalorder %s312, %s313
      %p322 = scmp.eq.s32.totalorder %s29, 0
      %p323 = por %p321, %p322
      %p324 = scmp.ne.s32.totalorder %s312, %s313
      %p325 = scmp.eq.s32.totalorder %s30, 7
      %p326 = por %p324, %p325
      %p328 = scmp.ne.s32.totalorder %s313, %s327
      %p329 = scmp.eq.s32.totalorder %s30, 0
      %p330 = por %p328, %p329
      %s332 = sadd.s32 %s331, 1
      %p335 = scmp.eq.s32.totalorder %s24, 7
      %p336 = scmp.ne.s32.totalorder %s331, %s333
      %p337 = scmp.eq.s32.totalorder %s24, 0
      %p338 = por %p336, %p337
      %p339 = scmp.ne.s32.totalorder %s331, %s333
      %p340 = scmp.eq.s32.totalorder %s29, 7
      %p341 = por %p339, %p340
      %p342 = scmp.ne.s32.totalorder %s333, %s334
      %p343 = scmp.eq.s32.totalorder %s29, 0
      %p344 = por %p342, %p343
      %p345 = scmp.ne.s32.totalorder %s333, %s334
      %p346 = scmp.eq.s32.totalorder %s30, 7
      %p347 = por %p345, %p346
      %p349 = scmp.ne.s32.totalorder %s334, %s348
      %p350 = scmp.eq.s32.totalorder %s30, 0
      %p351 = por %p349, %p350
      %s352 = ssub.s32 %s24, %s31
      %p353 = scmp.eq.s32.totalorder %s352, 0
      %s355 = sadd.s32 %s354, 1
      %s356 = scalar_select %p353, %s354, %s355
      %p359 = pneg %p353
      %p360 = scmp.eq.s32.totalorder %s24, 7
      %p361 = por %p359, %p360
      %p362 = scmp.ne.s32.totalorder %s354, %s357
      %p363 = scmp.eq.s32.totalorder %s24, 0
      %p364 = por %p362, %p363
      %p365 = scmp.ne.s32.totalorder %s354, %s357
      %p366 = scmp.eq.s32.totalorder %s29, 7
      %p367 = por %p365, %p366
      %p368 = scmp.ne.s32.totalorder %s357, %s358
      %p369 = scmp.eq.s32.totalorder %s29, 0
      %p370 = por %p368, %p369
      %p371 = scmp.ne.s32.totalorder %s357, %s358
      %p372 = scmp.eq.s32.totalorder %s30, 7
      %p373 = por %p371, %p372
      %p375 = scmp.ne.s32.totalorder %s358, %s374
      %p376 = scmp.eq.s32.totalorder %s30, 0
      %p377 = por %p375, %p376
      %p378 = scmp.le.s32.totalorder 1, %s24
      %p379 = scmp.lt.s32.totalorder %s24, 9
      %p380 = pnand %p378, %p379
      %p381 = pneg %p380
      // Predicated region
      $region9: #{tpu_custom_call.1} parent=5 // pred_check
        _
      $region10: #{tpu_custom_call.1} parent=5 // pred_check_branch
        %383 = sbr.rel (%p380) target = $region12
      $region11: #{tpu_custom_call.1} parent=5 // pred_region
        %s384 = ssub.s32 %s24, 1
        // Predicated region
        $region13: #{tpu_custom_call.1} parent=11 // pred_check
          %p385 = pneg %p71
        $region14: #{tpu_custom_call.1} parent=11 // pred_check_branch
          %387 = sbr.rel (%p385) target = $region16
        $region15: #{tpu_custom_call.1} parent=11 // pred_region
          _
        $region16: #{tpu_custom_call.1} parent=11 // pred_fallthru
          _
        // Predicated region
        $region17: #{tpu_custom_call.1} parent=11 // pred_check
          %p388 = pneg %p92
        $region18: #{tpu_custom_call.1} parent=11 // pred_check_branch
          %390 = sbr.rel (%p388) target = $region20
        $region19: #{tpu_custom_call.1} parent=11 // pred_region
          _
        $region20: #{tpu_custom_call.1} parent=11 // pred_fallthru
          _
        // Predicated region
        $region21: #{tpu_custom_call.1} parent=11 // pred_check
          %p391 = pneg %p113
        $region22: #{tpu_custom_call.1} parent=11 // pred_check_branch
          %393 = sbr.rel (%p391) target = $region24
        $region23: #{tpu_custom_call.1} parent=11 // pred_region
          _
        $region24: #{tpu_custom_call.1} parent=11 // pred_fallthru
          _
        // Predicated region
        $region25: #{tpu_custom_call.1} parent=11 // pred_check
          %p394 = pneg %p134
        $region26: #{tpu_custom_call.1} parent=11 // pred_check_branch
          %396 = sbr.rel (%p394) target = $region28
        $region27: #{tpu_custom_call.1} parent=11 // pred_region
          _
        $region28: #{tpu_custom_call.1} parent=11 // pred_fallthru
          _
        // Predicated region
        $region29: #{tpu_custom_call.1} parent=11 // pred_check
          %p397 = pneg %p155
        $region30: #{tpu_custom_call.1} parent=11 // pred_check_branch
          %399 = sbr.rel (%p397) target = $region32
        $region31: #{tpu_custom_call.1} parent=11 // pred_region
          _
        $region32: #{tpu_custom_call.1} parent=11 // pred_fallthru
          _
        // Predicated region
        $region33: #{tpu_custom_call.1} parent=11 // pred_check
          %p400 = pneg %p176
        $region34: #{tpu_custom_call.1} parent=11 // pred_check_branch
          %402 = sbr.rel (%p400) target = $region36
        $region35: #{tpu_custom_call.1} parent=11 // pred_region
          _
        $region36: #{tpu_custom_call.1} parent=11 // pred_fallthru
          _
        // Predicated region
        $region37: #{tpu_custom_call.1} parent=11 // pred_check
          %p403 = pneg %p197
        $region38: #{tpu_custom_call.1} parent=11 // pred_check_branch
          %405 = sbr.rel (%p403) target = $region40
        $region39: #{tpu_custom_call.1} parent=11 // pred_region
          _
        $region40: #{tpu_custom_call.1} parent=11 // pred_fallthru
          _
        // Predicated region
        $region41: #{tpu_custom_call.1} parent=11 // pred_check
          %p406 = pneg %p218
        $region42: #{tpu_custom_call.1} parent=11 // pred_check_branch
          %408 = sbr.rel (%p406) target = $region44
        $region43: #{tpu_custom_call.1} parent=11 // pred_region
          _
        $region44: #{tpu_custom_call.1} parent=11 // pred_fallthru
          _
        // Predicated region
        $region45: #{tpu_custom_call.1} parent=11 // pred_check
          %p409 = pneg %p239
        $region46: #{tpu_custom_call.1} parent=11 // pred_check_branch
          %411 = sbr.rel (%p409) target = $region48
        $region47: #{tpu_custom_call.1} parent=11 // pred_region
          _
        $region48: #{tpu_custom_call.1} parent=11 // pred_fallthru
          _
        // Predicated region
        $region49: #{tpu_custom_call.1} parent=11 // pred_check
          %p412 = pneg %p260
        $region50: #{tpu_custom_call.1} parent=11 // pred_check_branch
          %414 = sbr.rel (%p412) target = $region52
        $region51: #{tpu_custom_call.1} parent=11 // pred_region
          _
        $region52: #{tpu_custom_call.1} parent=11 // pred_fallthru
          _
        // Predicated region
        $region53: #{tpu_custom_call.1} parent=11 // pred_check
          %p415 = pneg %p281
        $region54: #{tpu_custom_call.1} parent=11 // pred_check_branch
          %417 = sbr.rel (%p415) target = $region56
        $region55: #{tpu_custom_call.1} parent=11 // pred_region
          _
        $region56: #{tpu_custom_call.1} parent=11 // pred_fallthru
          _
        // Predicated region
        $region57: #{tpu_custom_call.1} parent=11 // pred_check
          %p418 = pneg %p302
        $region58: #{tpu_custom_call.1} parent=11 // pred_check_branch
          %420 = sbr.rel (%p418) target = $region60
        $region59: #{tpu_custom_call.1} parent=11 // pred_region
          _
        $region60: #{tpu_custom_call.1} parent=11 // pred_fallthru
          _
        // Predicated region
        $region61: #{tpu_custom_call.1} parent=11 // pred_check
          %p421 = pneg %p323
        $region62: #{tpu_custom_call.1} parent=11 // pred_check_branch
          %423 = sbr.rel (%p421) target = $region64
        $region63: #{tpu_custom_call.1} parent=11 // pred_region
          _
        $region64: #{tpu_custom_call.1} parent=11 // pred_fallthru
          _
        // Predicated region
        $region65: #{tpu_custom_call.1} parent=11 // pred_check
          %p424 = pneg %p344
        $region66: #{tpu_custom_call.1} parent=11 // pred_check_branch
          %426 = sbr.rel (%p424) target = $region68
        $region67: #{tpu_custom_call.1} parent=11 // pred_region
          _
        $region68: #{tpu_custom_call.1} parent=11 // pred_fallthru
          _
      $region12: #{tpu_custom_call.1} parent=5 // pred_fallthru
        _
      %p427 = scmp.lt.s32.totalorder %s24, 8
      // Predicated region
      $region69: #{tpu_custom_call.1} parent=5 // pred_check
        %p428 = pneg %p427
      $region70: #{tpu_custom_call.1} parent=5 // pred_check_branch
        %430 = sbr.rel (%p428) target = $region72
      $region71: #{tpu_custom_call.1} parent=5 // pred_region
        // Predicated region
        $region73: #{tpu_custom_call.1} parent=71 // pred_check
          %p431 = pneg %p44
        $region74: #{tpu_custom_call.1} parent=71 // pred_check_branch
          %433 = sbr.rel (%p431) target = $region76
        $region75: #{tpu_custom_call.1} parent=71 // pred_region
          %p434 = scmp.lt.s32.totalorder %s24, 7
          %s435 = scalar_select %p434, %s24, 7
          %s436 = smul.addr %s435, 4
          %s437 = smul.addr %s436, 8
          %s438 = scalar_lea.vmem %s0, %s437
        $region76: #{tpu_custom_call.1} parent=71 // pred_fallthru
          _
      $region72: #{tpu_custom_call.1} parent=5 // pred_fallthru
        _
      %p439 = scmp.le.s32.totalorder 1, %s24
      %p440 = scmp.lt.s32.totalorder %s24, 9
      %p441 = pnand %p439, %p440
      %p442 = pneg %p441
      // Predicated region
      $region77: #{tpu_custom_call.1} parent=5 // pred_check
        _
      $region78: #{tpu_custom_call.1} parent=5 // pred_check_branch
        %444 = sbr.rel (%p441) target = $region80
      $region79: #{tpu_custom_call.1} parent=5 // pred_region
        %s445 = ssub.s32 %s24, 1
        %p446 = scmp.lt.s32.totalorder %s29, 7
        %s447 = scalar_select %p446, %s29, 7
        %s448 = smul.addr %s447, 4
        %s449 = smul.addr %s448, 8
        %s450 = scalar_lea.vmem %s0, %s449
        %p451 = pneg %p50
        %p452 = pneg %p47
        %p453 = pneg %p71
        %p454 = pneg %p68
        %p455 = pneg %p92
        %p456 = pneg %p89
        %p457 = pneg %p113
        %p458 = pneg %p110
        %p459 = pneg %p134
        %p460 = pneg %p131
        %p461 = pneg %p155
        %p462 = pneg %p152
        %p463 = pneg %p176
        %p464 = pneg %p173
        %p465 = pneg %p197
        %p466 = pneg %p194
        %p467 = pneg %p218
        %p468 = pneg %p215
        %p469 = pneg %p239
        %p470 = pneg %p236
        %p471 = pneg %p260
        %p472 = pneg %p257
        %p473 = pneg %p281
        %p474 = pneg %p278
        %p475 = pneg %p302
        %p476 = pneg %p299
        %p477 = pneg %p323
        %p478 = pneg %p320
        %p479 = pneg %p344
        %p480 = pneg %p341
        %p481 = pneg %p370
        %p482 = pneg %p367
        %s483 = sand.u32 %s357, 1
        %s484 = scalar_lea.sflag [#allocation3], %s483
        %s485 = sand.u32 %s357, 1
        %s486 = smul.addr %s485, 8
        %s487 = scalar_lea.vmem [#allocation2], %s486
        %p488 = scmp.lt.s32.totalorder %s29, 7
        %s489 = scalar_select %p488, %s29, 7
        %s490 = smul.addr %s489, 4
        %s491 = smul.addr %s490, 8
        %s492 = scalar_lea.vmem %s0, %s491
        %v494 = vld [vmem:[%s492] sm:$0xff]
        %v495 = vld [vmem:[%s492 + $0x8] sm:$0xff]
        %v496 = vld [vmem:[%s492 + $0x10] sm:$0xff]
        %v497 = vld [vmem:[%s492 + $0x18] sm:$0xff]
        %v498 = vld [vmem:[%s1] sm:$0xff]
        %v499 = vld [vmem:[%s1 + $0x8] sm:$0xff]
        %v500 = vld [vmem:[%s1 + $0x10] sm:$0xff]
        %v501 = vld [vmem:[%s1 + $0x18] sm:$0xff]
        %v502 = vld [vmem:[%s1 + $0x20] sm:$0xff]
        %v503 = vld [vmem:[%s1 + $0x28] sm:$0xff]
        %v504 = vld [vmem:[%s1 + $0x30] sm:$0xff]
        %v505 = vld [vmem:[%s1 + $0x38] sm:$0xff]
        %v506 = vld [vmem:[%s1 + $0x40] sm:$0xff]
        %v507 = vld [vmem:[%s1 + $0x48] sm:$0xff]
        %v508 = vld [vmem:[%s1 + $0x50] sm:$0xff]
        %v509 = vld [vmem:[%s1 + $0x58] sm:$0xff]
        %v510 = vld [vmem:[%s1 + $0x60] sm:$0xff]
        %v511 = vld [vmem:[%s1 + $0x68] sm:$0xff]
        %v512 = vld [vmem:[%s1 + $0x70] sm:$0xff]
        %v513 = vld [vmem:[%s1 + $0x78] sm:$0xff]
        %v514 = vld [vmem:[%s1 + $0x80] sm:$0xff]
        %v515 = vld [vmem:[%s1 + $0x88] sm:$0xff]
        %v516 = vld [vmem:[%s1 + $0x90] sm:$0xff]
        %v517 = vld [vmem:[%s1 + $0x98] sm:$0xff]
        %v518 = vpack.c.bf16 %v495, %v494
        %v519 = vpack.c.bf16 %v497, %v496
        %vm520 = vsmask.f32 7424
        %v522 = vshrl.u32 %v518, 16
        %v524 = vshll.u32 %v518, 16
        %v526 = vrot.slane %v524, 1
        %v527 = vor.u32 %v522, %v526
        %v529 = vshll.u32 %v519, 16
        %v531 = vrot.slane %v529, 1
        %v532 = vsel %vm520, %v527, %v531
        %v533 = vshrl.u32 %v519, 16
        %v535 = vor.u32 %v533, %v531
        %v540 = vunpack.c.l.b16 %v502
        %v541 = vunpack.c.h.b16 %v502
        %v542 = vunpack.c.l.b16 %v503
        %v543 = vunpack.c.h.b16 %v503
        %v544 = vunpack.c.l.b16 %v504
        %v545 = vunpack.c.h.b16 %v504
        %v546 = vunpack.c.l.b16 %v505
        %v547 = vunpack.c.h.b16 %v505
        %v548 = vpack.c.b16 %v542, %v540
        %v549 = vpack.c.b16 %v543, %v541
        %v550 = vpack.c.b16 %v546, %v544
        %v551 = vpack.c.b16 %v547, %v545
        %vm556 = vcmask 261120
        %v558 = vsel %vm556, %v532, 0
        %v561 = vsel %vm556, %v535, 0
        %563 = vmatprep.subr.bf16.mxu0 %v549
        %564 = vmatpush1.bf16.msra.mxu0 %v548
        %565 = vmatprep.subr.bf16.mxu0 %v551
        %566 = vmatpush1.bf16.msra.mxu0 %v550
        %567 = vmatprep.subr.bf16.mxu0 0
        %568 = vmatpush1.bf16.msra.mxu0 0
        %569 = vmatprep.subr.bf16.mxu0 0
        %570 = vmatpush1.bf16.msra.mxu0 0
        %571 = vmatprep.subr.bf16.mxu0 0
        %572 = vmatpush1.bf16.msra.mxu0 0
        %573 = vmatprep.subr.bf16.mxu0 0
        %574 = vmatpush1.bf16.msra.mxu0 0
        %575 = vmatprep.subr.bf16.mxu0 0
        %576 = vmatpush1.bf16.msra.mxu0 0
        %577 = vmatprep.subr.bf16.mxu0 0
        %578 = vmatpush1.bf16.msra.mxu0 0
        %579 = vmatprep.subr.bf16.mxu0 0
        %580 = vmatpush1.bf16.msra.mxu0 0
        %581 = vmatprep.subr.bf16.mxu0 0
        %582 = vmatpush1.bf16.msra.mxu0 0
        %583 = vmatprep.subr.bf16.mxu0 0
        %584 = vmatpush1.bf16.msra.mxu0 0
        %585 = vmatprep.subr.bf16.mxu0 0
        %586 = vmatpush1.bf16.msra.mxu0 0
        %587 = vmatprep.subr.bf16.mxu0 0
        %588 = vmatpush1.bf16.msra.mxu0 0
        %589 = vmatprep.subr.bf16.mxu0 0
        %590 = vmatpush1.bf16.msra.mxu0 0
        %591 = vmatprep.subr.bf16.mxu0 0
        %592 = vmatpush1.bf16.msra.mxu0 0
        %593 = vmatprep.subr.bf16.mxu0 0
        %594 = vmatpush1.bf16.msra.mxu0 0
        %595 = vmatprep.mubr.bf16.mxu0 0
        %596 = vmatmul.mubr.bf16.gmra.mrb[0].mxu0 %v558
        %v597 = vpop.f32.mrb[0].mxu0
        %v598 = vadd.f32 0.0, %v597
        %v599 = vpop.f32.mrb[0].mxu0
        %v600 = vadd.f32 0.0, %v599
        %v601 = vpop.f32.mrb[0].mxu0
        %v602 = vadd.f32 0.0, %v601
        %v603 = vpop.f32.mrb[0].mxu0
        %v604 = vadd.f32 0.0, %v603
        %605 = vmatprep.mubr.bf16.mxu0 0
        %606 = vmatmul.mubr.bf16.gmra.mrb[0].mxu0 %v561
        %v607 = vpop.f32.mrb[0].mxu0
        %v608 = vadd.f32 0.0, %v607
        %v609 = vpop.f32.mrb[0].mxu0
        %v610 = vadd.f32 0.0, %v609
        %v611 = vpop.f32.mrb[0].mxu0
        %v612 = vadd.f32 0.0, %v611
        %v613 = vpop.f32.mrb[0].mxu0
        %v614 = vadd.f32 0.0, %v613
        %615 = vdwg.mxu0
        %v620 = vunpack.c.l.b16 %v498
        %v621 = vunpack.c.h.b16 %v498
        %v622 = vunpack.c.l.b16 %v499
        %v623 = vunpack.c.h.b16 %v499
        %v624 = vunpack.c.l.b16 %v500
        %v625 = vunpack.c.h.b16 %v500
        %v626 = vunpack.c.l.b16 %v501
        %v627 = vunpack.c.h.b16 %v501
        %v628 = vpack.c.b16 %v622, %v620
        %v629 = vpack.c.b16 %v623, %v621
        %v630 = vpack.c.b16 %v626, %v624
        %v631 = vpack.c.b16 %v627, %v625
        %v636 = vsel %vm556, %v518, 0
        %v638 = vsel %vm556, %v519, 0
        %640 = vmatprep.subr.bf16.mxu0 %v629
        %641 = vmatpush1.bf16.msra.mxu0 %v628
        %642 = vmatprep.subr.bf16.mxu0 %v631
        %643 = vmatpush1.bf16.msra.mxu0 %v630
        %644 = vmatprep.subr.bf16.mxu0 0
        %645 = vmatpush1.bf16.msra.mxu0 0
        %646 = vmatprep.subr.bf16.mxu0 0
        %647 = vmatpush1.bf16.msra.mxu0 0
        %648 = vmatprep.subr.bf16.mxu0 0
        %649 = vmatpush1.bf16.msra.mxu0 0
        %650 = vmatprep.subr.bf16.mxu0 0
        %651 = vmatpush1.bf16.msra.mxu0 0
        %652 = vmatprep.subr.bf16.mxu0 0
        %653 = vmatpush1.bf16.msra.mxu0 0
        %654 = vmatprep.subr.bf16.mxu0 0
        %655 = vmatpush1.bf16.msra.mxu0 0
        %656 = vmatprep.subr.bf16.mxu0 0
        %657 = vmatpush1.bf16.msra.mxu0 0
        %658 = vmatprep.subr.bf16.mxu0 0
        %659 = vmatpush1.bf16.msra.mxu0 0
        %660 = vmatprep.subr.bf16.mxu0 0
        %661 = vmatpush1.bf16.msra.mxu0 0
        %662 = vmatprep.subr.bf16.mxu0 0
        %663 = vmatpush1.bf16.msra.mxu0 0
        %664 = vmatprep.subr.bf16.mxu0 0
        %665 = vmatpush1.bf16.msra.mxu0 0
        %666 = vmatprep.subr.bf16.mxu0 0
        %667 = vmatpush1.bf16.msra.mxu0 0
        %668 = vmatprep.subr.bf16.mxu0 0
        %669 = vmatpush1.bf16.msra.mxu0 0
        %670 = vmatprep.subr.bf16.mxu0 0
        %671 = vmatpush1.bf16.msra.mxu0 0
        %672 = vmatprep.mubr.bf16.mxu0 0
        %673 = vmatmul.mubr.bf16.gmra.mrb[0].mxu0 %v636
        %v674 = vpop.f32.mrb[0].mxu0
        %v675 = vadd.f32 %v598, %v674
        %v676 = vpop.f32.mrb[0].mxu0
        %v677 = vadd.f32 %v600, %v676
        %v678 = vpop.f32.mrb[0].mxu0
        %v679 = vadd.f32 %v602, %v678
        %v680 = vpop.f32.mrb[0].mxu0
        %v681 = vadd.f32 %v604, %v680
        %682 = vmatprep.mubr.bf16.mxu0 0
        %683 = vmatmul.mubr.bf16.gmra.mrb[0].mxu0 %v638
        %v684 = vpop.f32.mrb[0].mxu0
        %v685 = vadd.f32 %v608, %v684
        %v686 = vpop.f32.mrb[0].mxu0
        %v687 = vadd.f32 %v610, %v686
        %v688 = vpop.f32.mrb[0].mxu0
        %v689 = vadd.f32 %v612, %v688
        %v690 = vpop.f32.mrb[0].mxu0
        %v691 = vadd.f32 %v614, %v690
        %692 = vdwg.mxu0
        %vm695 = vcmask 1046528
        %v696 = vrot.slane %v518, 1
        %v697 = vrot.slane %v519, 1
        %v698 = vsel %vm695, %v696, %v697
        %v703 = vunpack.c.l.b16 %v506
        %v704 = vunpack.c.h.b16 %v506
        %v705 = vunpack.c.l.b16 %v507
        %v706 = vunpack.c.h.b16 %v507
        %v707 = vunpack.c.l.b16 %v508
        %v708 = vunpack.c.h.b16 %v508
        %v709 = vunpack.c.l.b16 %v509
        %v710 = vunpack.c.h.b16 %v509
        %v711 = vpack.c.b16 %v705, %v703
        %v712 = vpack.c.b16 %v706, %v704
        %v713 = vpack.c.b16 %v709, %v707
        %v714 = vpack.c.b16 %v710, %v708
        %v720 = vsel %vm556, %v698, 0
        %v723 = vsel %vm556, %v697, 0
        %725 = vmatprep.subr.bf16.mxu0 %v712
        %726 = vmatpush1.bf16.msra.mxu0 %v711
        %727 = vmatprep.subr.bf16.mxu0 %v714
        %728 = vmatpush1.bf16.msra.mxu0 %v713
        %729 = vmatprep.subr.bf16.mxu0 0
        %730 = vmatpush1.bf16.msra.mxu0 0
        %731 = vmatprep.subr.bf16.mxu0 0
        %732 = vmatpush1.bf16.msra.mxu0 0
        %733 = vmatprep.subr.bf16.mxu0 0
        %734 = vmatpush1.bf16.msra.mxu0 0
        %735 = vmatprep.subr.bf16.mxu0 0
        %736 = vmatpush1.bf16.msra.mxu0 0
        %737 = vmatprep.subr.bf16.mxu0 0
        %738 = vmatpush1.bf16.msra.mxu0 0
        %739 = vmatprep.subr.bf16.mxu0 0
        %740 = vmatpush1.bf16.msra.mxu0 0
        %741 = vmatprep.subr.bf16.mxu0 0
        %742 = vmatpush1.bf16.msra.mxu0 0
        %743 = vmatprep.subr.bf16.mxu0 0
        %744 = vmatpush1.bf16.msra.mxu0 0
        %745 = vmatprep.subr.bf16.mxu0 0
        %746 = vmatpush1.bf16.msra.mxu0 0
        %747 = vmatprep.subr.bf16.mxu0 0
        %748 = vmatpush1.bf16.msra.mxu0 0
        %749 = vmatprep.subr.bf16.mxu0 0
        %750 = vmatpush1.bf16.msra.mxu0 0
        %751 = vmatprep.subr.bf16.mxu0 0
        %752 = vmatpush1.bf16.msra.mxu0 0
        %753 = vmatprep.subr.bf16.mxu0 0
        %754 = vmatpush1.bf16.msra.mxu0 0
        %755 = vmatprep.subr.bf16.mxu0 0
        %756 = vmatpush1.bf16.msra.mxu0 0
        %757 = vmatprep.mubr.bf16.mxu0 0
        %758 = vmatmul.mubr.bf16.gmra.mrb[0].mxu0 %v720
        %v759 = vpop.f32.mrb[0].mxu0
        %v760 = vadd.f32 0.0, %v759
        %v761 = vpop.f32.mrb[0].mxu0
        %v762 = vadd.f32 0.0, %v761
        %v763 = vpop.f32.mrb[0].mxu0
        %v764 = vadd.f32 0.0, %v763
        %v765 = vpop.f32.mrb[0].mxu0
        %v766 = vadd.f32 0.0, %v765
        %767 = vmatprep.mubr.bf16.mxu0 0
        %768 = vmatmul.mubr.bf16.gmra.mrb[0].mxu0 %v723
        %v769 = vpop.f32.mrb[0].mxu0
        %v770 = vadd.f32 0.0, %v769
        %v771 = vpop.f32.mrb[0].mxu0
        %v772 = vadd.f32 0.0, %v771
        %v773 = vpop.f32.mrb[0].mxu0
        %v774 = vadd.f32 0.0, %v773
        %v775 = vpop.f32.mrb[0].mxu0
        %v776 = vadd.f32 0.0, %v775
        %777 = vdwg.mxu0
        %v778 = vadd.f32 %v675, %v760
        %v779 = vadd.f32 %v677, %v762
        %v780 = vadd.f32 %v679, %v764
        %v781 = vadd.f32 %v681, %v766
        %v782 = vadd.f32 %v685, %v770
        %v783 = vadd.f32 %v687, %v772
        %v784 = vadd.f32 %v689, %v774
        %v785 = vadd.f32 %v691, %v776
        %vm786 = vsmask.f32 6400
        %v787 = vrot.slane %v522, 1
        %v788 = vrot.slane %v524, 2
        %v789 = vor.u32 %v787, %v788
        %v790 = vrot.slane %v533, 1
        %v791 = vrot.slane %v529, 2
        %v792 = vor.u32 %v790, %v791
        %v793 = vsel %vm786, %v789, %v792
        %v798 = vunpack.c.l.b16 %v510
        %v799 = vunpack.c.h.b16 %v510
        %v800 = vunpack.c.l.b16 %v511
        %v801 = vunpack.c.h.b16 %v511
        %v802 = vunpack.c.l.b16 %v512
        %v803 = vunpack.c.h.b16 %v512
        %v804 = vunpack.c.l.b16 %v513
        %v805 = vunpack.c.h.b16 %v513
        %v806 = vpack.c.b16 %v800, %v798
        %v807 = vpack.c.b16 %v801, %v799
        %v808 = vpack.c.b16 %v804, %v802
        %v809 = vpack.c.b16 %v805, %v803
        %v815 = vsel %vm556, %v793, 0
        %v818 = vsel %vm556, %v792, 0
        %820 = vmatprep.subr.bf16.mxu0 %v807
        %821 = vmatpush1.bf16.msra.mxu0 %v806
        %822 = vmatprep.subr.bf16.mxu0 %v809
        %823 = vmatpush1.bf16.msra.mxu0 %v808
        %824 = vmatprep.subr.bf16.mxu0 0
        %825 = vmatpush1.bf16.msra.mxu0 0
        %826 = vmatprep.subr.bf16.mxu0 0
        %827 = vmatpush1.bf16.msra.mxu0 0
        %828 = vmatprep.subr.bf16.mxu0 0
        %829 = vmatpush1.bf16.msra.mxu0 0
        %830 = vmatprep.subr.bf16.mxu0 0
        %831 = vmatpush1.bf16.msra.mxu0 0
        %832 = vmatprep.subr.bf16.mxu0 0
        %833 = vmatpush1.bf16.msra.mxu0 0
        %834 = vmatprep.subr.bf16.mxu0 0
        %835 = vmatpush1.bf16.msra.mxu0 0
        %836 = vmatprep.subr.bf16.mxu0 0
        %837 = vmatpush1.bf16.msra.mxu0 0
        %838 = vmatprep.subr.bf16.mxu0 0
        %839 = vmatpush1.bf16.msra.mxu0 0
        %840 = vmatprep.subr.bf16.mxu0 0
        %841 = vmatpush1.bf16.msra.mxu0 0
        %842 = vmatprep.subr.bf16.mxu0 0
        %843 = vmatpush1.bf16.msra.mxu0 0
        %844 = vmatprep.subr.bf16.mxu0 0
        %845 = vmatpush1.bf16.msra.mxu0 0
        %846 = vmatprep.subr.bf16.mxu0 0
        %847 = vmatpush1.bf16.msra.mxu0 0
        %848 = vmatprep.subr.bf16.mxu0 0
        %849 = vmatpush1.bf16.msra.mxu0 0
        %850 = vmatprep.subr.bf16.mxu0 0
        %851 = vmatpush1.bf16.msra.mxu0 0
        %852 = vmatprep.mubr.bf16.mxu0 0
        %853 = vmatmul.mubr.bf16.gmra.mrb[0].mxu0 %v815
        %v854 = vpop.f32.mrb[0].mxu0
        %v855 = vadd.f32 0.0, %v854
        %v856 = vpop.f32.mrb[0].mxu0
        %v857 = vadd.f32 0.0, %v856
        %v858 = vpop.f32.mrb[0].mxu0
        %v859 = vadd.f32 0.0, %v858
        %v860 = vpop.f32.mrb[0].mxu0
        %v861 = vadd.f32 0.0, %v860
        %862 = vmatprep.mubr.bf16.mxu0 0
        %863 = vmatmul.mubr.bf16.gmra.mrb[0].mxu0 %v818
        %v864 = vpop.f32.mrb[0].mxu0
        %v865 = vadd.f32 0.0, %v864
        %v866 = vpop.f32.mrb[0].mxu0
        %v867 = vadd.f32 0.0, %v866
        %v868 = vpop.f32.mrb[0].mxu0
        %v869 = vadd.f32 0.0, %v868
        %v870 = vpop.f32.mrb[0].mxu0
        %v871 = vadd.f32 0.0, %v870
        %872 = vdwg.mxu0
        %v873 = vadd.f32 %v778, %v855
        %v874 = vadd.f32 %v779, %v857
        %v875 = vadd.f32 %v780, %v859
        %v876 = vadd.f32 %v781, %v861
        %v877 = vadd.f32 %v782, %v865
        %v878 = vadd.f32 %v783, %v867
        %v879 = vadd.f32 %v784, %v869
        %v880 = vadd.f32 %v785, %v871
        %vm881 = vcmask 1045504
        %v882 = vrot.slane %v518, 2
        %v883 = vrot.slane %v519, 2
        %v884 = vsel %vm881, %v882, %v883
        %v889 = vunpack.c.l.b16 %v514
        %v890 = vunpack.c.h.b16 %v514
        %v891 = vunpack.c.l.b16 %v515
        %v892 = vunpack.c.h.b16 %v515
        %v893 = vunpack.c.l.b16 %v516
        %v894 = vunpack.c.h.b16 %v516
        %v895 = vunpack.c.l.b16 %v517
        %v896 = vunpack.c.h.b16 %v517
        %v897 = vpack.c.b16 %v891, %v889
        %v898 = vpack.c.b16 %v892, %v890
        %v899 = vpack.c.b16 %v895, %v893
        %v900 = vpack.c.b16 %v896, %v894
        %v906 = vsel %vm556, %v884, 0
        %v909 = vsel %vm556, %v883, 0
        %911 = vmatprep.subr.bf16.mxu0 %v898
        %912 = vmatpush1.bf16.msra.mxu0 %v897
        %913 = vmatprep.subr.bf16.mxu0 %v900
        %914 = vmatpush1.bf16.msra.mxu0 %v899
        %915 = vmatprep.subr.bf16.mxu0 0
        %916 = vmatpush1.bf16.msra.mxu0 0
        %917 = vmatprep.subr.bf16.mxu0 0
        %918 = vmatpush1.bf16.msra.mxu0 0
        %919 = vmatprep.subr.bf16.mxu0 0
        %920 = vmatpush1.bf16.msra.mxu0 0
        %921 = vmatprep.subr.bf16.mxu0 0
        %922 = vmatpush1.bf16.msra.mxu0 0
        %923 = vmatprep.subr.bf16.mxu0 0
        %924 = vmatpush1.bf16.msra.mxu0 0
        %925 = vmatprep.subr.bf16.mxu0 0
        %926 = vmatpush1.bf16.msra.mxu0 0
        %927 = vmatprep.subr.bf16.mxu0 0
        %928 = vmatpush1.bf16.msra.mxu0 0
        %929 = vmatprep.subr.bf16.mxu0 0
        %930 = vmatpush1.bf16.msra.mxu0 0
        %931 = vmatprep.subr.bf16.mxu0 0
        %932 = vmatpush1.bf16.msra.mxu0 0
        %933 = vmatprep.subr.bf16.mxu0 0
        %934 = vmatpush1.bf16.msra.mxu0 0
        %935 = vmatprep.subr.bf16.mxu0 0
        %936 = vmatpush1.bf16.msra.mxu0 0
        %937 = vmatprep.subr.bf16.mxu0 0
        %938 = vmatpush1.bf16.msra.mxu0 0
        %939 = vmatprep.subr.bf16.mxu0 0
        %940 = vmatpush1.bf16.msra.mxu0 0
        %941 = vmatprep.subr.bf16.mxu0 0
        %942 = vmatpush1.bf16.msra.mxu0 0
        %943 = vmatprep.mubr.bf16.mxu0 0
        %944 = vmatmul.mubr.bf16.gmra.mrb[0].mxu0 %v906
        %v945 = vpop.f32.mrb[0].mxu0
        %v946 = vadd.f32 0.0, %v945
        %v947 = vpop.f32.mrb[0].mxu0
        %v948 = vadd.f32 0.0, %v947
        %v949 = vpop.f32.mrb[0].mxu0
        %v950 = vadd.f32 0.0, %v949
        %v951 = vpop.f32.mrb[0].mxu0
        %v952 = vadd.f32 0.0, %v951
        %953 = vmatprep.mubr.bf16.mxu0 0
        %954 = vmatmul.mubr.bf16.gmra.mrb[0].mxu0 %v909
        %v955 = vpop.f32.mrb[0].mxu0
        %v956 = vadd.f32 0.0, %v955
        %v957 = vpop.f32.mrb[0].mxu0
        %v958 = vadd.f32 0.0, %v957
        %v959 = vpop.f32.mrb[0].mxu0
        %v960 = vadd.f32 0.0, %v959
        %v961 = vpop.f32.mrb[0].mxu0
        %v962 = vadd.f32 0.0, %v961
        %963 = vdwg.mxu0
        %v964 = vadd.f32 %v873, %v946
        %v965 = vadd.f32 %v874, %v948
        %v966 = vadd.f32 %v875, %v950
        %v967 = vadd.f32 %v876, %v952
        %v968 = vadd.f32 %v877, %v956
        %v969 = vadd.f32 %v878, %v958
        %v970 = vadd.f32 %v879, %v960
        %v971 = vadd.f32 %v880, %v962
        %v972 = vld [vmem:[%s2] sm:$0x3]
        %v974 = vlaneseq
        %v975 = vshrl.u32 %v974, 7
        %v976 = vsub.s32 0, %v975
        %v977 = vrot.slane %v972, %v976
        %v978 = vlaneseq
        %v979 = vshrl.u32 %v978, 7
        %v980 = vsub.s32 1, %v979
        %v981 = vrot.slane %v972, %v980
        %v984 = vadd.f32 %v964, %v977
        %v985 = vadd.f32 %v965, %v981
        %v986 = vadd.f32 %v966, %v977
        %v987 = vadd.f32 %v967, %v981
        %v988 = vadd.f32 %v968, %v977
        %v989 = vadd.f32 %v969, %v981
        %v990 = vadd.f32 %v970, %v977
        %v991 = vadd.f32 %v971, %v981
        %v992 = vmax.f32 %v984, 0.0
        %v993 = vmax.f32 %v985, 0.0
        %v994 = vmax.f32 %v986, 0.0
        %v995 = vmax.f32 %v987, 0.0
        %v996 = vmax.f32 %v988, 0.0
        %v997 = vmax.f32 %v989, 0.0
        %v998 = vmax.f32 %v990, 0.0
        %v999 = vmax.f32 %v991, 0.0
        %v1000 = vld [vmem:[%s3] sm:$0xf]
        %v1001 = vld [vmem:[%s3 + $0x4] sm:$0xf]
        %v1002 = vld [vmem:[%s3 + $0x8] sm:$0xf]
        %v1003 = vld [vmem:[%s3 + $0xc] sm:$0xf]
        %v1004 = vpack.c.bf16 %v994, %v992
        %v1005 = vpack.c.bf16 %v995, %v993
        %v1006 = vpack.c.bf16 %v998, %v996
        %v1007 = vpack.c.bf16 %v999, %v997
        %v1012 = vunpack.c.l.b16 %v1000
        %v1013 = vunpack.c.l.b16 %v1001
        %v1014 = vunpack.c.l.b16 %v1002
        %v1015 = vunpack.c.l.b16 %v1003
        %v1016 = vpack.c.b16 %v1013, %v1012
        %v1017 = vpack.c.b16 %v1015, %v1014
        %vm1018 = vcmask 228352
        %v1020 = vsel %vm1018, %v1016, 0
        %v1023 = vsel %vm1018, %v1017, 0
        %vm1025 = vcmask 1045504
        %v1027 = vsel %vm1025, %v1006, 0
        %v1030 = vsel %vm1025, %v1007, 0
        %1032 = vmatprep.subr.bf16.mxu0 %v1005
        %1033 = vmatpush1.bf16.msra.mxu0 %v1004
        %1034 = vmatprep.subr.bf16.mxu0 %v1030
        %1035 = vmatpush1.bf16.msra.mxu0 %v1027
        %1036 = vmatprep.subr.bf16.mxu0 0
        %1037 = vmatpush1.bf16.msra.mxu0 0
        %1038 = vmatprep.subr.bf16.mxu0 0
        %1039 = vmatpush1.bf16.msra.mxu0 0
        %1040 = vmatprep.subr.bf16.mxu0 0
        %1041 = vmatpush1.bf16.msra.mxu0 0
        %1042 = vmatprep.subr.bf16.mxu0 0
        %1043 = vmatpush1.bf16.msra.mxu0 0
        %1044 = vmatprep.subr.bf16.mxu0 0
        %1045 = vmatpush1.bf16.msra.mxu0 0
        %1046 = vmatprep.subr.bf16.mxu0 0
        %1047 = vmatpush1.bf16.msra.mxu0 0
        %1048 = vmatprep.subr.bf16.mxu0 0
        %1049 = vmatpush1.bf16.msra.mxu0 0
        %1050 = vmatprep.subr.bf16.mxu0 0
        %1051 = vmatpush1.bf16.msra.mxu0 0
        %1052 = vmatprep.subr.bf16.mxu0 0
        %1053 = vmatpush1.bf16.msra.mxu0 0
        %1054 = vmatprep.subr.bf16.mxu0 0
        %1055 = vmatpush1.bf16.msra.mxu0 0
        %1056 = vmatprep.subr.bf16.mxu0 0
        %1057 = vmatpush1.bf16.msra.mxu0 0
        %1058 = vmatprep.subr.bf16.mxu0 0
        %1059 = vmatpush1.bf16.msra.mxu0 0
        %1060 = vmatprep.subr.bf16.mxu0 0
        %1061 = vmatpush1.bf16.msra.mxu0 0
        %1062 = vmatprep.subr.bf16.mxu0 0
        %1063 = vmatpush1.bf16.msra.mxu0 0
        %1064 = vmatprep.mubr.bf16.mxu0 0
        %1065 = vmatmul.mubr.bf16.gmra.mrb[0].mxu0 %v1020
        %v1066 = vpop.f32.mrb[0].mxu0
        %v1067 = vadd.f32 0.0, %v1066
        %v1068 = vpop.f32.mrb[0].mxu0
        %v1069 = vadd.f32 0.0, %v1068
        %v1070 = vpop.f32.mrb[0].mxu0
        %v1071 = vadd.f32 0.0, %v1070
        %v1072 = vpop.f32.mrb[0].mxu0
        %v1073 = vadd.f32 0.0, %v1072
        %1074 = vmatprep.mubr.bf16.mxu0 0
        %1075 = vmatmul.mubr.bf16.gmra.mrb[0].mxu0 %v1023
        %v1076 = vpop.f32.mrb[0].mxu0
        %v1077 = vadd.f32 0.0, %v1076
        %v1078 = vpop.f32.mrb[0].mxu0
        %v1079 = vadd.f32 0.0, %v1078
        %v1080 = vpop.f32.mrb[0].mxu0
        %v1081 = vadd.f32 0.0, %v1080
        %v1082 = vpop.f32.mrb[0].mxu0
        %v1083 = vadd.f32 0.0, %v1082
        %1084 = vdwg.mxu0
        %v1085 = vmax.f32 %v1067, %v1077
        %v1086 = vmax.f32 %v1069, %v1079
        %v1087 = vmax.f32 %v1071, %v1081
        %v1088 = vmax.f32 %v1073, %v1083
        %v1089 = vld [vmem:[%s4] sm:$0xff]
        %v1090 = vld [vmem:[%s4 + $0x8] sm:$0xff]
        %v1091 = vld [vmem:[%s4 + $0x10] sm:$0xff]
        %v1092 = vld [vmem:[%s4 + $0x18] sm:$0xff]
        %v1093 = vld [vmem:[%s4 + $0x20] sm:$0xff]
        %v1094 = vld [vmem:[%s4 + $0x28] sm:$0xff]
        %v1095 = vld [vmem:[%s4 + $0x30] sm:$0xff]
        %v1096 = vld [vmem:[%s4 + $0x38] sm:$0xff]
        %v1097 = vld [vmem:[%s4 + $0x40] sm:$0xff]
        %v1098 = vld [vmem:[%s4 + $0x48] sm:$0xff]
        %v1099 = vld [vmem:[%s4 + $0x50] sm:$0xff]
        %v1100 = vld [vmem:[%s4 + $0x58] sm:$0xff]
        %v1101 = vld [vmem:[%s4 + $0x60] sm:$0xff]
        %v1102 = vld [vmem:[%s4 + $0x68] sm:$0xff]
        %v1103 = vld [vmem:[%s4 + $0x70] sm:$0xff]
        %v1104 = vld [vmem:[%s4 + $0x78] sm:$0xff]
        %v1105 = vld [vmem:[%s4 + $0x80] sm:$0xff]
        %v1106 = vld [vmem:[%s4 + $0x88] sm:$0xff]
        %v1107 = vld [vmem:[%s4 + $0x90] sm:$0xff]
        %v1108 = vld [vmem:[%s4 + $0x98] sm:$0xff]
        %v1109 = vld [vmem:[%s4 + $0xa0] sm:$0xff]
        %v1110 = vpack.c.bf16 %v1087, %v1085
        %v1111 = vpack.c.bf16 %v1088, %v1086
        %v1133 = vunpack.c.l.b16 %v1089
        %v1134 = vunpack.c.h.b16 %v1089
        %v1135 = vunpack.c.l.b16 %v1090
        %v1136 = vunpack.c.h.b16 %v1090
        %v1137 = vunpack.c.l.b16 %v1091
        %v1138 = vunpack.c.h.b16 %v1091
        %v1139 = vunpack.c.l.b16 %v1092
        %v1140 = vunpack.c.h.b16 %v1092
        %v1141 = vunpack.c.l.b16 %v1093
        %v1142 = vunpack.c.h.b16 %v1093
        %v1143 = vunpack.c.l.b16 %v1094
        %v1144 = vunpack.c.h.b16 %v1094
        %v1145 = vunpack.c.l.b16 %v1095
        %v1146 = vunpack.c.h.b16 %v1095
        %v1147 = vunpack.c.l.b16 %v1096
        %v1148 = vunpack.c.h.b16 %v1096
        %v1149 = vunpack.c.l.b16 %v1097
        %v1150 = vunpack.c.h.b16 %v1097
        %v1151 = vunpack.c.l.b16 %v1098
        %v1152 = vunpack.c.h.b16 %v1098
        %v1153 = vunpack.c.l.b16 %v1099
        %v1154 = vunpack.c.h.b16 %v1099
        %v1155 = vunpack.c.l.b16 %v1100
        %v1156 = vunpack.c.h.b16 %v1100
        %v1157 = vunpack.c.l.b16 %v1101
        %v1158 = vunpack.c.h.b16 %v1101
        %v1159 = vunpack.c.l.b16 %v1102
        %v1160 = vunpack.c.h.b16 %v1102
        %v1161 = vunpack.c.l.b16 %v1103
        %v1162 = vunpack.c.h.b16 %v1103
        %v1163 = vunpack.c.l.b16 %v1104
        %v1164 = vunpack.c.h.b16 %v1104
        %v1165 = vunpack.c.l.b16 %v1105
        %v1166 = vunpack.c.h.b16 %v1105
        %v1167 = vunpack.c.l.b16 %v1106
        %v1168 = vunpack.c.h.b16 %v1106
        %v1169 = vunpack.c.l.b16 %v1107
        %v1170 = vunpack.c.h.b16 %v1107
        %v1171 = vunpack.c.l.b16 %v1108
        %v1172 = vunpack.c.h.b16 %v1108
        %v1173 = vunpack.c.l.b16 %v1109
        %v1174 = vunpack.c.h.b16 %v1109
        %v1175 = vpack.c.b16 %v1135, %v1133
        %v1176 = vpack.c.b16 %v1136, %v1134
        %v1177 = vpack.c.b16 %v1139, %v1137
        %v1178 = vpack.c.b16 %v1140, %v1138
        %v1179 = vpack.c.b16 %v1143, %v1141
        %v1180 = vpack.c.b16 %v1144, %v1142
        %v1181 = vpack.c.b16 %v1147, %v1145
        %v1182 = vpack.c.b16 %v1148, %v1146
        %v1183 = vpack.c.b16 %v1151, %v1149
        %v1184 = vpack.c.b16 %v1152, %v1150
        %v1185 = vpack.c.b16 %v1155, %v1153
        %v1186 = vpack.c.b16 %v1156, %v1154
        %v1187 = vpack.c.b16 %v1159, %v1157
        %v1188 = vpack.c.b16 %v1160, %v1158
        %v1189 = vpack.c.b16 %v1163, %v1161
        %v1190 = vpack.c.b16 %v1164, %v1162
        %v1191 = vpack.c.b16 %v1167, %v1165
        %v1192 = vpack.c.b16 %v1168, %v1166
        %v1193 = vpack.c.b16 %v1171, %v1169
        %v1194 = vpack.c.b16 %v1172, %v1170
        %v1195 = vpack.c.b16 %v1173, %v1173
        %v1196 = vpack.c.b16 %v1174, %v1174
        %vm1217 = vcmask 326656
        %v1219 = vsel %vm1217, %v1111, 0
        %vm1221 = vcmask 1043456
        %v1223 = vsel %vm1221, %v1195, 0
        %v1226 = vsel %vm1221, %v1196, 0
        %1228 = vmatprep.subr.bf16.mxu0 %v1176
        %1229 = vmatpush1.bf16.msra.mxu0 %v1175
        %1230 = vmatprep.subr.bf16.mxu0 %v1178
        %1231 = vmatpush1.bf16.msra.mxu0 %v1177
        %1232 = vmatprep.subr.bf16.mxu0 %v1180
        %1233 = vmatpush1.bf16.msra.mxu0 %v1179
        %1234 = vmatprep.subr.bf16.mxu0 %v1182
        %1235 = vmatpush1.bf16.msra.mxu0 %v1181
        %1236 = vmatprep.subr.bf16.mxu0 %v1184
        %1237 = vmatpush1.bf16.msra.mxu0 %v1183
        %1238 = vmatprep.subr.bf16.mxu0 %v1186
        %1239 = vmatpush1.bf16.msra.mxu0 %v1185
        %1240 = vmatprep.subr.bf16.mxu0 %v1188
        %1241 = vmatpush1.bf16.msra.mxu0 %v1187
        %1242 = vmatprep.subr.bf16.mxu0 %v1190
        %1243 = vmatpush1.bf16.msra.mxu0 %v1189
        %1244 = vmatprep.subr.bf16.mxu0 %v1192
        %1245 = vmatpush1.bf16.msra.mxu0 %v1191
        %1246 = vmatprep.subr.bf16.mxu0 %v1194
        %1247 = vmatpush1.bf16.msra.mxu0 %v1193
        %1248 = vmatprep.subr.bf16.mxu0 %v1226
        %1249 = vmatpush1.bf16.msra.mxu0 %v1223
        %1250 = vmatprep.subr.bf16.mxu0 0
        %1251 = vmatpush1.bf16.msra.mxu0 0
        %1252 = vmatprep.subr.bf16.mxu0 0
        %1253 = vmatpush1.bf16.msra.mxu0 0
        %1254 = vmatprep.subr.bf16.mxu0 0
        %1255 = vmatpush1.bf16.msra.mxu0 0
        %1256 = vmatprep.subr.bf16.mxu0 0
        %1257 = vmatpush1.bf16.msra.mxu0 0
        %1258 = vmatprep.subr.bf16.mxu0 0
        %1259 = vmatpush1.bf16.msra.mxu0 0
        %1260 = vmatprep.mubr.bf16.mxu0 %v1219
        %1261 = vmatmul.mubr.bf16.gmra.mrb[0].mxu0 %v1110
        %v1262 = vpop.f32.mrb[0].mxu0
        %v1263 = vadd.f32 0.0, %v1262
        %v1264 = vpop.f32.mrb[0].mxu0
        %v1265 = vadd.f32 0.0, %v1264
        %v1266 = vpop.f32.mrb[0].mxu0
        %v1267 = vadd.f32 0.0, %v1266
        %v1268 = vpop.f32.mrb[0].mxu0
        %v1269 = vadd.f32 0.0, %v1268
        %1270 = vdwg.mxu0
        %v1271 = vmax.f32 %v1263, %v1265
        %v1272 = vmax.f32 %v1267, %v1269
        %v1273 = vld [vmem:[%s5] sm:$0xff]
        %v1274 = vld [vmem:[%s5 + $0x8] sm:$0xff]
        %v1275 = vld [vmem:[%s5 + $0x10] sm:$0xff]
        %v1276 = vld [vmem:[%s5 + $0x18] sm:$0xff]
        %v1277 = vld [vmem:[%s5 + $0x20] sm:$0xff]
        %v1278 = vld [vmem:[%s5 + $0x28] sm:$0xff]
        %v1279 = vld [vmem:[%s5 + $0x30] sm:$0xff]
        %v1280 = vld [vmem:[%s5 + $0x38] sm:$0xff]
        %v1281 = vld [vmem:[%s5 + $0x40] sm:$0xff]
        %v1282 = vld [vmem:[%s5 + $0x48] sm:$0xff]
        %v1283 = vld [vmem:[%s5 + $0x50] sm:$0xff]
        %v1284 = vld [vmem:[%s5 + $0x58] sm:$0xff]
        %v1285 = vld [vmem:[%s5 + $0x60] sm:$0xff]
        %v1286 = vld [vmem:[%s5 + $0x68] sm:$0xff]
        %v1287 = vld [vmem:[%s5 + $0x70] sm:$0xff]
        %v1288 = vld [vmem:[%s5 + $0x78] sm:$0xff]
        %v1289 = vld [vmem:[%s5 + $0x80] sm:$0xff]
        %v1290 = vld [vmem:[%s5 + $0x88] sm:$0xff]
        %v1291 = vld [vmem:[%s5 + $0x90] sm:$0xff]
        %v1292 = vld [vmem:[%s5 + $0x98] sm:$0xff]
        %v1293 = vld [vmem:[%s5 + $0xa0] sm:$0xff]
        %v1294 = vld [vmem:[%s5 + $0xa8] sm:$0xff]
        %v1295 = vld [vmem:[%s5 + $0xb0] sm:$0xff]
        %v1296 = vld [vmem:[%s5 + $0xb8] sm:$0xff]
        %v1297 = vld [vmem:[%s5 + $0xc0] sm:$0xff]
        %v1298 = vld [vmem:[%s5 + $0xc8] sm:$0xff]
        %v1299 = vld [vmem:[%s5 + $0xd0] sm:$0xff]
        %v1300 = vld [vmem:[%s5 + $0xd8] sm:$0xff]
        %v1301 = vld [vmem:[%s5 + $0xe0] sm:$0xff]
        %v1302 = vld [vmem:[%s5 + $0xe8] sm:$0xff]
        %v1303 = vld [vmem:[%s5 + $0xf0] sm:$0xff]
        %v1304 = vld [vmem:[%s5 + $0xf8] sm:$0xff]
        %v1305 = vld [vmem:[%s5 + $0x100] sm:$0xff]
        %v1306 = vld [vmem:[%s5 + $0x108] sm:$0xff]
        %v1307 = vld [vmem:[%s5 + $0x110] sm:$0xff]
        %v1308 = vld [vmem:[%s5 + $0x118] sm:$0xff]
        %v1309 = vld [vmem:[%s5 + $0x120] sm:$0xff]
        %v1310 = vld [vmem:[%s5 + $0x128] sm:$0xff]
        %v1311 = vld [vmem:[%s5 + $0x130] sm:$0xff]
        %v1312 = vld [vmem:[%s5 + $0x138] sm:$0xff]
        %v1313 = vld [vmem:[%s5 + $0x140] sm:$0xff]
        %v1314 = vld [vmem:[%s5 + $0x148] sm:$0xff]
        %v1315 = vld [vmem:[%s5 + $0x150] sm:$0xff]
        %v1316 = vld [vmem:[%s5 + $0x158] sm:$0xff]
        %v1317 = vld [vmem:[%s5 + $0x160] sm:$0xff]
        %v1318 = vld [vmem:[%s5 + $0x168] sm:$0xff]
        %v1319 = vld [vmem:[%s5 + $0x170] sm:$0xff]
        %v1320 = vld [vmem:[%s5 + $0x178] sm:$0xff]
        %v1321 = vld [vmem:[%s5 + $0x180] sm:$0xff]
        %v1322 = vld [vmem:[%s5 + $0x188] sm:$0xff]
        %v1323 = vld [vmem:[%s5 + $0x190] sm:$0xff]
        %v1324 = vld [vmem:[%s5 + $0x198] sm:$0xff]
        %v1325 = vld [vmem:[%s5 + $0x1a0] sm:$0xff]
        %v1326 = vld [vmem:[%s5 + $0x1a8] sm:$0xff]
        %v1327 = vld [vmem:[%s5 + $0x1b0] sm:$0xff]
        %v1328 = vld [vmem:[%s5 + $0x1b8] sm:$0xff]
        %v1329 = vld [vmem:[%s5 + $0x1c0] sm:$0xff]
        %v1330 = vld [vmem:[%s5 + $0x1c8] sm:$0xff]
        %v1331 = vld [vmem:[%s5 + $0x1d0] sm:$0xff]
        %v1332 = vld [vmem:[%s5 + $0x1d8] sm:$0xff]
        %v1333 = vld [vmem:[%s5 + $0x1e0] sm:$0xff]
        %v1334 = vld [vmem:[%s5 + $0x1e8] sm:$0xff]
        %v1335 = vld [vmem:[%s5 + $0x1f0] sm:$0xff]
        %v1336 = vld [vmem:[%s5 + $0x1f8] sm:$0xff]
        %v1337 = vld [vmem:[%s5 + $0x200] sm:$0xff]
        %v1338 = vld [vmem:[%s5 + $0x208] sm:$0xff]
        %v1339 = vld [vmem:[%s5 + $0x210] sm:$0xff]
        %v1340 = vld [vmem:[%s5 + $0x218] sm:$0xff]
        %v1341 = vld [vmem:[%s5 + $0x220] sm:$0xff]
        %v1342 = vld [vmem:[%s5 + $0x228] sm:$0xff]
        %v1343 = vld [vmem:[%s5 + $0x230] sm:$0xff]
        %v1344 = vld [vmem:[%s5 + $0x238] sm:$0xff]
        %v1345 = vld [vmem:[%s5 + $0x240] sm:$0xff]
        %v1346 = vld [vmem:[%s5 + $0x248] sm:$0xff]
        %v1347 = vld [vmem:[%s5 + $0x250] sm:$0xff]
        %v1348 = vld [vmem:[%s5 + $0x258] sm:$0xff]
        %v1349 = vld [vmem:[%s5 + $0x260] sm:$0xff]
        %v1350 = vld [vmem:[%s5 + $0x268] sm:$0xff]
        %v1351 = vld [vmem:[%s5 + $0x270] sm:$0xff]
        %v1352 = vld [vmem:[%s5 + $0x278] sm:$0xff]
        %v1353 = vpack.c.bf16 %v1272, %v1271
        %v1355 = vshrl.u32 %v1353, 16
        %v1357 = vshll.u32 %v1353, 16
        %v1359 = vrot.slane %v1357, 1
        %v1360 = vor.u32 %v1355, %v1359
        %v1378 = vunpack.c.l.b16 %v1289
        %v1379 = vunpack.c.h.b16 %v1289
        %v1380 = vunpack.c.l.b16 %v1290
        %v1381 = vunpack.c.h.b16 %v1290
        %v1382 = vunpack.c.l.b16 %v1291
        %v1383 = vunpack.c.h.b16 %v1291
        %v1384 = vunpack.c.l.b16 %v1292
        %v1385 = vunpack.c.h.b16 %v1292
        %v1386 = vunpack.c.l.b16 %v1293
        %v1387 = vunpack.c.h.b16 %v1293
        %v1388 = vunpack.c.l.b16 %v1294
        %v1389 = vunpack.c.h.b16 %v1294
        %v1390 = vunpack.c.l.b16 %v1295
        %v1391 = vunpack.c.h.b16 %v1295
        %v1392 = vunpack.c.l.b16 %v1296
        %v1393 = vunpack.c.h.b16 %v1296
        %v1394 = vunpack.c.l.b16 %v1297
        %v1395 = vunpack.c.h.b16 %v1297
        %v1396 = vunpack.c.l.b16 %v1298
        %v1397 = vunpack.c.h.b16 %v1298
        %v1398 = vunpack.c.l.b16 %v1299
        %v1399 = vunpack.c.h.b16 %v1299
        %v1400 = vunpack.c.l.b16 %v1300
        %v1401 = vunpack.c.h.b16 %v1300
        %v1402 = vunpack.c.l.b16 %v1301
        %v1403 = vunpack.c.h.b16 %v1301
        %v1404 = vunpack.c.l.b16 %v1302
        %v1405 = vunpack.c.h.b16 %v1302
        %v1406 = vunpack.c.l.b16 %v1303
        %v1407 = vunpack.c.h.b16 %v1303
        %v1408 = vunpack.c.l.b16 %v1304
        %v1409 = vunpack.c.h.b16 %v1304
        %v1410 = vpack.c.b16 %v1380, %v1378
        %v1411 = vpack.c.b16 %v1381, %v1379
        %v1412 = vpack.c.b16 %v1384, %v1382
        %v1413 = vpack.c.b16 %v1385, %v1383
        %v1414 = vpack.c.b16 %v1388, %v1386
        %v1415 = vpack.c.b16 %v1389, %v1387
        %v1416 = vpack.c.b16 %v1392, %v1390
        %v1417 = vpack.c.b16 %v1393, %v1391
        %v1418 = vpack.c.b16 %v1396, %v1394
        %v1419 = vpack.c.b16 %v1397, %v1395
        %v1420 = vpack.c.b16 %v1400, %v1398
        %v1421 = vpack.c.b16 %v1401, %v1399
        %v1422 = vpack.c.b16 %v1404, %v1402
        %v1423 = vpack.c.b16 %v1405, %v1403
        %v1424 = vpack.c.b16 %v1408, %v1406
        %v1425 = vpack.c.b16 %v1409, %v1407
        %1442 = vmatprep.subr.bf16.mxu0 %v1411
        %1443 = vmatpush1.bf16.msra.mxu0 %v1410
        %1444 = vmatprep.subr.bf16.mxu0 %v1413
        %1445 = vmatpush1.bf16.msra.mxu0 %v1412
        %1446 = vmatprep.subr.bf16.mxu0 %v1415
        %1447 = vmatpush1.bf16.msra.mxu0 %v1414
        %1448 = vmatprep.subr.bf16.mxu0 %v1417
        %1449 = vmatpush1.bf16.msra.mxu0 %v1416
        %1450 = vmatprep.subr.bf16.mxu0 %v1419
        %1451 = vmatpush1.bf16.msra.mxu0 %v1418
        %1452 = vmatprep.subr.bf16.mxu0 %v1421
        %1453 = vmatpush1.bf16.msra.mxu0 %v1420
        %1454 = vmatprep.subr.bf16.mxu0 %v1423
        %1455 = vmatpush1.bf16.msra.mxu0 %v1422
        %1456 = vmatprep.subr.bf16.mxu0 %v1425
        %1457 = vmatpush1.bf16.msra.mxu0 %v1424
        %1458 = vmatprep.subr.bf16.mxu0 0
        %1459 = vmatpush1.bf16.msra.mxu0 0
        %1460 = vmatprep.subr.bf16.mxu0 0
        %1461 = vmatpush1.bf16.msra.mxu0 0
        %1462 = vmatprep.subr.bf16.mxu0 0
        %1463 = vmatpush1.bf16.msra.mxu0 0
        %1464 = vmatprep.subr.bf16.mxu0 0
        %1465 = vmatpush1.bf16.msra.mxu0 0
        %1466 = vmatprep.subr.bf16.mxu0 0
        %1467 = vmatpush1.bf16.msra.mxu0 0
        %1468 = vmatprep.subr.bf16.mxu0 0
        %1469 = vmatpush1.bf16.msra.mxu0 0
        %1470 = vmatprep.subr.bf16.mxu0 0
        %1471 = vmatpush1.bf16.msra.mxu0 0
        %1472 = vmatprep.subr.bf16.mxu0 0
        %1473 = vmatpush1.bf16.msra.mxu0 0
        %1474 = vmatprep.mubr.bf16.mxu0 0
        %1475 = vmatmul.mubr.bf16.gmra.mrb[0].mxu0 %v1360
        %v1476 = vpop.f32.mrb[0].mxu0
        %v1477 = vadd.f32 0.0, %v1476
        %v1478 = vpop.f32.mrb[0].mxu0
        %v1479 = vadd.f32 0.0, %v1478
        %v1480 = vpop.f32.mrb[0].mxu0
        %v1481 = vadd.f32 0.0, %v1480
        %v1482 = vpop.f32.mrb[0].mxu0
        %v1483 = vadd.f32 0.0, %v1482
        %1484 = vdwg.mxu0
        %v1501 = vunpack.c.l.b16 %v1273
        %v1502 = vunpack.c.h.b16 %v1273
        %v1503 = vunpack.c.l.b16 %v1274
        %v1504 = vunpack.c.h.b16 %v1274
        %v1505 = vunpack.c.l.b16 %v1275
        %v1506 = vunpack.c.h.b16 %v1275
        %v1507 = vunpack.c.l.b16 %v1276
        %v1508 = vunpack.c.h.b16 %v1276
        %v1509 = vunpack.c.l.b16 %v1277
        %v1510 = vunpack.c.h.b16 %v1277
        %v1511 = vunpack.c.l.b16 %v1278
        %v1512 = vunpack.c.h.b16 %v1278
        %v1513 = vunpack.c.l.b16 %v1279
        %v1514 = vunpack.c.h.b16 %v1279
        %v1515 = vunpack.c.l.b16 %v1280
        %v1516 = vunpack.c.h.b16 %v1280
        %v1517 = vunpack.c.l.b16 %v1281
        %v1518 = vunpack.c.h.b16 %v1281
        %v1519 = vunpack.c.l.b16 %v1282
        %v1520 = vunpack.c.h.b16 %v1282
        %v1521 = vunpack.c.l.b16 %v1283
        %v1522 = vunpack.c.h.b16 %v1283
        %v1523 = vunpack.c.l.b16 %v1284
        %v1524 = vunpack.c.h.b16 %v1284
        %v1525 = vunpack.c.l.b16 %v1285
        %v1526 = vunpack.c.h.b16 %v1285
        %v1527 = vunpack.c.l.b16 %v1286
        %v1528 = vunpack.c.h.b16 %v1286
        %v1529 = vunpack.c.l.b16 %v1287
        %v1530 = vunpack.c.h.b16 %v1287
        %v1531 = vunpack.c.l.b16 %v1288
        %v1532 = vunpack.c.h.b16 %v1288
        %v1533 = vpack.c.b16 %v1503, %v1501
        %v1534 = vpack.c.b16 %v1504, %v1502
        %v1535 = vpack.c.b16 %v1507, %v1505
        %v1536 = vpack.c.b16 %v1508, %v1506
        %v1537 = vpack.c.b16 %v1511, %v1509
        %v1538 = vpack.c.b16 %v1512, %v1510
        %v1539 = vpack.c.b16 %v1515, %v1513
        %v1540 = vpack.c.b16 %v1516, %v1514
        %v1541 = vpack.c.b16 %v1519, %v1517
        %v1542 = vpack.c.b16 %v1520, %v1518
        %v1543 = vpack.c.b16 %v1523, %v1521
        %v1544 = vpack.c.b16 %v1524, %v1522
        %v1545 = vpack.c.b16 %v1527, %v1525
        %v1546 = vpack.c.b16 %v1528, %v1526
        %v1547 = vpack.c.b16 %v1531, %v1529
        %v1548 = vpack.c.b16 %v1532, %v1530
        %1565 = vmatprep.subr.bf16.mxu0 %v1534
        %1566 = vmatpush1.bf16.msra.mxu0 %v1533
        %1567 = vmatprep.subr.bf16.mxu0 %v1536
        %1568 = vmatpush1.bf16.msra.mxu0 %v1535
        %1569 = vmatprep.subr.bf16.mxu0 %v1538
        %1570 = vmatpush1.bf16.msra.mxu0 %v1537
        %1571 = vmatprep.subr.bf16.mxu0 %v1540
        %1572 = vmatpush1.bf16.msra.mxu0 %v1539
        %1573 = vmatprep.subr.bf16.mxu0 %v1542
        %1574 = vmatpush1.bf16.msra.mxu0 %v1541
        %1575 = vmatprep.subr.bf16.mxu0 %v1544
        %1576 = vmatpush1.bf16.msra.mxu0 %v1543
        %1577 = vmatprep.subr.bf16.mxu0 %v1546
        %1578 = vmatpush1.bf16.msra.mxu0 %v1545
        %1579 = vmatprep.subr.bf16.mxu0 %v1548
        %1580 = vmatpush1.bf16.msra.mxu0 %v1547
        %1581 = vmatprep.subr.bf16.mxu0 0
        %1582 = vmatpush1.bf16.msra.mxu0 0
        %1583 = vmatprep.subr.bf16.mxu0 0
        %1584 = vmatpush1.bf16.msra.mxu0 0
        %1585 = vmatprep.subr.bf16.mxu0 0
        %1586 = vmatpush1.bf16.msra.mxu0 0
        %1587 = vmatprep.subr.bf16.mxu0 0
        %1588 = vmatpush1.bf16.msra.mxu0 0
        %1589 = vmatprep.subr.bf16.mxu0 0
        %1590 = vmatpush1.bf16.msra.mxu0 0
        %1591 = vmatprep.subr.bf16.mxu0 0
        %1592 = vmatpush1.bf16.msra.mxu0 0
        %1593 = vmatprep.subr.bf16.mxu0 0
        %1594 = vmatpush1.bf16.msra.mxu0 0
        %1595 = vmatprep.subr.bf16.mxu0 0
        %1596 = vmatpush1.bf16.msra.mxu0 0
        %1597 = vmatprep.mubr.bf16.mxu0 0
        %1598 = vmatmul.mubr.bf16.gmra.mrb[0].mxu0 %v1353
        %v1599 = vpop.f32.mrb[0].mxu0
        %v1600 = vadd.f32 %v1477, %v1599
        %v1601 = vpop.f32.mrb[0].mxu0
        %v1602 = vadd.f32 %v1479, %v1601
        %v1603 = vpop.f32.mrb[0].mxu0
        %v1604 = vadd.f32 %v1481, %v1603
        %v1605 = vpop.f32.mrb[0].mxu0
        %v1606 = vadd.f32 %v1483, %v1605
        %1607 = vdwg.mxu0
        %v1609 = vrot.slane %v1353, 1
        %v1627 = vunpack.c.l.b16 %v1305
        %v1628 = vunpack.c.h.b16 %v1305
        %v1629 = vunpack.c.l.b16 %v1306
        %v1630 = vunpack.c.h.b16 %v1306
        %v1631 = vunpack.c.l.b16 %v1307
        %v1632 = vunpack.c.h.b16 %v1307
        %v1633 = vunpack.c.l.b16 %v1308
        %v1634 = vunpack.c.h.b16 %v1308
        %v1635 = vunpack.c.l.b16 %v1309
        %v1636 = vunpack.c.h.b16 %v1309
        %v1637 = vunpack.c.l.b16 %v1310
        %v1638 = vunpack.c.h.b16 %v1310
        %v1639 = vunpack.c.l.b16 %v1311
        %v1640 = vunpack.c.h.b16 %v1311
        %v1641 = vunpack.c.l.b16 %v1312
        %v1642 = vunpack.c.h.b16 %v1312
        %v1643 = vunpack.c.l.b16 %v1313
        %v1644 = vunpack.c.h.b16 %v1313
        %v1645 = vunpack.c.l.b16 %v1314
        %v1646 = vunpack.c.h.b16 %v1314
        %v1647 = vunpack.c.l.b16 %v1315
        %v1648 = vunpack.c.h.b16 %v1315
        %v1649 = vunpack.c.l.b16 %v1316
        %v1650 = vunpack.c.h.b16 %v1316
        %v1651 = vunpack.c.l.b16 %v1317
        %v1652 = vunpack.c.h.b16 %v1317
        %v1653 = vunpack.c.l.b16 %v1318
        %v1654 = vunpack.c.h.b16 %v1318
        %v1655 = vunpack.c.l.b16 %v1319
        %v1656 = vunpack.c.h.b16 %v1319
        %v1657 = vunpack.c.l.b16 %v1320
        %v1658 = vunpack.c.h.b16 %v1320
        %v1659 = vpack.c.b16 %v1629, %v1627
        %v1660 = vpack.c.b16 %v1630, %v1628
        %v1661 = vpack.c.b16 %v1633, %v1631
        %v1662 = vpack.c.b16 %v1634, %v1632
        %v1663 = vpack.c.b16 %v1637, %v1635
        %v1664 = vpack.c.b16 %v1638, %v1636
        %v1665 = vpack.c.b16 %v1641, %v1639
        %v1666 = vpack.c.b16 %v1642, %v1640
        %v1667 = vpack.c.b16 %v1645, %v1643
        %v1668 = vpack.c.b16 %v1646, %v1644
        %v1669 = vpack.c.b16 %v1649, %v1647
        %v1670 = vpack.c.b16 %v1650, %v1648
        %v1671 = vpack.c.b16 %v1653, %v1651
        %v1672 = vpack.c.b16 %v1654, %v1652
        %v1673 = vpack.c.b16 %v1657, %v1655
        %v1674 = vpack.c.b16 %v1658, %v1656
        %1691 = vmatprep.subr.bf16.mxu0 %v1660
        %1692 = vmatpush1.bf16.msra.mxu0 %v1659
        %1693 = vmatprep.subr.bf16.mxu0 %v1662
        %1694 = vmatpush1.bf16.msra.mxu0 %v1661
        %1695 = vmatprep.subr.bf16.mxu0 %v1664
        %1696 = vmatpush1.bf16.msra.mxu0 %v1663
        %1697 = vmatprep.subr.bf16.mxu0 %v1666
        %1698 = vmatpush1.bf16.msra.mxu0 %v1665
        %1699 = vmatprep.subr.bf16.mxu0 %v1668
        %1700 = vmatpush1.bf16.msra.mxu0 %v1667
        %1701 = vmatprep.subr.bf16.mxu0 %v1670
        %1702 = vmatpush1.bf16.msra.mxu0 %v1669
        %1703 = vmatprep.subr.bf16.mxu0 %v1672
        %1704 = vmatpush1.bf16.msra.mxu0 %v1671
        %1705 = vmatprep.subr.bf16.mxu0 %v1674
        %1706 = vmatpush1.bf16.msra.mxu0 %v1673
        %1707 = vmatprep.subr.bf16.mxu0 0
        %1708 = vmatpush1.bf16.msra.mxu0 0
        %1709 = vmatprep.subr.bf16.mxu0 0
        %1710 = vmatpush1.bf16.msra.mxu0 0
        %1711 = vmatprep.subr.bf16.mxu0 0
        %1712 = vmatpush1.bf16.msra.mxu0 0
        %1713 = vmatprep.subr.bf16.mxu0 0
        %1714 = vmatpush1.bf16.msra.mxu0 0
        %1715 = vmatprep.subr.bf16.mxu0 0
        %1716 = vmatpush1.bf16.msra.mxu0 0
        %1717 = vmatprep.subr.bf16.mxu0 0
        %1718 = vmatpush1.bf16.msra.mxu0 0
        %1719 = vmatprep.subr.bf16.mxu0 0
        %1720 = vmatpush1.bf16.msra.mxu0 0
        %1721 = vmatprep.subr.bf16.mxu0 0
        %1722 = vmatpush1.bf16.msra.mxu0 0
        %1723 = vmatprep.mubr.bf16.mxu0 0
        %1724 = vmatmul.mubr.bf16.gmra.mrb[0].mxu0 %v1609
        %v1725 = vpop.f32.mrb[0].mxu0
        %v1726 = vadd.f32 0.0, %v1725
        %v1727 = vpop.f32.mrb[0].mxu0
        %v1728 = vadd.f32 0.0, %v1727
        %v1729 = vpop.f32.mrb[0].mxu0
        %v1730 = vadd.f32 0.0, %v1729
        %v1731 = vpop.f32.mrb[0].mxu0
        %v1732 = vadd.f32 0.0, %v1731
        %1733 = vdwg.mxu0
        %v1734 = vadd.f32 %v1600, %v1726
        %v1735 = vadd.f32 %v1602, %v1728
        %v1736 = vadd.f32 %v1604, %v1730
        %v1737 = vadd.f32 %v1606, %v1732
        %v1738 = vrot.slane %v1355, 1
        %v1739 = vrot.slane %v1357, 2
        %v1740 = vor.u32 %v1738, %v1739
        %v1758 = vunpack.c.l.b16 %v1321
        %v1759 = vunpack.c.h.b16 %v1321
        %v1760 = vunpack.c.l.b16 %v1322
        %v1761 = vunpack.c.h.b16 %v1322
        %v1762 = vunpack.c.l.b16 %v1323
        %v1763 = vunpack.c.h.b16 %v1323
        %v1764 = vunpack.c.l.b16 %v1324
        %v1765 = vunpack.c.h.b16 %v1324
        %v1766 = vunpack.c.l.b16 %v1325
        %v1767 = vunpack.c.h.b16 %v1325
        %v1768 = vunpack.c.l.b16 %v1326
        %v1769 = vunpack.c.h.b16 %v1326
        %v1770 = vunpack.c.l.b16 %v1327
        %v1771 = vunpack.c.h.b16 %v1327
        %v1772 = vunpack.c.l.b16 %v1328
        %v1773 = vunpack.c.h.b16 %v1328
        %v1774 = vunpack.c.l.b16 %v1329
        %v1775 = vunpack.c.h.b16 %v1329
        %v1776 = vunpack.c.l.b16 %v1330
        %v1777 = vunpack.c.h.b16 %v1330
        %v1778 = vunpack.c.l.b16 %v1331
        %v1779 = vunpack.c.h.b16 %v1331
        %v1780 = vunpack.c.l.b16 %v1332
        %v1781 = vunpack.c.h.b16 %v1332
        %v1782 = vunpack.c.l.b16 %v1333
        %v1783 = vunpack.c.h.b16 %v1333
        %v1784 = vunpack.c.l.b16 %v1334
        %v1785 = vunpack.c.h.b16 %v1334
        %v1786 = vunpack.c.l.b16 %v1335
        %v1787 = vunpack.c.h.b16 %v1335
        %v1788 = vunpack.c.l.b16 %v1336
        %v1789 = vunpack.c.h.b16 %v1336
        %v1790 = vpack.c.b16 %v1760, %v1758
        %v1791 = vpack.c.b16 %v1761, %v1759
        %v1792 = vpack.c.b16 %v1764, %v1762
        %v1793 = vpack.c.b16 %v1765, %v1763
        %v1794 = vpack.c.b16 %v1768, %v1766
        %v1795 = vpack.c.b16 %v1769, %v1767
        %v1796 = vpack.c.b16 %v1772, %v1770
        %v1797 = vpack.c.b16 %v1773, %v1771
        %v1798 = vpack.c.b16 %v1776, %v1774
        %v1799 = vpack.c.b16 %v1777, %v1775
        %v1800 = vpack.c.b16 %v1780, %v1778
        %v1801 = vpack.c.b16 %v1781, %v1779
        %v1802 = vpack.c.b16 %v1784, %v1782
        %v1803 = vpack.c.b16 %v1785, %v1783
        %v1804 = vpack.c.b16 %v1788, %v1786
        %v1805 = vpack.c.b16 %v1789, %v1787
        %1822 = vmatprep.subr.bf16.mxu0 %v1791
        %1823 = vmatpush1.bf16.msra.mxu0 %v1790
        %1824 = vmatprep.subr.bf16.mxu0 %v1793
        %1825 = vmatpush1.bf16.msra.mxu0 %v1792
        %1826 = vmatprep.subr.bf16.mxu0 %v1795
        %1827 = vmatpush1.bf16.msra.mxu0 %v1794
        %1828 = vmatprep.subr.bf16.mxu0 %v1797
        %1829 = vmatpush1.bf16.msra.mxu0 %v1796
        %1830 = vmatprep.subr.bf16.mxu0 %v1799
        %1831 = vmatpush1.bf16.msra.mxu0 %v1798
        %1832 = vmatprep.subr.bf16.mxu0 %v1801
        %1833 = vmatpush1.bf16.msra.mxu0 %v1800
        %1834 = vmatprep.subr.bf16.mxu0 %v1803
        %1835 = vmatpush1.bf16.msra.mxu0 %v1802
        %1836 = vmatprep.subr.bf16.mxu0 %v1805
        %1837 = vmatpush1.bf16.msra.mxu0 %v1804
        %1838 = vmatprep.subr.bf16.mxu0 0
        %1839 = vmatpush1.bf16.msra.mxu0 0
        %1840 = vmatprep.subr.bf16.mxu0 0
        %1841 = vmatpush1.bf16.msra.mxu0 0
        %1842 = vmatprep.subr.bf16.mxu0 0
        %1843 = vmatpush1.bf16.msra.mxu0 0
        %1844 = vmatprep.subr.bf16.mxu0 0
        %1845 = vmatpush1.bf16.msra.mxu0 0
        %1846 = vmatprep.subr.bf16.mxu0 0
        %1847 = vmatpush1.bf16.msra.mxu0 0
        %1848 = vmatprep.subr.bf16.mxu0 0
        %1849 = vmatpush1.bf16.msra.mxu0 0
        %1850 = vmatprep.subr.bf16.mxu0 0
        %1851 = vmatpush1.bf16.msra.mxu0 0
        %1852 = vmatprep.subr.bf16.mxu0 0
        %1853 = vmatpush1.bf16.msra.mxu0 0
        %1854 = vmatprep.mubr.bf16.mxu0 0
        %1855 = vmatmul.mubr.bf16.gmra.mrb[0].mxu0 %v1740
        %v1856 = vpop.f32.mrb[0].mxu0
        %v1857 = vadd.f32 0.0, %v1856
        %v1858 = vpop.f32.mrb[0].mxu0
        %v1859 = vadd.f32 0.0, %v1858
        %v1860 = vpop.f32.mrb[0].mxu0
        %v1861 = vadd.f32 0.0, %v1860
        %v1862 = vpop.f32.mrb[0].mxu0
        %v1863 = vadd.f32 0.0, %v1862
        %1864 = vdwg.mxu0
        %v1865 = vadd.f32 %v1734, %v1857
        %v1866 = vadd.f32 %v1735, %v1859
        %v1867 = vadd.f32 %v1736, %v1861
        %v1868 = vadd.f32 %v1737, %v1863
        %v1869 = vrot.slane %v1353, 2
        %v1887 = vunpack.c.l.b16 %v1337
        %v1888 = vunpack.c.h.b16 %v1337
        %v1889 = vunpack.c.l.b16 %v1338
        %v1890 = vunpack.c.h.b16 %v1338
        %v1891 = vunpack.c.l.b16 %v1339
        %v1892 = vunpack.c.h.b16 %v1339
        %v1893 = vunpack.c.l.b16 %v1340
        %v1894 = vunpack.c.h.b16 %v1340
        %v1895 = vunpack.c.l.b16 %v1341
        %v1896 = vunpack.c.h.b16 %v1341
        %v1897 = vunpack.c.l.b16 %v1342
        %v1898 = vunpack.c.h.b16 %v1342
        %v1899 = vunpack.c.l.b16 %v1343
        %v1900 = vunpack.c.h.b16 %v1343
        %v1901 = vunpack.c.l.b16 %v1344
        %v1902 = vunpack.c.h.b16 %v1344
        %v1903 = vunpack.c.l.b16 %v1345
        %v1904 = vunpack.c.h.b16 %v1345
        %v1905 = vunpack.c.l.b16 %v1346
        %v1906 = vunpack.c.h.b16 %v1346
        %v1907 = vunpack.c.l.b16 %v1347
        %v1908 = vunpack.c.h.b16 %v1347
        %v1909 = vunpack.c.l.b16 %v1348
        %v1910 = vunpack.c.h.b16 %v1348
        %v1911 = vunpack.c.l.b16 %v1349
        %v1912 = vunpack.c.h.b16 %v1349
        %v1913 = vunpack.c.l.b16 %v1350
        %v1914 = vunpack.c.h.b16 %v1350
        %v1915 = vunpack.c.l.b16 %v1351
        %v1916 = vunpack.c.h.b16 %v1351
        %v1917 = vunpack.c.l.b16 %v1352
        %v1918 = vunpack.c.h.b16 %v1352
        %v1919 = vpack.c.b16 %v1889, %v1887
        %v1920 = vpack.c.b16 %v1890, %v1888
        %v1921 = vpack.c.b16 %v1893, %v1891
        %v1922 = vpack.c.b16 %v1894, %v1892
        %v1923 = vpack.c.b16 %v1897, %v1895
        %v1924 = vpack.c.b16 %v1898, %v1896
        %v1925 = vpack.c.b16 %v1901, %v1899
        %v1926 = vpack.c.b16 %v1902, %v1900
        %v1927 = vpack.c.b16 %v1905, %v1903
        %v1928 = vpack.c.b16 %v1906, %v1904
        %v1929 = vpack.c.b16 %v1909, %v1907
        %v1930 = vpack.c.b16 %v1910, %v1908
        %v1931 = vpack.c.b16 %v1913, %v1911
        %v1932 = vpack.c.b16 %v1914, %v1912
        %v1933 = vpack.c.b16 %v1917, %v1915
        %v1934 = vpack.c.b16 %v1918, %v1916
        %1951 = vmatprep.subr.bf16.mxu0 %v1920
        %1952 = vmatpush1.bf16.msra.mxu0 %v1919
        %1953 = vmatprep.subr.bf16.mxu0 %v1922
        %1954 = vmatpush1.bf16.msra.mxu0 %v1921
        %1955 = vmatprep.subr.bf16.mxu0 %v1924
        %1956 = vmatpush1.bf16.msra.mxu0 %v1923
        %1957 = vmatprep.subr.bf16.mxu0 %v1926
        %1958 = vmatpush1.bf16.msra.mxu0 %v1925
        %1959 = vmatprep.subr.bf16.mxu0 %v1928
        %1960 = vmatpush1.bf16.msra.mxu0 %v1927
        %1961 = vmatprep.subr.bf16.mxu0 %v1930
        %1962 = vmatpush1.bf16.msra.mxu0 %v1929
        %1963 = vmatprep.subr.bf16.mxu0 %v1932
        %1964 = vmatpush1.bf16.msra.mxu0 %v1931
        %1965 = vmatprep.subr.bf16.mxu0 %v1934
        %1966 = vmatpush1.bf16.msra.mxu0 %v1933
        %1967 = vmatprep.subr.bf16.mxu0 0
        %1968 = vmatpush1.bf16.msra.mxu0 0
        %1969 = vmatprep.subr.bf16.mxu0 0
        %1970 = vmatpush1.bf16.msra.mxu0 0
        %1971 = vmatprep.subr.bf16.mxu0 0
        %1972 = vmatpush1.bf16.msra.mxu0 0
        %1973 = vmatprep.subr.bf16.mxu0 0
        %1974 = vmatpush1.bf16.msra.mxu0 0
        %1975 = vmatprep.subr.bf16.mxu0 0
        %1976 = vmatpush1.bf16.msra.mxu0 0
        %1977 = vmatprep.subr.bf16.mxu0 0
        %1978 = vmatpush1.bf16.msra.mxu0 0
        %1979 = vmatprep.subr.bf16.mxu0 0
        %1980 = vmatpush1.bf16.msra.mxu0 0
        %1981 = vmatprep.subr.bf16.mxu0 0
        %1982 = vmatpush1.bf16.msra.mxu0 0
        %1983 = vmatprep.mubr.bf16.mxu0 0
        %1984 = vmatmul.mubr.bf16.gmra.mrb[0].mxu0 %v1869
        %v1985 = vpop.f32.mrb[0].mxu0
        %v1986 = vadd.f32 0.0, %v1985
        %v1987 = vpop.f32.mrb[0].mxu0
        %v1988 = vadd.f32 0.0, %v1987
        %v1989 = vpop.f32.mrb[0].mxu0
        %v1990 = vadd.f32 0.0, %v1989
        %v1991 = vpop.f32.mrb[0].mxu0
        %v1992 = vadd.f32 0.0, %v1991
        %1993 = vdwg.mxu0
        %v1994 = vadd.f32 %v1865, %v1986
        %v1995 = vadd.f32 %v1866, %v1988
        %v1996 = vadd.f32 %v1867, %v1990
        %v1997 = vadd.f32 %v1868, %v1992
        %v1998 = vld [vmem:[%s6] sm:$0x3]
        %v2000 = vlaneseq
        %v2001 = vshrl.u32 %v2000, 7
        %v2002 = vsub.s32 0, %v2001
        %v2003 = vrot.slane %v1998, %v2002
        %v2004 = vlaneseq
        %v2005 = vshrl.u32 %v2004, 7
        %v2006 = vsub.s32 1, %v2005
        %v2007 = vrot.slane %v1998, %v2006
        %v2010 = vadd.f32 %v1994, %v2003
        %v2011 = vadd.f32 %v1995, %v2007
        %v2012 = vadd.f32 %v1996, %v2003
        %v2013 = vadd.f32 %v1997, %v2007
        %v2014 = vmax.f32 %v2010, 0.0
        %v2015 = vmax.f32 %v2011, 0.0
        %v2016 = vmax.f32 %v2012, 0.0
        %v2017 = vmax.f32 %v2013, 0.0
        %v2018 = vld [vmem:[%s7] sm:$0xf]
        %v2019 = vld [vmem:[%s7 + $0x4] sm:$0xf]
        %v2020 = vpack.c.bf16 %v2016, %v2014
        %v2021 = vpack.c.bf16 %v2017, %v2015
        %v2024 = vunpack.c.l.b16 %v2018
        %v2025 = vunpack.c.l.b16 %v2019
        %v2026 = vpack.c.b16 %v2025, %v2024
        %vm2027 = vcmask 80896
        %v2029 = vsel %vm2027, %v2026, 0
        %vm2031 = vcmask 1044480
        %v2033 = vsel %vm2031, %v2020, 0
        %v2036 = vsel %vm2031, %v2021, 0
        %2038 = vmatprep.subr.bf16.mxu0 %v2036
        %2039 = vmatpush1.bf16.msra.mxu0 %v2033
        %2040 = vmatprep.subr.bf16.mxu0 0
        %2041 = vmatpush1.bf16.msra.mxu0 0
        %2042 = vmatprep.subr.bf16.mxu0 0
        %2043 = vmatpush1.bf16.msra.mxu0 0
        %2044 = vmatprep.subr.bf16.mxu0 0
        %2045 = vmatpush1.bf16.msra.mxu0 0
        %2046 = vmatprep.subr.bf16.mxu0 0
        %2047 = vmatpush1.bf16.msra.mxu0 0
        %2048 = vmatprep.subr.bf16.mxu0 0
        %2049 = vmatpush1.bf16.msra.mxu0 0
        %2050 = vmatprep.subr.bf16.mxu0 0
        %2051 = vmatpush1.bf16.msra.mxu0 0
        %2052 = vmatprep.subr.bf16.mxu0 0
        %2053 = vmatpush1.bf16.msra.mxu0 0
        %2054 = vmatprep.subr.bf16.mxu0 0
        %2055 = vmatpush1.bf16.msra.mxu0 0
        %2056 = vmatprep.subr.bf16.mxu0 0
        %2057 = vmatpush1.bf16.msra.mxu0 0
        %2058 = vmatprep.subr.bf16.mxu0 0
        %2059 = vmatpush1.bf16.msra.mxu0 0
        %2060 = vmatprep.subr.bf16.mxu0 0
        %2061 = vmatpush1.bf16.msra.mxu0 0
        %2062 = vmatprep.subr.bf16.mxu0 0
        %2063 = vmatpush1.bf16.msra.mxu0 0
        %2064 = vmatprep.subr.bf16.mxu0 0
        %2065 = vmatpush1.bf16.msra.mxu0 0
        %2066 = vmatprep.subr.bf16.mxu0 0
        %2067 = vmatpush1.bf16.msra.mxu0 0
        %2068 = vmatprep.subr.bf16.mxu0 0
        %2069 = vmatpush1.bf16.msra.mxu0 0
        %2070 = vmatprep.mubr.bf16.mxu0 0
        %2071 = vmatmul.mubr.bf16.gmra.mrb[0].mxu0 %v2029
        %v2072 = vpop.f32.mrb[0].mxu0
        %v2073 = vadd.f32 0.0, %v2072
        %v2074 = vpop.f32.mrb[0].mxu0
        %v2075 = vadd.f32 0.0, %v2074
        %v2076 = vpop.f32.mrb[0].mxu0
        %v2077 = vadd.f32 0.0, %v2076
        %v2078 = vpop.f32.mrb[0].mxu0
        %v2079 = vadd.f32 0.0, %v2078
        %2080 = vdwg.mxu0
        %v2081 = vmax.f32 %v2073, %v2077
        %v2082 = vmax.f32 %v2075, %v2079
        %v2083 = vld [vmem:[%s8] sm:$0xff]
        %v2084 = vld [vmem:[%s8 + $0x8] sm:$0xff]
        %v2085 = vld [vmem:[%s8 + $0x10] sm:$0xff]
        %v2086 = vld [vmem:[%s8 + $0x18] sm:$0xff]
        %v2087 = vld [vmem:[%s8 + $0x20] sm:$0xff]
        %v2088 = vld [vmem:[%s8 + $0x28] sm:$0xff]
        %v2089 = vld [vmem:[%s8 + $0x30] sm:$0xff]
        %v2090 = vld [vmem:[%s8 + $0x38] sm:$0xff]
        %v2091 = vld [vmem:[%s8 + $0x40] sm:$0xff]
        %v2092 = vld [vmem:[%s8 + $0x48] sm:$0xff]
        %v2093 = vld [vmem:[%s8 + $0x50] sm:$0xff]
        %v2094 = vld [vmem:[%s8 + $0x58] sm:$0xff]
        %v2095 = vld [vmem:[%s8 + $0x60] sm:$0xff]
        %v2096 = vld [vmem:[%s8 + $0x68] sm:$0xff]
        %v2097 = vld [vmem:[%s8 + $0x70] sm:$0xff]
        %v2098 = vld [vmem:[%s8 + $0x78] sm:$0xff]
        %v2099 = vld [vmem:[%s8 + $0x80] sm:$0xff]
        %v2100 = vld [vmem:[%s8 + $0x88] sm:$0xff]
        %v2101 = vld [vmem:[%s8 + $0x90] sm:$0xff]
        %v2102 = vld [vmem:[%s8 + $0x98] sm:$0xff]
        %v2103 = vpack.c.bf16 %v2081, %v2081
        %v2104 = vpack.c.bf16 %v2082, %v2082
        %v2125 = vunpack.c.l.b16 %v2083
        %v2126 = vunpack.c.h.b16 %v2083
        %v2127 = vunpack.c.l.b16 %v2084
        %v2128 = vunpack.c.h.b16 %v2084
        %v2129 = vunpack.c.l.b16 %v2085
        %v2130 = vunpack.c.h.b16 %v2085
        %v2131 = vunpack.c.l.b16 %v2086
        %v2132 = vunpack.c.h.b16 %v2086
        %v2133 = vunpack.c.l.b16 %v2087
        %v2134 = vunpack.c.h.b16 %v2087
        %v2135 = vunpack.c.l.b16 %v2088
        %v2136 = vunpack.c.h.b16 %v2088
        %v2137 = vunpack.c.l.b16 %v2089
        %v2138 = vunpack.c.h.b16 %v2089
        %v2139 = vunpack.c.l.b16 %v2090
        %v2140 = vunpack.c.h.b16 %v2090
        %v2141 = vunpack.c.l.b16 %v2091
        %v2142 = vunpack.c.h.b16 %v2091
        %v2143 = vunpack.c.l.b16 %v2092
        %v2144 = vunpack.c.h.b16 %v2092
        %v2145 = vunpack.c.l.b16 %v2093
        %v2146 = vunpack.c.h.b16 %v2093
        %v2147 = vunpack.c.l.b16 %v2094
        %v2148 = vunpack.c.h.b16 %v2094
        %v2149 = vunpack.c.l.b16 %v2095
        %v2150 = vunpack.c.h.b16 %v2095
        %v2151 = vunpack.c.l.b16 %v2096
        %v2152 = vunpack.c.h.b16 %v2096
        %v2153 = vunpack.c.l.b16 %v2097
        %v2154 = vunpack.c.h.b16 %v2097
        %v2155 = vunpack.c.l.b16 %v2098
        %v2156 = vunpack.c.h.b16 %v2098
        %v2157 = vunpack.c.l.b16 %v2099
        %v2158 = vunpack.c.h.b16 %v2099
        %v2159 = vunpack.c.l.b16 %v2100
        %v2160 = vunpack.c.h.b16 %v2100
        %v2161 = vunpack.c.l.b16 %v2101
        %v2162 = vunpack.c.h.b16 %v2101
        %v2163 = vunpack.c.l.b16 %v2102
        %v2164 = vunpack.c.h.b16 %v2102
        %v2165 = vpack.c.b16 %v2127, %v2125
        %v2166 = vpack.c.b16 %v2128, %v2126
        %v2167 = vpack.c.b16 %v2131, %v2129
        %v2168 = vpack.c.b16 %v2132, %v2130
        %v2169 = vpack.c.b16 %v2135, %v2133
        %v2170 = vpack.c.b16 %v2136, %v2134
        %v2171 = vpack.c.b16 %v2139, %v2137
        %v2172 = vpack.c.b16 %v2140, %v2138
        %v2173 = vpack.c.b16 %v2143, %v2141
        %v2174 = vpack.c.b16 %v2144, %v2142
        %v2175 = vpack.c.b16 %v2147, %v2145
        %v2176 = vpack.c.b16 %v2148, %v2146
        %v2177 = vpack.c.b16 %v2151, %v2149
        %v2178 = vpack.c.b16 %v2152, %v2150
        %v2179 = vpack.c.b16 %v2155, %v2153
        %v2180 = vpack.c.b16 %v2156, %v2154
        %v2181 = vpack.c.b16 %v2159, %v2157
        %v2182 = vpack.c.b16 %v2160, %v2158
        %v2183 = vpack.c.b16 %v2163, %v2161
        %v2184 = vpack.c.b16 %v2164, %v2162
        %v2206 = vsel %vm556, %v2104, 0
        %2208 = vmatprep.subr.bf16.mxu0 %v2166
        %2209 = vmatpush1.bf16.msra.mxu0 %v2165
        %2210 = vmatprep.subr.bf16.mxu0 %v2168
        %2211 = vmatpush1.bf16.msra.mxu0 %v2167
        %2212 = vmatprep.subr.bf16.mxu0 %v2170
        %2213 = vmatpush1.bf16.msra.mxu0 %v2169
        %2214 = vmatprep.subr.bf16.mxu0 %v2172
        %2215 = vmatpush1.bf16.msra.mxu0 %v2171
        %2216 = vmatprep.subr.bf16.mxu0 %v2174
        %2217 = vmatpush1.bf16.msra.mxu0 %v2173
        %2218 = vmatprep.subr.bf16.mxu0 %v2176
        %2219 = vmatpush1.bf16.msra.mxu0 %v2175
        %2220 = vmatprep.subr.bf16.mxu0 %v2178
        %2221 = vmatpush1.bf16.msra.mxu0 %v2177
        %2222 = vmatprep.subr.bf16.mxu0 %v2180
        %2223 = vmatpush1.bf16.msra.mxu0 %v2179
        %2224 = vmatprep.subr.bf16.mxu0 %v2182
        %2225 = vmatpush1.bf16.msra.mxu0 %v2181
        %2226 = vmatprep.subr.bf16.mxu0 %v2184
        %2227 = vmatpush1.bf16.msra.mxu0 %v2183
        %2228 = vmatprep.subr.bf16.mxu0 0
        %2229 = vmatpush1.bf16.msra.mxu0 0
        %2230 = vmatprep.subr.bf16.mxu0 0
        %2231 = vmatpush1.bf16.msra.mxu0 0
        %2232 = vmatprep.subr.bf16.mxu0 0
        %2233 = vmatpush1.bf16.msra.mxu0 0
        %2234 = vmatprep.subr.bf16.mxu0 0
        %2235 = vmatpush1.bf16.msra.mxu0 0
        %2236 = vmatprep.subr.bf16.mxu0 0
        %2237 = vmatpush1.bf16.msra.mxu0 0
        %2238 = vmatprep.subr.bf16.mxu0 0
        %2239 = vmatpush1.bf16.msra.mxu0 0
        %2240 = vmatprep.mubr.bf16.mxu0 %v2206
        %2241 = vmatmul.mubr.bf16.gmra.mrb[0].mxu0 %v2103
        %v2242 = vpop.f32.mrb[0].mxu0
        %v2243 = vadd.f32 0.0, %v2242
        %v2244 = vpop.f32.mrb[0].mxu0
        %v2245 = vadd.f32 0.0, %v2244
        %v2246 = vpop.f32.mrb[0].mxu0
        %v2247 = vpop.f32.mrb[0].mxu0
        %2248 = vdwg.mxu0
        %v2249 = vmax.f32 %v2243, %v2245
        %v2250 = vld [vmem:[%s9] sm:$0xf]
        %v2251 = vld [vmem:[%s9 + $0x4] sm:$0xf]
        %v2252 = vld [vmem:[%s9 + $0x8] sm:$0xf]
        %v2253 = vld [vmem:[%s9 + $0xc] sm:$0xf]
        %v2254 = vld [vmem:[%s9 + $0x10] sm:$0xf]
        %v2255 = vld [vmem:[%s9 + $0x14] sm:$0xf]
        %v2256 = vld [vmem:[%s9 + $0x18] sm:$0xf]
        %v2257 = vld [vmem:[%s9 + $0x1c] sm:$0xf]
        %v2258 = vld [vmem:[%s9 + $0x20] sm:$0xf]
        %v2259 = vld [vmem:[%s9 + $0x24] sm:$0xf]
        %v2260 = vld [vmem:[%s9 + $0x28] sm:$0xf]
        %v2261 = vld [vmem:[%s9 + $0x2c] sm:$0xf]
        %v2262 = vld [vmem:[%s9 + $0x30] sm:$0xf]
        %v2263 = vld [vmem:[%s9 + $0x34] sm:$0xf]
        %v2264 = vld [vmem:[%s9 + $0x38] sm:$0xf]
        %v2265 = vld [vmem:[%s9 + $0x3c] sm:$0xf]
        %v2266 = vld [vmem:[%s9 + $0x40] sm:$0xf]
        %v2267 = vld [vmem:[%s9 + $0x44] sm:$0xf]
        %v2268 = vld [vmem:[%s9 + $0x48] sm:$0xf]
        %v2269 = vld [vmem:[%s9 + $0x4c] sm:$0xf]
        %v2270 = vld [vmem:[%s9 + $0x50] sm:$0xf]
        %v2271 = vld [vmem:[%s9 + $0x54] sm:$0xf]
        %v2272 = vld [vmem:[%s9 + $0x58] sm:$0xf]
        %v2273 = vld [vmem:[%s9 + $0x5c] sm:$0xf]
        %v2274 = vld [vmem:[%s9 + $0x60] sm:$0xf]
        %v2275 = vld [vmem:[%s9 + $0x64] sm:$0xf]
        %v2276 = vld [vmem:[%s9 + $0x68] sm:$0xf]
        %v2277 = vld [vmem:[%s9 + $0x6c] sm:$0xf]
        %v2278 = vld [vmem:[%s9 + $0x70] sm:$0xf]
        %v2279 = vld [vmem:[%s9 + $0x74] sm:$0xf]
        %v2280 = vld [vmem:[%s9 + $0x78] sm:$0xf]
        %v2281 = vld [vmem:[%s9 + $0x7c] sm:$0xf]
        %v2282 = vld [vmem:[%s9 + $0x80] sm:$0xf]
        %v2283 = vld [vmem:[%s9 + $0x84] sm:$0xf]
        %v2284 = vld [vmem:[%s9 + $0x88] sm:$0xf]
        %v2285 = vld [vmem:[%s9 + $0x8c] sm:$0xf]
        %v2286 = vld [vmem:[%s9 + $0x90] sm:$0xf]
        %v2287 = vld [vmem:[%s9 + $0x94] sm:$0xf]
        %v2288 = vld [vmem:[%s9 + $0x98] sm:$0xf]
        %v2289 = vld [vmem:[%s9 + $0x9c] sm:$0xf]
        %v2290 = vld [vmem:[%s9 + $0xa0] sm:$0xf]
        %v2291 = vld [vmem:[%s9 + $0xa4] sm:$0xf]
        %v2292 = vld [vmem:[%s9 + $0xa8] sm:$0xf]
        %v2293 = vld [vmem:[%s9 + $0xac] sm:$0xf]
        %v2294 = vld [vmem:[%s9 + $0xb0] sm:$0xf]
        %v2295 = vld [vmem:[%s9 + $0xb4] sm:$0xf]
        %v2296 = vld [vmem:[%s9 + $0xb8] sm:$0xf]
        %v2297 = vld [vmem:[%s9 + $0xbc] sm:$0xf]
        %v2298 = vld [vmem:[%s9 + $0xc0] sm:$0xf]
        %v2299 = vld [vmem:[%s9 + $0xc4] sm:$0xf]
        %v2300 = vld [vmem:[%s9 + $0xc8] sm:$0xf]
        %v2301 = vld [vmem:[%s9 + $0xcc] sm:$0xf]
        %v2302 = vld [vmem:[%s9 + $0xd0] sm:$0xf]
        %v2303 = vld [vmem:[%s9 + $0xd4] sm:$0xf]
        %v2304 = vld [vmem:[%s9 + $0xd8] sm:$0xf]
        %v2305 = vld [vmem:[%s9 + $0xdc] sm:$0xf]
        %v2306 = vld [vmem:[%s9 + $0xe0] sm:$0xf]
        %v2307 = vld [vmem:[%s9 + $0xe4] sm:$0xf]
        %v2308 = vld [vmem:[%s9 + $0xe8] sm:$0xf]
        %v2309 = vld [vmem:[%s9 + $0xec] sm:$0xf]
        %v2310 = vld [vmem:[%s9 + $0xf0] sm:$0xf]
        %v2311 = vld [vmem:[%s9 + $0xf4] sm:$0xf]
        %v2312 = vld [vmem:[%s9 + $0xf8] sm:$0xf]
        %v2313 = vld [vmem:[%s9 + $0xfc] sm:$0xf]
        %v2314 = vld [vmem:[%s9 + $0x100] sm:$0xf]
        %v2315 = vld [vmem:[%s9 + $0x104] sm:$0xf]
        %v2316 = vld [vmem:[%s9 + $0x108] sm:$0xf]
        %v2317 = vld [vmem:[%s9 + $0x10c] sm:$0xf]
        %v2318 = vld [vmem:[%s9 + $0x110] sm:$0xf]
        %v2319 = vld [vmem:[%s9 + $0x114] sm:$0xf]
        %v2320 = vld [vmem:[%s9 + $0x118] sm:$0xf]
        %v2321 = vld [vmem:[%s9 + $0x11c] sm:$0xf]
        %v2322 = vld [vmem:[%s9 + $0x120] sm:$0xf]
        %v2323 = vld [vmem:[%s9 + $0x124] sm:$0xf]
        %v2324 = vld [vmem:[%s9 + $0x128] sm:$0xf]
        %v2325 = vld [vmem:[%s9 + $0x12c] sm:$0xf]
        %v2326 = vld [vmem:[%s9 + $0x130] sm:$0xf]
        %v2327 = vld [vmem:[%s9 + $0x134] sm:$0xf]
        %v2328 = vld [vmem:[%s9 + $0x138] sm:$0xf]
        %v2329 = vld [vmem:[%s9 + $0x13c] sm:$0xf]
        %v2330 = vpack.c.bf16 %v2249, %v2249
        %v2332 = vshrl.u32 %v2330, 16
        %v2351 = vunpack.c.l.b16 %v2266
        %v2352 = vunpack.c.l.b16 %v2267
        %v2353 = vunpack.c.l.b16 %v2268
        %v2354 = vunpack.c.l.b16 %v2269
        %v2355 = vunpack.c.l.b16 %v2270
        %v2356 = vunpack.c.l.b16 %v2271
        %v2357 = vunpack.c.l.b16 %v2272
        %v2358 = vunpack.c.l.b16 %v2273
        %v2359 = vunpack.c.l.b16 %v2274
        %v2360 = vunpack.c.l.b16 %v2275
        %v2361 = vunpack.c.l.b16 %v2276
        %v2362 = vunpack.c.l.b16 %v2277
        %v2363 = vunpack.c.l.b16 %v2278
        %v2364 = vunpack.c.l.b16 %v2279
        %v2365 = vunpack.c.l.b16 %v2280
        %v2366 = vunpack.c.l.b16 %v2281
        %v2367 = vpack.c.b16 %v2352, %v2351
        %v2368 = vpack.c.b16 %v2354, %v2353
        %v2369 = vpack.c.b16 %v2356, %v2355
        %v2370 = vpack.c.b16 %v2358, %v2357
        %v2371 = vpack.c.b16 %v2360, %v2359
        %v2372 = vpack.c.b16 %v2362, %v2361
        %v2373 = vpack.c.b16 %v2364, %v2363
        %v2374 = vpack.c.b16 %v2366, %v2365
        %2383 = vmatprep.subr.bf16.mxu0 0
        %2384 = vmatpush1.bf16.msra.mxu0 %v2367
        %2385 = vmatprep.subr.bf16.mxu0 0
        %2386 = vmatpush1.bf16.msra.mxu0 %v2368
        %2387 = vmatprep.subr.bf16.mxu0 0
        %2388 = vmatpush1.bf16.msra.mxu0 %v2369
        %2389 = vmatprep.subr.bf16.mxu0 0
        %2390 = vmatpush1.bf16.msra.mxu0 %v2370
        %2391 = vmatprep.subr.bf16.mxu0 0
        %2392 = vmatpush1.bf16.msra.mxu0 %v2371
        %2393 = vmatprep.subr.bf16.mxu0 0
        %2394 = vmatpush1.bf16.msra.mxu0 %v2372
        %2395 = vmatprep.subr.bf16.mxu0 0
        %2396 = vmatpush1.bf16.msra.mxu0 %v2373
        %2397 = vmatprep.subr.bf16.mxu0 0
        %2398 = vmatpush1.bf16.msra.mxu0 %v2374
        %2399 = vmatprep.subr.bf16.mxu0 0
        %2400 = vmatpush1.bf16.msra.mxu0 0
        %2401 = vmatprep.subr.bf16.mxu0 0
        %2402 = vmatpush1.bf16.msra.mxu0 0
        %2403 = vmatprep.subr.bf16.mxu0 0
        %2404 = vmatpush1.bf16.msra.mxu0 0
        %2405 = vmatprep.subr.bf16.mxu0 0
        %2406 = vmatpush1.bf16.msra.mxu0 0
        %2407 = vmatprep.subr.bf16.mxu0 0
        %2408 = vmatpush1.bf16.msra.mxu0 0
        %2409 = vmatprep.subr.bf16.mxu0 0
        %2410 = vmatpush1.bf16.msra.mxu0 0
        %2411 = vmatprep.subr.bf16.mxu0 0
        %2412 = vmatpush1.bf16.msra.mxu0 0
        %2413 = vmatprep.subr.bf16.mxu0 0
        %2414 = vmatpush1.bf16.msra.mxu0 0
        %2415 = vmatprep.mubr.bf16.mxu0 0
        %2416 = vmatmul.mubr.bf16.gmra.mrb[0].mxu0 %v2332
        %v2417 = vpop.f32.mrb[0].mxu0
        %v2418 = vadd.f32 0.0, %v2417
        %v2419 = vpop.f32.mrb[0].mxu0
        %v2420 = vpop.f32.mrb[0].mxu0
        %v2421 = vpop.f32.mrb[0].mxu0
        %2422 = vdwg.mxu0
        %v2439 = vunpack.c.l.b16 %v2250
        %v2440 = vunpack.c.l.b16 %v2251
        %v2441 = vunpack.c.l.b16 %v2252
        %v2442 = vunpack.c.l.b16 %v2253
        %v2443 = vunpack.c.l.b16 %v2254
        %v2444 = vunpack.c.l.b16 %v2255
        %v2445 = vunpack.c.l.b16 %v2256
        %v2446 = vunpack.c.l.b16 %v2257
        %v2447 = vunpack.c.l.b16 %v2258
        %v2448 = vunpack.c.l.b16 %v2259
        %v2449 = vunpack.c.l.b16 %v2260
        %v2450 = vunpack.c.l.b16 %v2261
        %v2451 = vunpack.c.l.b16 %v2262
        %v2452 = vunpack.c.l.b16 %v2263
        %v2453 = vunpack.c.l.b16 %v2264
        %v2454 = vunpack.c.l.b16 %v2265
        %v2455 = vpack.c.b16 %v2440, %v2439
        %v2456 = vpack.c.b16 %v2442, %v2441
        %v2457 = vpack.c.b16 %v2444, %v2443
        %v2458 = vpack.c.b16 %v2446, %v2445
        %v2459 = vpack.c.b16 %v2448, %v2447
        %v2460 = vpack.c.b16 %v2450, %v2449
        %v2461 = vpack.c.b16 %v2452, %v2451
        %v2462 = vpack.c.b16 %v2454, %v2453
        %2471 = vmatprep.subr.bf16.mxu0 0
        %2472 = vmatpush1.bf16.msra.mxu0 %v2455
        %2473 = vmatprep.subr.bf16.mxu0 0
        %2474 = vmatpush1.bf16.msra.mxu0 %v2456
        %2475 = vmatprep.subr.bf16.mxu0 0
        %2476 = vmatpush1.bf16.msra.mxu0 %v2457
        %2477 = vmatprep.subr.bf16.mxu0 0
        %2478 = vmatpush1.bf16.msra.mxu0 %v2458
        %2479 = vmatprep.subr.bf16.mxu0 0
        %2480 = vmatpush1.bf16.msra.mxu0 %v2459
        %2481 = vmatprep.subr.bf16.mxu0 0
        %2482 = vmatpush1.bf16.msra.mxu0 %v2460
        %2483 = vmatprep.subr.bf16.mxu0 0
        %2484 = vmatpush1.bf16.msra.mxu0 %v2461
        %2485 = vmatprep.subr.bf16.mxu0 0
        %2486 = vmatpush1.bf16.msra.mxu0 %v2462
        %2487 = vmatprep.subr.bf16.mxu0 0
        %2488 = vmatpush1.bf16.msra.mxu0 0
        %2489 = vmatprep.subr.bf16.mxu0 0
        %2490 = vmatpush1.bf16.msra.mxu0 0
        %2491 = vmatprep.subr.bf16.mxu0 0
        %2492 = vmatpush1.bf16.msra.mxu0 0
        %2493 = vmatprep.subr.bf16.mxu0 0
        %2494 = vmatpush1.bf16.msra.mxu0 0
        %2495 = vmatprep.subr.bf16.mxu0 0
        %2496 = vmatpush1.bf16.msra.mxu0 0
        %2497 = vmatprep.subr.bf16.mxu0 0
        %2498 = vmatpush1.bf16.msra.mxu0 0
        %2499 = vmatprep.subr.bf16.mxu0 0
        %2500 = vmatpush1.bf16.msra.mxu0 0
        %2501 = vmatprep.subr.bf16.mxu0 0
        %2502 = vmatpush1.bf16.msra.mxu0 0
        %2503 = vmatprep.mubr.bf16.mxu0 0
        %2504 = vmatmul.mubr.bf16.gmra.mrb[0].mxu0 %v2330
        %v2505 = vpop.f32.mrb[0].mxu0
        %v2506 = vadd.f32 %v2418, %v2505
        %v2507 = vpop.f32.mrb[0].mxu0
        %v2508 = vpop.f32.mrb[0].mxu0
        %v2509 = vpop.f32.mrb[0].mxu0
        %2510 = vdwg.mxu0
        %v2512 = vrot.slane %v2330, 1
        %v2530 = vunpack.c.l.b16 %v2282
        %v2531 = vunpack.c.l.b16 %v2283
        %v2532 = vunpack.c.l.b16 %v2284
        %v2533 = vunpack.c.l.b16 %v2285
        %v2534 = vunpack.c.l.b16 %v2286
        %v2535 = vunpack.c.l.b16 %v2287
        %v2536 = vunpack.c.l.b16 %v2288
        %v2537 = vunpack.c.l.b16 %v2289
        %v2538 = vunpack.c.l.b16 %v2290
        %v2539 = vunpack.c.l.b16 %v2291
        %v2540 = vunpack.c.l.b16 %v2292
        %v2541 = vunpack.c.l.b16 %v2293
        %v2542 = vunpack.c.l.b16 %v2294
        %v2543 = vunpack.c.l.b16 %v2295
        %v2544 = vunpack.c.l.b16 %v2296
        %v2545 = vunpack.c.l.b16 %v2297
        %v2546 = vpack.c.b16 %v2531, %v2530
        %v2547 = vpack.c.b16 %v2533, %v2532
        %v2548 = vpack.c.b16 %v2535, %v2534
        %v2549 = vpack.c.b16 %v2537, %v2536
        %v2550 = vpack.c.b16 %v2539, %v2538
        %v2551 = vpack.c.b16 %v2541, %v2540
        %v2552 = vpack.c.b16 %v2543, %v2542
        %v2553 = vpack.c.b16 %v2545, %v2544
        %2562 = vmatprep.subr.bf16.mxu0 0
        %2563 = vmatpush1.bf16.msra.mxu0 %v2546
        %2564 = vmatprep.subr.bf16.mxu0 0
        %2565 = vmatpush1.bf16.msra.mxu0 %v2547
        %2566 = vmatprep.subr.bf16.mxu0 0
        %2567 = vmatpush1.bf16.msra.mxu0 %v2548
        %2568 = vmatprep.subr.bf16.mxu0 0
        %2569 = vmatpush1.bf16.msra.mxu0 %v2549
        %2570 = vmatprep.subr.bf16.mxu0 0
        %2571 = vmatpush1.bf16.msra.mxu0 %v2550
        %2572 = vmatprep.subr.bf16.mxu0 0
        %2573 = vmatpush1.bf16.msra.mxu0 %v2551
        %2574 = vmatprep.subr.bf16.mxu0 0
        %2575 = vmatpush1.bf16.msra.mxu0 %v2552
        %2576 = vmatprep.subr.bf16.mxu0 0
        %2577 = vmatpush1.bf16.msra.mxu0 %v2553
        %2578 = vmatprep.subr.bf16.mxu0 0
        %2579 = vmatpush1.bf16.msra.mxu0 0
        %2580 = vmatprep.subr.bf16.mxu0 0
        %2581 = vmatpush1.bf16.msra.mxu0 0
        %2582 = vmatprep.subr.bf16.mxu0 0
        %2583 = vmatpush1.bf16.msra.mxu0 0
        %2584 = vmatprep.subr.bf16.mxu0 0
        %2585 = vmatpush1.bf16.msra.mxu0 0
        %2586 = vmatprep.subr.bf16.mxu0 0
        %2587 = vmatpush1.bf16.msra.mxu0 0
        %2588 = vmatprep.subr.bf16.mxu0 0
        %2589 = vmatpush1.bf16.msra.mxu0 0
        %2590 = vmatprep.subr.bf16.mxu0 0
        %2591 = vmatpush1.bf16.msra.mxu0 0
        %2592 = vmatprep.subr.bf16.mxu0 0
        %2593 = vmatpush1.bf16.msra.mxu0 0
        %2594 = vmatprep.mubr.bf16.mxu0 0
        %2595 = vmatmul.mubr.bf16.gmra.mrb[0].mxu0 %v2512
        %v2596 = vpop.f32.mrb[0].mxu0
        %v2597 = vadd.f32 0.0, %v2596
        %v2598 = vpop.f32.mrb[0].mxu0
        %v2599 = vpop.f32.mrb[0].mxu0
        %v2600 = vpop.f32.mrb[0].mxu0
        %2601 = vdwg.mxu0
        %v2602 = vadd.f32 %v2506, %v2597
        %v2603 = vrot.slane %v2332, 1
        %v2621 = vunpack.c.l.b16 %v2298
        %v2622 = vunpack.c.l.b16 %v2299
        %v2623 = vunpack.c.l.b16 %v2300
        %v2624 = vunpack.c.l.b16 %v2301
        %v2625 = vunpack.c.l.b16 %v2302
        %v2626 = vunpack.c.l.b16 %v2303
        %v2627 = vunpack.c.l.b16 %v2304
        %v2628 = vunpack.c.l.b16 %v2305
        %v2629 = vunpack.c.l.b16 %v2306
        %v2630 = vunpack.c.l.b16 %v2307
        %v2631 = vunpack.c.l.b16 %v2308
        %v2632 = vunpack.c.l.b16 %v2309
        %v2633 = vunpack.c.l.b16 %v2310
        %v2634 = vunpack.c.l.b16 %v2311
        %v2635 = vunpack.c.l.b16 %v2312
        %v2636 = vunpack.c.l.b16 %v2313
        %v2637 = vpack.c.b16 %v2622, %v2621
        %v2638 = vpack.c.b16 %v2624, %v2623
        %v2639 = vpack.c.b16 %v2626, %v2625
        %v2640 = vpack.c.b16 %v2628, %v2627
        %v2641 = vpack.c.b16 %v2630, %v2629
        %v2642 = vpack.c.b16 %v2632, %v2631
        %v2643 = vpack.c.b16 %v2634, %v2633
        %v2644 = vpack.c.b16 %v2636, %v2635
        %2653 = vmatprep.subr.bf16.mxu0 0
        %2654 = vmatpush1.bf16.msra.mxu0 %v2637
        %2655 = vmatprep.subr.bf16.mxu0 0
        %2656 = vmatpush1.bf16.msra.mxu0 %v2638
        %2657 = vmatprep.subr.bf16.mxu0 0
        %2658 = vmatpush1.bf16.msra.mxu0 %v2639
        %2659 = vmatprep.subr.bf16.mxu0 0
        %2660 = vmatpush1.bf16.msra.mxu0 %v2640
        %2661 = vmatprep.subr.bf16.mxu0 0
        %2662 = vmatpush1.bf16.msra.mxu0 %v2641
        %2663 = vmatprep.subr.bf16.mxu0 0
        %2664 = vmatpush1.bf16.msra.mxu0 %v2642
        %2665 = vmatprep.subr.bf16.mxu0 0
        %2666 = vmatpush1.bf16.msra.mxu0 %v2643
        %2667 = vmatprep.subr.bf16.mxu0 0
        %2668 = vmatpush1.bf16.msra.mxu0 %v2644
        %2669 = vmatprep.subr.bf16.mxu0 0
        %2670 = vmatpush1.bf16.msra.mxu0 0
        %2671 = vmatprep.subr.bf16.mxu0 0
        %2672 = vmatpush1.bf16.msra.mxu0 0
        %2673 = vmatprep.subr.bf16.mxu0 0
        %2674 = vmatpush1.bf16.msra.mxu0 0
        %2675 = vmatprep.subr.bf16.mxu0 0
        %2676 = vmatpush1.bf16.msra.mxu0 0
        %2677 = vmatprep.subr.bf16.mxu0 0
        %2678 = vmatpush1.bf16.msra.mxu0 0
        %2679 = vmatprep.subr.bf16.mxu0 0
        %2680 = vmatpush1.bf16.msra.mxu0 0
        %2681 = vmatprep.subr.bf16.mxu0 0
        %2682 = vmatpush1.bf16.msra.mxu0 0
        %2683 = vmatprep.subr.bf16.mxu0 0
        %2684 = vmatpush1.bf16.msra.mxu0 0
        %2685 = vmatprep.mubr.bf16.mxu0 0
        %2686 = vmatmul.mubr.bf16.gmra.mrb[0].mxu0 %v2603
        %v2687 = vpop.f32.mrb[0].mxu0
        %v2688 = vadd.f32 0.0, %v2687
        %v2689 = vpop.f32.mrb[0].mxu0
        %v2690 = vpop.f32.mrb[0].mxu0
        %v2691 = vpop.f32.mrb[0].mxu0
        %2692 = vdwg.mxu0
        %v2693 = vadd.f32 %v2602, %v2688
        %v2694 = vrot.slane %v2330, 2
        %v2712 = vunpack.c.l.b16 %v2314
        %v2713 = vunpack.c.l.b16 %v2315
        %v2714 = vunpack.c.l.b16 %v2316
        %v2715 = vunpack.c.l.b16 %v2317
        %v2716 = vunpack.c.l.b16 %v2318
        %v2717 = vunpack.c.l.b16 %v2319
        %v2718 = vunpack.c.l.b16 %v2320
        %v2719 = vunpack.c.l.b16 %v2321
        %v2720 = vunpack.c.l.b16 %v2322
        %v2721 = vunpack.c.l.b16 %v2323
        %v2722 = vunpack.c.l.b16 %v2324
        %v2723 = vunpack.c.l.b16 %v2325
        %v2724 = vunpack.c.l.b16 %v2326
        %v2725 = vunpack.c.l.b16 %v2327
        %v2726 = vunpack.c.l.b16 %v2328
        %v2727 = vunpack.c.l.b16 %v2329
        %v2728 = vpack.c.b16 %v2713, %v2712
        %v2729 = vpack.c.b16 %v2715, %v2714
        %v2730 = vpack.c.b16 %v2717, %v2716
        %v2731 = vpack.c.b16 %v2719, %v2718
        %v2732 = vpack.c.b16 %v2721, %v2720
        %v2733 = vpack.c.b16 %v2723, %v2722
        %v2734 = vpack.c.b16 %v2725, %v2724
        %v2735 = vpack.c.b16 %v2727, %v2726
        %2744 = vmatprep.subr.bf16.mxu0 0
        %2745 = vmatpush1.bf16.msra.mxu0 %v2728
        %2746 = vmatprep.subr.bf16.mxu0 0
        %2747 = vmatpush1.bf16.msra.mxu0 %v2729
        %2748 = vmatprep.subr.bf16.mxu0 0
        %2749 = vmatpush1.bf16.msra.mxu0 %v2730
        %2750 = vmatprep.subr.bf16.mxu0 0
        %2751 = vmatpush1.bf16.msra.mxu0 %v2731
        %2752 = vmatprep.subr.bf16.mxu0 0
        %2753 = vmatpush1.bf16.msra.mxu0 %v2732
        %2754 = vmatprep.subr.bf16.mxu0 0
        %2755 = vmatpush1.bf16.msra.mxu0 %v2733
        %2756 = vmatprep.subr.bf16.mxu0 0
        %2757 = vmatpush1.bf16.msra.mxu0 %v2734
        %2758 = vmatprep.subr.bf16.mxu0 0
        %2759 = vmatpush1.bf16.msra.mxu0 %v2735
        %2760 = vmatprep.subr.bf16.mxu0 0
        %2761 = vmatpush1.bf16.msra.mxu0 0
        %2762 = vmatprep.subr.bf16.mxu0 0
        %2763 = vmatpush1.bf16.msra.mxu0 0
        %2764 = vmatprep.subr.bf16.mxu0 0
        %2765 = vmatpush1.bf16.msra.mxu0 0
        %2766 = vmatprep.subr.bf16.mxu0 0
        %2767 = vmatpush1.bf16.msra.mxu0 0
        %2768 = vmatprep.subr.bf16.mxu0 0
        %2769 = vmatpush1.bf16.msra.mxu0 0
        %2770 = vmatprep.subr.bf16.mxu0 0
        %2771 = vmatpush1.bf16.msra.mxu0 0
        %2772 = vmatprep.subr.bf16.mxu0 0
        %2773 = vmatpush1.bf16.msra.mxu0 0
        %2774 = vmatprep.subr.bf16.mxu0 0
        %2775 = vmatpush1.bf16.msra.mxu0 0
        %2776 = vmatprep.mubr.bf16.mxu0 0
        %2777 = vmatmul.mubr.bf16.gmra.mrb[0].mxu0 %v2694
        %v2778 = vpop.f32.mrb[0].mxu0
        %v2779 = vadd.f32 0.0, %v2778
        %v2780 = vpop.f32.mrb[0].mxu0
        %v2781 = vpop.f32.mrb[0].mxu0
        %v2782 = vpop.f32.mrb[0].mxu0
        %2783 = vdwg.mxu0
        %v2784 = vadd.f32 %v2693, %v2779
        %v2785 = vld [vmem:[%s10] sm:$0x1]
        %v2786 = vadd.f32 %v2784, %v2785
        %v2787 = vmax.f32 %v2786, 0.0
        %v2788 = vld [vmem:[%s11] sm:$0xf]
        %v2789 = vld [vmem:[%s11 + $0x4] sm:$0xf]
        %v2790 = vld [vmem:[%s11 + $0x8] sm:$0xf]
        %v2791 = vld [vmem:[%s11 + $0xc] sm:$0xf]
        %v2792 = vld [vmem:[%s11 + $0x10] sm:$0xf]
        %v2793 = vld [vmem:[%s11 + $0x14] sm:$0xf]
        %v2794 = vld [vmem:[%s11 + $0x18] sm:$0xf]
        %v2795 = vld [vmem:[%s11 + $0x1c] sm:$0xf]
        %v2796 = vld [vmem:[%s11 + $0x20] sm:$0xf]
        %v2797 = vld [vmem:[%s11 + $0x24] sm:$0xf]
        %v2798 = vld [vmem:[%s11 + $0x28] sm:$0xf]
        %v2799 = vld [vmem:[%s11 + $0x2c] sm:$0xf]
        %v2800 = vld [vmem:[%s11 + $0x30] sm:$0xf]
        %v2801 = vld [vmem:[%s11 + $0x34] sm:$0xf]
        %v2802 = vld [vmem:[%s11 + $0x38] sm:$0xf]
        %v2803 = vpack.c.bf16 %v2787, %v2787
        %v2804 = vld [vmem:[%s12] sm:$0x1]
        %v2820 = vunpack.c.l.b16 %v2788
        %v2821 = vunpack.c.l.b16 %v2789
        %v2822 = vunpack.c.l.b16 %v2790
        %v2823 = vunpack.c.l.b16 %v2791
        %v2824 = vunpack.c.l.b16 %v2792
        %v2825 = vunpack.c.l.b16 %v2793
        %v2826 = vunpack.c.l.b16 %v2794
        %v2827 = vunpack.c.l.b16 %v2795
        %v2828 = vunpack.c.l.b16 %v2796
        %v2829 = vunpack.c.l.b16 %v2797
        %v2830 = vunpack.c.l.b16 %v2798
        %v2831 = vunpack.c.l.b16 %v2799
        %v2832 = vunpack.c.l.b16 %v2800
        %v2833 = vunpack.c.l.b16 %v2801
        %v2834 = vunpack.c.l.b16 %v2802
        %v2835 = vpack.c.b16 %v2821, %v2820
        %v2836 = vpack.c.b16 %v2823, %v2822
        %v2837 = vpack.c.b16 %v2825, %v2824
        %v2838 = vpack.c.b16 %v2827, %v2826
        %v2839 = vpack.c.b16 %v2829, %v2828
        %v2840 = vpack.c.b16 %v2831, %v2830
        %v2841 = vpack.c.b16 %v2833, %v2832
        %v2842 = vpack.c.b16 %v2834, %v2834
        %vm2850 = vcmask 982016
        %v2852 = vsel %vm2850, %v2803, 0
        %v2855 = vsel %vm1221, %v2842, 0
        %2857 = vmatprep.subr.bf16.mxu0 0
        %2858 = vmatpush1.bf16.msra.mxu0 %v2835
        %2859 = vmatprep.subr.bf16.mxu0 0
        %2860 = vmatpush1.bf16.msra.mxu0 %v2836
        %2861 = vmatprep.subr.bf16.mxu0 0
        %2862 = vmatpush1.bf16.msra.mxu0 %v2837
        %2863 = vmatprep.subr.bf16.mxu0 0
        %2864 = vmatpush1.bf16.msra.mxu0 %v2838
        %2865 = vmatprep.subr.bf16.mxu0 0
        %2866 = vmatpush1.bf16.msra.mxu0 %v2839
        %2867 = vmatprep.subr.bf16.mxu0 0
        %2868 = vmatpush1.bf16.msra.mxu0 %v2840
        %2869 = vmatprep.subr.bf16.mxu0 0
        %2870 = vmatpush1.bf16.msra.mxu0 %v2841
        %2871 = vmatprep.subr.bf16.mxu0 0
        %2872 = vmatpush1.bf16.msra.mxu0 %v2855
        %2873 = vmatprep.subr.bf16.mxu0 0
        %2874 = vmatpush1.bf16.msra.mxu0 0
        %2875 = vmatprep.subr.bf16.mxu0 0
        %2876 = vmatpush1.bf16.msra.mxu0 0
        %2877 = vmatprep.subr.bf16.mxu0 0
        %2878 = vmatpush1.bf16.msra.mxu0 0
        %2879 = vmatprep.subr.bf16.mxu0 0
        %2880 = vmatpush1.bf16.msra.mxu0 0
        %2881 = vmatprep.subr.bf16.mxu0 0
        %2882 = vmatpush1.bf16.msra.mxu0 0
        %2883 = vmatprep.subr.bf16.mxu0 0
        %2884 = vmatpush1.bf16.msra.mxu0 0
        %2885 = vmatprep.subr.bf16.mxu0 0
        %2886 = vmatpush1.bf16.msra.mxu0 0
        %2887 = vmatprep.subr.bf16.mxu0 0
        %2888 = vmatpush1.bf16.msra.mxu0 0
        %2889 = vmatprep.mubr.bf16.mxu0 0
        %2890 = vmatmul.mubr.bf16.gmra.mrb[0].mxu0 %v2852
        %v2891 = vpop.f32.mrb[0].mxu0
        %v2892 = vadd.f32 %v2804, %v2891
        %v2893 = vpop.f32.mrb[0].mxu0
        %v2894 = vpop.f32.mrb[0].mxu0
        %v2895 = vpop.f32.mrb[0].mxu0
        %2896 = vdwg.mxu0
        %v2897 = vmax.f32 %v2892, 0.0
        %v2898 = vld [vmem:[%s13] sm:$0xf]
        %v2899 = vld [vmem:[%s13 + $0x4] sm:$0xf]
        %v2900 = vld [vmem:[%s13 + $0x8] sm:$0xf]
        %v2901 = vld [vmem:[%s13 + $0xc] sm:$0xf]
        %v2902 = vld [vmem:[%s13 + $0x10] sm:$0xf]
        %v2903 = vld [vmem:[%s13 + $0x14] sm:$0xf]
        %v2904 = vld [vmem:[%s13 + $0x18] sm:$0xf]
        %v2905 = vld [vmem:[%s13 + $0x1c] sm:$0xf]
        %v2906 = vld [vmem:[%s13 + $0x20] sm:$0xf]
        %v2907 = vld [vmem:[%s13 + $0x24] sm:$0xf]
        %v2908 = vld [vmem:[%s13 + $0x28] sm:$0x3]
        %v2909 = vpack.c.bf16 %v2897, %v2897
        %v2910 = vld [vmem:[%s14] sm:$0x1]
        %v2922 = vunpack.c.l.b16 %v2898
        %v2923 = vunpack.c.l.b16 %v2899
        %v2924 = vunpack.c.l.b16 %v2900
        %v2925 = vunpack.c.l.b16 %v2901
        %v2926 = vunpack.c.l.b16 %v2902
        %v2927 = vunpack.c.l.b16 %v2903
        %v2928 = vunpack.c.l.b16 %v2904
        %v2929 = vunpack.c.l.b16 %v2905
        %v2930 = vunpack.c.l.b16 %v2906
        %v2931 = vunpack.c.l.b16 %v2907
        %v2932 = vunpack.c.l.b16 %v2908
        %v2933 = vpack.c.b16 %v2923, %v2922
        %v2934 = vpack.c.b16 %v2925, %v2924
        %v2935 = vpack.c.b16 %v2927, %v2926
        %v2936 = vpack.c.b16 %v2929, %v2928
        %v2937 = vpack.c.b16 %v2931, %v2930
        %v2938 = vpack.c.b16 %v2932, %v2932
        %vm2944 = vcmask 687104
        %v2946 = vsel %vm2944, %v2909, 0
        %vm2948 = vcmask 1041408
        %v2950 = vsel %vm2948, %v2938, 0
        %2952 = vmatprep.subr.bf16.mxu0 0
        %2953 = vmatpush1.bf16.msra.mxu0 %v2933
        %2954 = vmatprep.subr.bf16.mxu0 0
        %2955 = vmatpush1.bf16.msra.mxu0 %v2934
        %2956 = vmatprep.subr.bf16.mxu0 0
        %2957 = vmatpush1.bf16.msra.mxu0 %v2935
        %2958 = vmatprep.subr.bf16.mxu0 0
        %2959 = vmatpush1.bf16.msra.mxu0 %v2936
        %2960 = vmatprep.subr.bf16.mxu0 0
        %2961 = vmatpush1.bf16.msra.mxu0 %v2937
        %2962 = vmatprep.subr.bf16.mxu0 0
        %2963 = vmatpush1.bf16.msra.mxu0 %v2950
        %2964 = vmatprep.subr.bf16.mxu0 0
        %2965 = vmatpush1.bf16.msra.mxu0 0
        %2966 = vmatprep.subr.bf16.mxu0 0
        %2967 = vmatpush1.bf16.msra.mxu0 0
        %2968 = vmatprep.subr.bf16.mxu0 0
        %2969 = vmatpush1.bf16.msra.mxu0 0
        %2970 = vmatprep.subr.bf16.mxu0 0
        %2971 = vmatpush1.bf16.msra.mxu0 0
        %2972 = vmatprep.subr.bf16.mxu0 0
        %2973 = vmatpush1.bf16.msra.mxu0 0
        %2974 = vmatprep.subr.bf16.mxu0 0
        %2975 = vmatpush1.bf16.msra.mxu0 0
        %2976 = vmatprep.subr.bf16.mxu0 0
        %2977 = vmatpush1.bf16.msra.mxu0 0
        %2978 = vmatprep.subr.bf16.mxu0 0
        %2979 = vmatpush1.bf16.msra.mxu0 0
        %2980 = vmatprep.subr.bf16.mxu0 0
        %2981 = vmatpush1.bf16.msra.mxu0 0
        %2982 = vmatprep.subr.bf16.mxu0 0
        %2983 = vmatpush1.bf16.msra.mxu0 0
        %2984 = vmatprep.mubr.bf16.mxu0 0
        %2985 = vmatmul.mubr.bf16.gmra.mrb[0].mxu0 %v2946
        %v2986 = vpop.f32.mrb[0].mxu0
        %v2987 = vadd.f32 %v2910, %v2986
        %v2988 = vpop.f32.mrb[0].mxu0
        %v2989 = vpop.f32.mrb[0].mxu0
        %v2990 = vpop.f32.mrb[0].mxu0
        %2991 = vdwg.mxu0
        %v2992 = vlaneseq
        %v2993 = vshrl.u32 %v2992, 7
        %v2994 = vsub.s32 0, %v2993
        %v2995 = vrot.slane %v2987, %v2994
        %2996 = vst [vmem:[%s487] sm:$0xff] %v2995
        %s2997 = sand.u32 %s357, 1
        %s2998 = scalar_lea.sflag [#allocation3], %s2997
        %s2999 = sand.u32 %s357, 1
        %s3000 = smul.addr %s2999, 8
        %s3001 = scalar_lea.vmem [#allocation2], %s3000
        // Predicated region
        $region81: #{tpu_custom_call.1} parent=79 // pred_check
          %p3002 = pneg %p367
        $region82: #{tpu_custom_call.1} parent=79 // pred_check_branch
          %3004 = sbr.rel (%p3002) target = $region84
        $region83: #{tpu_custom_call.1} parent=79 // pred_region
          %s3006 = ssub.s32 128, 128
          %3007 = vsyncadd %s2998, %s3006
          %s3008 = smul.addr %s29, 128
          %s3009 = scalar_lea.hbm %s15, %s3008
          %s3011 = sshll.u32 %s3001, 4
          %s3012 = int_to_ptr.vmem [resolvable:$true] %s3011
          %3014 = dma.vmem_to_hbm [thread:$0]  %s3012, 128, %s3009, %s2998
        $region84: #{tpu_custom_call.1} parent=79 // pred_fallthru
          _
      $region80: #{tpu_custom_call.1} parent=5 // pred_fallthru
        _
      %p3015 = scmp.le.s32.totalorder 2, %s24
      // Predicated region
      $region85: #{tpu_custom_call.1} parent=5 // pred_check
        %p3016 = pneg %p3015
      $region86: #{tpu_custom_call.1} parent=5 // pred_check_branch
        %3018 = sbr.rel (%p3016) target = $region88
      $region87: #{tpu_custom_call.1} parent=5 // pred_region
        %s3019 = ssub.s32 %s24, 2
        // Predicated region
        $region89: #{tpu_custom_call.1} parent=87 // pred_check
          %p3020 = pneg %p373
        $region90: #{tpu_custom_call.1} parent=87 // pred_check_branch
          %3022 = sbr.rel (%p3020) target = $region92
        $region91: #{tpu_custom_call.1} parent=87 // pred_region
          %s3023 = sand.u32 %s358, 1
          %s3024 = scalar_lea.sflag [#allocation3], %s3023
          %s3025 = sand.u32 %s358, 1
          %s3026 = smul.addr %s3025, 8
          %s3027 = scalar_lea.vmem [#allocation2], %s3026
          %3028 = dma.done %s3024, 128
        $region92: #{tpu_custom_call.1} parent=87 // pred_fallthru
          _
      $region88: #{tpu_custom_call.1} parent=5 // pred_fallthru
        _
    $region6: #{tpu_custom_call.1} parent=1 // loop_footer
      %s28 = sadd.s32 1, %s24
    $region7: #{tpu_custom_call.1} parent=1 // loop_footer_branch
      %23 = sbr.rel target = $region3
    $region8: #{tpu_custom_call.1} parent=1 // loop_exit
      _
    %3029 = vsyncpa [#allocation3], 1
    %s3030 = scalar_lea.sflag [#allocation3], 1
    %3031 = vsyncpa %s3030, 1

</llo_original>
